<compile_context>
chip_gen: v7x
topology: tpu7x:2x2x1
jax: 0.10.0
libtpu: 0.0.40
codegen_flags: <defaults>
</compile_context>

<pallas_src>
import jax
import jax.numpy as jnp
from jax.experimental import pallas as pl
from jax.experimental.pallas import tpu as pltpu


_COMPUTE_DTYPE = jnp.bfloat16
_VMEM_LIMIT = 48 * 1024 * 1024       # fits v7x (64 MiB physical), plenty on v5e/v6e
_TILE_BUDGET = 24 * 1024 * 1024      # double-buffered block budget


# ----------------------------------------------------------------------------
# Tile-size heuristics
# ----------------------------------------------------------------------------
def _pick_tn(n_out, k, itemsize):
    for c in (512, 256, 128):
        if n_out % c == 0 and 2 * k * c * itemsize <= _TILE_BUDGET // 2:
            return c
    for c in (256, 128):
        if n_out % c == 0:
            return c
    return n_out                      # small Nout: take the full dim


def _pick_tm(m, k, tn, in_itemsize, out_itemsize):
    for c in (1024, 512, 256, 128, 64, 32, 16, 8):
        if m % c != 0:
            continue
        need = 2 * (c * k * in_itemsize + k * tn * in_itemsize + c * tn * out_itemsize)
        if need <= _TILE_BUDGET:
            return c
    return m                          # tiny / odd M: single full-M block


# ----------------------------------------------------------------------------
# Pallas kernels
# ----------------------------------------------------------------------------
def _conv_stats_kernel(x_ref, w_ref, o_ref, sum_ref, sq_ref):
    # (tm, K) @ (K, tn) on the MXU with f32 accumulation; BN partial stats
    # (per-channel sum / sum of squares of this tile) fused into the epilogue.
    acc = jnp.dot(x_ref[...], w_ref[...], preferred_element_type=jnp.float32)
    o_ref[...] = acc.astype(o_ref.dtype)
    s = jnp.sum(acc, axis=0, keepdims=True)
    q = jnp.sum(acc * acc, axis=0, keepdims=True)
    sum_ref[...] = jnp.broadcast_to(s, sum_ref.shape)   # (8, tn) keeps blocks 8-aligned
    sq_ref[...] = jnp.broadcast_to(q, sq_ref.shape)


def _conv_bias_tanh_kernel(x_ref, w_ref, b_ref, o_ref):
    acc = jnp.dot(x_ref[...], w_ref[...], preferred_element_type=jnp.float32)
    o_ref[...] = jnp.tanh(acc + b_ref[...]).astype(o_ref.dtype)


def _scale_shift_relu_kernel(x_ref, s_ref, b_ref, o_ref):
    x = x_ref[...].astype(jnp.float32)
    y = x * s_ref[...] + b_ref[...]
    o_ref[...] = jnp.maximum(y, 0.0).astype(o_ref.dtype)


# ----------------------------------------------------------------------------
# Pallas wrappers
# ----------------------------------------------------------------------------
def pallas_conv_stats(x, w, out_dtype=_COMPUTE_DTYPE):
    """x: (M, K), w: (K, Nout) -> (conv (M, Nout), per-tile channel sum, sumsq)."""
    m, k = x.shape
    n_out = w.shape[1]
    tn = _pick_tn(n_out, k, x.dtype.itemsize)
    tm = _pick_tm(m, k, tn, x.dtype.itemsize, jnp.dtype(out_dtype).itemsize)
    mt, nt = m // tm, n_out // tn
    conv, psum, psq = pl.pallas_call(
        _conv_stats_kernel,
        out_shape=(jax.ShapeDtypeStruct((m, n_out), out_dtype),
                   jax.ShapeDtypeStruct((8 * mt, n_out), jnp.float32),
                   jax.ShapeDtypeStruct((8 * mt, n_out), jnp.float32)),
        grid=(mt, nt),
        in_specs=[pl.BlockSpec((tm, k), lambda i, j: (i, 0)),
                  pl.BlockSpec((k, tn), lambda i, j: (0, j))],
        out_specs=(pl.BlockSpec((tm, tn), lambda i, j: (i, j)),
                   pl.BlockSpec((8, tn), lambda i, j: (i, j)),
                   pl.BlockSpec((8, tn), lambda i, j: (i, j))),
        compiler_params=pltpu.CompilerParams(
            dimension_semantics=("parallel", "parallel"),
            vmem_limit_bytes=_VMEM_LIMIT),
    )(x, w)
    return conv, psum[::8], psq[::8]


def pallas_conv_bias_tanh(x, w, bias_cols, out_dtype=jnp.float32):
    """Final layer: matmul with fused (+bias, tanh) epilogue."""
    m, k = x.shape
    n_out = w.shape[1]
    tn = _pick_tn(n_out, k, x.dtype.itemsize)
    tm = _pick_tm(m, k, tn, x.dtype.itemsize, jnp.dtype(out_dtype).itemsize)
    mt, nt = m // tm, n_out // tn
    b2d = bias_cols.astype(jnp.float32).reshape(1, n_out)
    return pl.pallas_call(
        _conv_bias_tanh_kernel,
        out_shape=jax.ShapeDtypeStruct((m, n_out), out_dtype),
        grid=(mt, nt),
        in_specs=[pl.BlockSpec((tm, k), lambda i, j: (i, 0)),
                  pl.BlockSpec((k, tn), lambda i, j: (0, j)),
                  pl.BlockSpec((1, tn), lambda i, j: (0, j))],
        out_specs=pl.BlockSpec((tm, tn), lambda i, j: (i, j)),
        compiler_params=pltpu.CompilerParams(
            dimension_semantics=("parallel", "parallel"),
            vmem_limit_bytes=_VMEM_LIMIT),
    )(x, w, b2d)


def pallas_bn_relu(conv2d, scale_col, shift_col):
    """y = relu(x * scale + shift), column-wise params; the slab is re-viewed so
    the lane (last) dim is >= 256 wide (lane-dense stores), row-tiled grid."""
    m, c = conv2d.shape
    rep = 1
    while c * rep < 256 and m % (rep * 2) == 0:
        rep *= 2
    x = conv2d.reshape(m // rep, rep * c)
    s = jnp.tile(scale_col.astype(jnp.float32), rep).reshape(1, rep * c)
    b = jnp.tile(shift_col.astype(jnp.float32), rep).reshape(1, rep * c)
    rows, cols = x.shape
    tr = rows
    for cand in (1024, 512, 256, 128, 64, 32, 16, 8):
        if rows % cand == 0 and cand * cols * x.dtype.itemsize <= (2 << 20):
            tr = cand
            break
    out = pl.pallas_call(
        _scale_shift_relu_kernel,
        out_shape=jax.ShapeDtypeStruct((rows, cols), conv2d.dtype),
        grid=(rows // tr,),
        in_specs=[pl.BlockSpec((tr, cols), lambda i: (i, 0)),
                  pl.BlockSpec((1, cols), lambda i: (0, 0)),
                  pl.BlockSpec((1, cols), lambda i: (0, 0))],
        out_specs=pl.BlockSpec((tr, cols), lambda i: (i, 0)),
        compiler_params=pltpu.CompilerParams(
            dimension_semantics=("parallel",),
            vmem_limit_bytes=_VMEM_LIMIT),
    )(x, s, b)
    return out.reshape(m, c)


# ----------------------------------------------------------------------------
# ConvTranspose2d (stride 2, pad 1, k=4) as a folded-phase dense conv
# ----------------------------------------------------------------------------
# (window-row offset, output phase) -> ConvTranspose kernel tap index
_TAPS = {(0, 0): 3, (1, 0): 1, (1, 1): 2, (2, 1): 0}


def _fold_phase_weight(w):
    """PyTorch ConvTranspose2d weight (Cin, Cout, 4, 4) -> (9*Cin, 4*Cout).
    Contraction order (di, dj, ci) over a 3x3 padded-input window,
    output column order (py, px, co) = the 2x2 output phase grid."""
    cin, cout = w.shape[0], w.shape[1]
    wf = jnp.zeros((3, 3, cin, 2, 2, cout), w.dtype)
    for (di, py), kh in _TAPS.items():
        for (dj, px), kw in _TAPS.items():
            wf = wf.at[di, dj, :, py, px, :].set(w[:, :, kh, kw])
    return wf.reshape(9 * cin, 4 * cout)


def _make_patches(x_nhwc):
    """im2col gather (no scatter): (N,H,W,C) -> (N*H*W, 9*C), cols (di,dj,ci)."""
    n, h, w, c = x_nhwc.shape
    p = jnp.pad(x_nhwc, ((0, 0), (1, 1), (1, 1), (0, 0)))
    cols = [p[:, di:di + h, dj:dj + w, :] for di in range(3) for dj in range(3)]
    patches = jnp.concatenate(cols, axis=-1)
    return patches.reshape(n * h * w, 9 * c), h, w


def _interleave_phases(out2d, n, h, w, cout):
    """(N*H*W, 4*Cout) phase-major columns -> NHWC (N, 2H, 2W, Cout)."""
    x = out2d.reshape(n, h, w, 2, 2, cout)
    x = jnp.transpose(x, (0, 1, 3, 2, 4, 5))
    return x.reshape(n, 2 * h, 2 * w, cout)


def _bn_scale_shift(psum, psq, gamma, beta, count, n_rep, eps=1e-5):
    """Finalize BN batch stats from per-tile partials (tiny), fold into scale/shift."""
    c = gamma.shape[0]
    s = psum.sum(axis=0).reshape(n_rep, c).sum(axis=0)
    q = psq.sum(axis=0).reshape(n_rep, c).sum(axis=0)
    mean = s / count
    var = jnp.maximum(q / count - mean * mean, 0.0)
    inv = jax.lax.rsqrt(var + eps)
    scale = gamma * inv
    shift = beta - mean * scale
    return jnp.tile(scale, n_rep), jnp.tile(shift, n_rep)


# ----------------------------------------------------------------------------
# Generator
# ----------------------------------------------------------------------------
def init_params(key, channels_noise, channels_img, features_g):
    fg = features_g
    shapes = [
        (channels_noise, fg * 16, 4, 4),   # block 1: stride 1, pad 0
        (fg * 16, fg * 8, 4, 4),           # block 2: stride 2, pad 1
        (fg * 8, fg * 4, 4, 4),            # block 3
        (fg * 4, fg * 2, 4, 4),            # block 4
        (fg * 2, channels_img, 4, 4),      # final conv-transpose (has bias)
    ]
    params = {}
    keys = jax.random.split(key, 2 * len(shapes) + 3)
    for i, s in enumerate(shapes):
        params[f"w{i}"] = 0.05 * jax.random.normal(keys[i], s, jnp.float32)
    for i, s in enumerate(shapes[:4]):
        cout = s[1]
        params[f"gamma{i}"] = 1.0 + 0.1 * jax.random.normal(
            keys[len(shapes) + i], (cout,), jnp.float32)
        params[f"beta{i}"] = 0.1 * jax.random.normal(
            keys[len(shapes) + 4 + i], (cout,), jnp.float32)
    params["bias4"] = 0.05 * jax.random.normal(
        keys[-1], (channels_img,), jnp.float32)
    return params


@jax.jit
def generator_forward(x_nchw, params):
    """x_nchw: (N, channels_noise, 1, 1) -> (N, channels_img, 64, 64)."""
    n, cn = x_nchw.shape[0], x_nchw.shape[1]
    x = x_nchw.reshape(n, cn).astype(_COMPUTE_DTYPE)

    # ---- block 1: ConvT(stride 1, pad 0) on a 1x1 input == plain matmul ----
    w0 = params["w0"]                                        # (Cn, C0, 4, 4)
    c0 = w0.shape[1]
    w0m = jnp.transpose(w0, (0, 2, 3, 1)).reshape(cn, 16 * c0)
    conv, psum, psq = pallas_conv_stats(x, w0m.astype(_COMPUTE_DTYPE))
    scale, shift = _bn_scale_shift(psum, psq, params["gamma0"], params["beta0"],
                                   count=n * 16, n_rep=16)
    act = pallas_bn_relu(conv, scale, shift)                 # (N, 16*C0)
    feat = act.reshape(n, 4, 4, c0)                          # NHWC

    # ---- blocks 2-4: ConvT(stride 2, pad 1) + BatchNorm + ReLU ----
    for i in (1, 2, 3):
        w = params[f"w{i}"]
        cout = w.shape[1]
        wf = _fold_phase_weight(w).astype(_COMPUTE_DTYPE)
        patches, h, wd = _make_patches(feat)
        conv, psum, psq = pallas_conv_stats(patches, wf)
        scale, shift = _bn_scale_shift(psum, psq,
                                       params[f"gamma{i}"], params[f"beta{i}"],
                                       count=patches.shape[0] * 4, n_rep=4)
        act = pallas_bn_relu(conv, scale, shift)             # (N*H*W, 4*Cout)
        feat = _interleave_phases(act, n, h, wd, cout)

    # ---- final: ConvT(stride 2, pad 1) + bias + tanh fused into the matmul ----
    w4 = params["w4"]
    cimg = w4.shape[1]
    wf = _fold_phase_weight(w4).astype(_COMPUTE_DTYPE)
    patches, h, wd = _make_patches(feat)
    bias_cols = jnp.tile(params["bias4"], 4)                 # (4*Cimg,), (phase, c)
    out2d = pallas_conv_bias_tanh(patches, wf, bias_cols)    # (N*H*W, 4*Cimg) f32
    img = _interleave_phases(out2d, n, h, wd, cimg)          # (N, 64, 64, Cimg)
    return jnp.transpose(img, (0, 3, 1, 2))                  # NCHW


# ----------------------------------------------------------------------------
if __name__ == "__main__":
    channels_noise = 8
    channels_img = 3
    features_g = 4
    batch = 2

    key = jax.random.PRNGKey(0)
    k_params, k_noise = jax.random.split(key)
    params = init_params(k_params, channels_noise, channels_img, features_g)
    z = jax.random.normal(k_noise, (batch, channels_noise, 1, 1), jnp.float32)

    out = generator_forward(z, params)
    out = jax.block_until_ready(out)

    assert out.shape == (batch, channels_img, 64, 64), out.shape
    assert bool(jnp.all(jnp.isfinite(out)))
    assert bool(jnp.all(jnp.abs(out) <= 1.0 + 1e-6))   # tanh range
    print("KERNEL_OK")
</pallas_src>

<mosaic_0001>
module attributes {stable_mosaic.version = 11 : i64} {
  func.func @_conv_stats_kernel(%arg0: i32, %arg1: i32, %arg2: memref<2x8xbf16, #tpu.memory_space<vmem>>, %arg3: memref<8x512xbf16, #tpu.memory_space<vmem>>, %arg4: memref<2x512xbf16, #tpu.memory_space<vmem>>, %arg5: memref<8x512xf32, #tpu.memory_space<vmem>>, %arg6: memref<8x512xf32, #tpu.memory_space<vmem>>) attributes {dimension_semantics = [#tpu.dimension_semantics<parallel>, #tpu.dimension_semantics<parallel>], iteration_bounds = array<i64: 1, 2>, scalar_prefetch = 0 : i64, scratch_operands = 0 : i64, tpu.core_type = #tpu.core_type<tc>, window_params = [{transform_indices = @transform_0, window_bounds = array<i64: 2, 8>}, {transform_indices = @transform_1, window_bounds = array<i64: 8, 512>}, {transform_indices = @transform_2, window_bounds = array<i64: 2, 512>}, {transform_indices = @transform_3, window_bounds = array<i64: 8, 512>}, {transform_indices = @transform_4, window_bounds = array<i64: 8, 512>}]} {
    %c0 = arith.constant 0 : index
    %c0_0 = arith.constant 0 : index
    %0 = vector.load %arg2[%c0, %c0_0] : memref<2x8xbf16, #tpu.memory_space<vmem>>, vector<2x8xbf16>
    %c0_1 = arith.constant 0 : index
    %c0_2 = arith.constant 0 : index
    %1 = vector.load %arg3[%c0_1, %c0_2] : memref<8x512xbf16, #tpu.memory_space<vmem>>, vector<8x512xbf16>
    %cst = arith.constant dense<0.000000e+00> : vector<2x512xf32>
    %2 = tpu.matmul %0, %1, %cst {dimension_numbers = #tpu.dot_dimension_numbers<[1], [0], [0], [1], [0, 0, 1, 1], [], []>} : vector<2x8xbf16>, vector<8x512xbf16>, vector<2x512xf32> -> vector<2x512xf32>
    %3 = arith.truncf %2 : vector<2x512xf32> to vector<2x512xbf16>
    %c0_3 = arith.constant 0 : index
    %c0_4 = arith.constant 0 : index
    %4 = vector.load %arg4[%c0_3, %c0_4] : memref<2x512xbf16, #tpu.memory_space<vmem>>, vector<2x512xbf16>
    tpu.vector_store %arg4[%c0_3, %c0_4], %3 {strides = array<i32>} : memref<2x512xbf16, #tpu.memory_space<vmem>>, vector<2x512xbf16>,
    %cst_5 = arith.constant dense<0.000000e+00> : vector<512xf32>
    %5 = vector.multi_reduction <add>, %2, %cst_5 [0] : vector<2x512xf32> to vector<512xf32>
    %6 = vector.shape_cast %5 : vector<512xf32> to vector<1x512xf32>
    %7 = arith.mulf %2, %2 : vector<2x512xf32>
    %cst_6 = arith.constant dense<0.000000e+00> : vector<512xf32>
    %8 = vector.multi_reduction <add>, %7, %cst_6 [0] : vector<2x512xf32> to vector<512xf32>
    %9 = vector.shape_cast %8 : vector<512xf32> to vector<1x512xf32>
    %10 = vector.shape_cast %6 : vector<1x512xf32> to vector<1x512xf32>
    %11 = vector.broadcast %10 : vector<1x512xf32> to vector<8x512xf32>
    %c0_7 = arith.constant 0 : index
    %c0_8 = arith.constant 0 : index
    %12 = vector.load %arg5[%c0_7, %c0_8] : memref<8x512xf32, #tpu.memory_space<vmem>>, vector<8x512xf32>
    tpu.vector_store %arg5[%c0_7, %c0_8], %11 {strides = array<i32>} : memref<8x512xf32, #tpu.memory_space<vmem>>, vector<8x512xf32>,
    %13 = vector.shape_cast %9 : vector<1x512xf32> to vector<1x512xf32>
    %14 = vector.broadcast %13 : vector<1x512xf32> to vector<8x512xf32>
    %c0_9 = arith.constant 0 : index
    %c0_10 = arith.constant 0 : index
    %15 = vector.load %arg6[%c0_9, %c0_10] : memref<8x512xf32, #tpu.memory_space<vmem>>, vector<8x512xf32>
    tpu.vector_store %arg6[%c0_9, %c0_10], %14 {strides = array<i32>} : memref<8x512xf32, #tpu.memory_space<vmem>>, vector<8x512xf32>,
    return
  }
  func.func @transform_0(%arg0: i32, %arg1: i32) -> (i32, i32) {
    %c0_i32 = arith.constant 0 : i32
    %c0_i32_0 = arith.constant 0 : i32
    return %arg0, %c0_i32 : i32, i32
  }
  func.func @transform_1(%arg0: i32, %arg1: i32) -> (i32, i32) {
    %c0_i32 = arith.constant 0 : i32
    %c0_i32_0 = arith.constant 0 : i32
    return %c0_i32, %arg1 : i32, i32
  }
  func.func @transform_2(%arg0: i32, %arg1: i32) -> (i32, i32) {
    %c0_i32 = arith.constant 0 : i32
    return %arg0, %arg1 : i32, i32
  }
  func.func @transform_3(%arg0: i32, %arg1: i32) -> (i32, i32) {
    %c0_i32 = arith.constant 0 : i32
    return %arg0, %arg1 : i32, i32
  }
  func.func @transform_4(%arg0: i32, %arg1: i32) -> (i32, i32) {
    %c0_i32 = arith.constant 0 : i32
    return %arg0, %arg1 : i32, i32
  }
}

module attributes {stable_mosaic.version = 11 : i64} {
  func.func @_scale_shift_relu_kernel(%arg0: i32, %arg1: memref<2x1024xbf16, #tpu.memory_space<vmem>>, %arg2: memref<1x1024xf32, #tpu.memory_space<vmem>>, %arg3: memref<1x1024xf32, #tpu.memory_space<vmem>>, %arg4: memref<2x1024xbf16, #tpu.memory_space<vmem>>) attributes {dimension_semantics = [#tpu.dimension_semantics<parallel>], iteration_bounds = array<i64: 1>, scalar_prefetch = 0 : i64, scratch_operands = 0 : i64, tpu.core_type = #tpu.core_type<tc>, window_params = [{transform_indices = @transform_0, window_bounds = array<i64: 2, 1024>}, {pipeline_mode = #tpu.pipeline_mode<synchronous>, transform_indices = @transform_1, window_bounds = array<i64: 1, 1024>}, {pipeline_mode = #tpu.pipeline_mode<synchronous>, transform_indices = @transform_2, window_bounds = array<i64: 1, 1024>}, {transform_indices = @transform_3, window_bounds = array<i64: 2, 1024>}]} {
    %c0 = arith.constant 0 : index
    %c0_0 = arith.constant 0 : index
    %0 = vector.load %arg1[%c0, %c0_0] : memref<2x1024xbf16, #tpu.memory_space<vmem>>, vector<2x1024xbf16>
    %1 = arith.extf %0 : vector<2x1024xbf16> to vector<2x1024xf32>
    %c0_1 = arith.constant 0 : index
    %c0_2 = arith.constant 0 : index
    %2 = vector.load %arg2[%c0_1, %c0_2] : memref<1x1024xf32, #tpu.memory_space<vmem>>, vector<1x1024xf32>
    %3 = vector.broadcast %2 : vector<1x1024xf32> to vector<2x1024xf32>
    %4 = arith.mulf %1, %3 : vector<2x1024xf32>
    %c0_3 = arith.constant 0 : index
    %c0_4 = arith.constant 0 : index
    %5 = vector.load %arg3[%c0_3, %c0_4] : memref<1x1024xf32, #tpu.memory_space<vmem>>, vector<1x1024xf32>
    %6 = vector.broadcast %5 : vector<1x1024xf32> to vector<2x1024xf32>
    %7 = arith.addf %4, %6 : vector<2x1024xf32>
    %cst = arith.constant 0.000000e+00 : f32
    %8 = vector.broadcast %cst : f32 to vector<2x1024xf32>
    %9 = arith.maximumf %7, %8 : vector<2x1024xf32>
    %10 = arith.truncf %9 : vector<2x1024xf32> to vector<2x1024xbf16>
    %c0_5 = arith.constant 0 : index
    %c0_6 = arith.constant 0 : index
    %11 = vector.load %arg4[%c0_5, %c0_6] : memref<2x1024xbf16, #tpu.memory_space<vmem>>, vector<2x1024xbf16>
    tpu.vector_store %arg4[%c0_5, %c0_6], %10 {strides = array<i32>} : memref<2x1024xbf16, #tpu.memory_space<vmem>>, vector<2x1024xbf16>,
    return
  }
  func.func @transform_0(%arg0: i32) -> (i32, i32) {
    %c0_i32 = arith.constant 0 : i32
    %c0_i32_0 = arith.constant 0 : i32
    return %arg0, %c0_i32 : i32, i32
  }
  func.func @transform_1(%arg0: i32) -> (i32, i32) {
    %c0_i32 = arith.constant 0 : i32
    %c0_i32_0 = arith.constant 0 : i32
    %c0_i32_1 = arith.constant 0 : i32
    return %c0_i32, %c0_i32_0 : i32, i32
  }
  func.func @transform_2(%arg0: i32) -> (i32, i32) {
    %c0_i32 = arith.constant 0 : i32
    %c0_i32_0 = arith.constant 0 : i32
    %c0_i32_1 = arith.constant 0 : i32
    return %c0_i32, %c0_i32_0 : i32, i32
  }
  func.func @transform_3(%arg0: i32) -> (i32, i32) {
    %c0_i32 = arith.constant 0 : i32
    %c0_i32_0 = arith.constant 0 : i32
    return %arg0, %c0_i32 : i32, i32
  }
}

module attributes {stable_mosaic.version = 11 : i64} {
  func.func @_conv_stats_kernel(%arg0: i32, %arg1: i32, %arg2: memref<32x576xbf16, #tpu.memory_space<vmem>>, %arg3: memref<576x128xbf16, #tpu.memory_space<vmem>>, %arg4: memref<32x128xbf16, #tpu.memory_space<vmem>>, %arg5: memref<8x128xf32, #tpu.memory_space<vmem>>, %arg6: memref<8x128xf32, #tpu.memory_space<vmem>>) attributes {dimension_semantics = [#tpu.dimension_semantics<parallel>, #tpu.dimension_semantics<parallel>], iteration_bounds = array<i64: 1, 1>, scalar_prefetch = 0 : i64, scratch_operands = 0 : i64, tpu.core_type = #tpu.core_type<tc>, window_params = [{transform_indices = @transform_0, window_bounds = array<i64: 32, 576>}, {transform_indices = @transform_1, window_bounds = array<i64: 576, 128>}, {transform_indices = @transform_2, window_bounds = array<i64: 32, 128>}, {transform_indices = @transform_3, window_bounds = array<i64: 8, 128>}, {transform_indices = @transform_4, window_bounds = array<i64: 8, 128>}]} {
    %c0 = arith.constant 0 : index
    %c0_0 = arith.constant 0 : index
    %0 = vector.load %arg2[%c0, %c0_0] : memref<32x576xbf16, #tpu.memory_space<vmem>>, vector<32x576xbf16>
    %c0_1 = arith.constant 0 : index
    %c0_2 = arith.constant 0 : index
    %1 = vector.load %arg3[%c0_1, %c0_2] : memref<576x128xbf16, #tpu.memory_space<vmem>>, vector<576x128xbf16>
    %cst = arith.constant dense<0.000000e+00> : vector<32x128xf32>
    %2 = tpu.matmul %0, %1, %cst {dimension_numbers = #tpu.dot_dimension_numbers<[1], [0], [0], [1], [0, 0, 1, 1], [], []>} : vector<32x576xbf16>, vector<576x128xbf16>, vector<32x128xf32> -> vector<32x128xf32>
    %3 = arith.truncf %2 : vector<32x128xf32> to vector<32x128xbf16>
    %c0_3 = arith.constant 0 : index
    %c0_4 = arith.constant 0 : index
    %4 = vector.load %arg4[%c0_3, %c0_4] : memref<32x128xbf16, #tpu.memory_space<vmem>>, vector<32x128xbf16>
    tpu.vector_store %arg4[%c0_3, %c0_4], %3 {strides = array<i32>} : memref<32x128xbf16, #tpu.memory_space<vmem>>, vector<32x128xbf16>,
    %cst_5 = arith.constant dense<0.000000e+00> : vector<128xf32>
    %5 = vector.multi_reduction <add>, %2, %cst_5 [0] : vector<32x128xf32> to vector<128xf32>
    %6 = vector.shape_cast %5 : vector<128xf32> to vector<1x128xf32>
    %7 = arith.mulf %2, %2 : vector<32x128xf32>
    %cst_6 = arith.constant dense<0.000000e+00> : vector<128xf32>
    %8 = vector.multi_reduction <add>, %7, %cst_6 [0] : vector<32x128xf32> to vector<128xf32>
    %9 = vector.shape_cast %8 : vector<128xf32> to vector<1x128xf32>
    %10 = vector.shape_cast %6 : vector<1x128xf32> to vector<1x128xf32>
    %11 = vector.broadcast %10 : vector<1x128xf32> to vector<8x128xf32>
    %c0_7 = arith.constant 0 : index
    %c0_8 = arith.constant 0 : index
    %12 = vector.load %arg5[%c0_7, %c0_8] : memref<8x128xf32, #tpu.memory_space<vmem>>, vector<8x128xf32>
    tpu.vector_store %arg5[%c0_7, %c0_8], %11 {strides = array<i32>} : memref<8x128xf32, #tpu.memory_space<vmem>>, vector<8x128xf32>,
    %13 = vector.shape_cast %9 : vector<1x128xf32> to vector<1x128xf32>
    %14 = vector.broadcast %13 : vector<1x128xf32> to vector<8x128xf32>
    %c0_9 = arith.constant 0 : index
    %c0_10 = arith.constant 0 : index
    %15 = vector.load %arg6[%c0_9, %c0_10] : memref<8x128xf32, #tpu.memory_space<vmem>>, vector<8x128xf32>
    tpu.vector_store %arg6[%c0_9, %c0_10], %14 {strides = array<i32>} : memref<8x128xf32, #tpu.memory_space<vmem>>, vector<8x128xf32>,
    return
  }
  func.func @transform_0(%arg0: i32, %arg1: i32) -> (i32, i32) {
    %c0_i32 = arith.constant 0 : i32
    %c0_i32_0 = arith.constant 0 : i32
    return %arg0, %c0_i32 : i32, i32
  }
  func.func @transform_1(%arg0: i32, %arg1: i32) -> (i32, i32) {
    %c0_i32 = arith.constant 0 : i32
    %c0_i32_0 = arith.constant 0 : i32
    return %c0_i32, %arg1 : i32, i32
  }
  func.func @transform_2(%arg0: i32, %arg1: i32) -> (i32, i32) {
    %c0_i32 = arith.constant 0 : i32
    return %arg0, %arg1 : i32, i32
  }
  func.func @transform_3(%arg0: i32, %arg1: i32) -> (i32, i32) {
    %c0_i32 = arith.constant 0 : i32
    return %arg0, %arg1 : i32, i32
  }
  func.func @transform_4(%arg0: i32, %arg1: i32) -> (i32, i32) {
    %c0_i32 = arith.constant 0 : i32
    return %arg0, %arg1 : i32, i32
  }
}

module attributes {stable_mosaic.version = 11 : i64} {
  func.func @_scale_shift_relu_kernel(%arg0: i32, %arg1: memref<16x256xbf16, #tpu.memory_space<vmem>>, %arg2: memref<1x256xf32, #tpu.memory_space<vmem>>, %arg3: memref<1x256xf32, #tpu.memory_space<vmem>>, %arg4: memref<16x256xbf16, #tpu.memory_space<vmem>>) attributes {dimension_semantics = [#tpu.dimension_semantics<parallel>], iteration_bounds = array<i64: 1>, scalar_prefetch = 0 : i64, scratch_operands = 0 : i64, tpu.core_type = #tpu.core_type<tc>, window_params = [{transform_indices = @transform_0, window_bounds = array<i64: 16, 256>}, {pipeline_mode = #tpu.pipeline_mode<synchronous>, transform_indices = @transform_1, window_bounds = array<i64: 1, 256>}, {pipeline_mode = #tpu.pipeline_mode<synchronous>, transform_indices = @transform_2, window_bounds = array<i64: 1, 256>}, {transform_indices = @transform_3, window_bounds = array<i64: 16, 256>}]} {
    %c0 = arith.constant 0 : index
    %c0_0 = arith.constant 0 : index
    %0 = vector.load %arg1[%c0, %c0_0] : memref<16x256xbf16, #tpu.memory_space<vmem>>, vector<16x256xbf16>
    %1 = arith.extf %0 : vector<16x256xbf16> to vector<16x256xf32>
    %c0_1 = arith.constant 0 : index
    %c0_2 = arith.constant 0 : index
    %2 = vector.load %arg2[%c0_1, %c0_2] : memref<1x256xf32, #tpu.memory_space<vmem>>, vector<1x256xf32>
    %3 = vector.broadcast %2 : vector<1x256xf32> to vector<16x256xf32>
    %4 = arith.mulf %1, %3 : vector<16x256xf32>
    %c0_3 = arith.constant 0 : index
    %c0_4 = arith.constant 0 : index
    %5 = vector.load %arg3[%c0_3, %c0_4] : memref<1x256xf32, #tpu.memory_space<vmem>>, vector<1x256xf32>
    %6 = vector.broadcast %5 : vector<1x256xf32> to vector<16x256xf32>
    %7 = arith.addf %4, %6 : vector<16x256xf32>
    %cst = arith.constant 0.000000e+00 : f32
    %8 = vector.broadcast %cst : f32 to vector<16x256xf32>
    %9 = arith.maximumf %7, %8 : vector<16x256xf32>
    %10 = arith.truncf %9 : vector<16x256xf32> to vector<16x256xbf16>
    %c0_5 = arith.constant 0 : index
    %c0_6 = arith.constant 0 : index
    %11 = vector.load %arg4[%c0_5, %c0_6] : memref<16x256xbf16, #tpu.memory_space<vmem>>, vector<16x256xbf16>
    tpu.vector_store %arg4[%c0_5, %c0_6], %10 {strides = array<i32>} : memref<16x256xbf16, #tpu.memory_space<vmem>>, vector<16x256xbf16>,
    return
  }
  func.func @transform_0(%arg0: i32) -> (i32, i32) {
    %c0_i32 = arith.constant 0 : i32
    %c0_i32_0 = arith.constant 0 : i32
    return %arg0, %c0_i32 : i32, i32
  }
  func.func @transform_1(%arg0: i32) -> (i32, i32) {
    %c0_i32 = arith.constant 0 : i32
    %c0_i32_0 = arith.constant 0 : i32
    %c0_i32_1 = arith.constant 0 : i32
    return %c0_i32, %c0_i32_0 : i32, i32
  }
  func.func @transform_2(%arg0: i32) -> (i32, i32) {
    %c0_i32 = arith.constant 0 : i32
    %c0_i32_0 = arith.constant 0 : i32
    %c0_i32_1 = arith.constant 0 : i32
    return %c0_i32, %c0_i32_0 : i32, i32
  }
  func.func @transform_3(%arg0: i32) -> (i32, i32) {
    %c0_i32 = arith.constant 0 : i32
    %c0_i32_0 = arith.constant 0 : i32
    return %arg0, %c0_i32 : i32, i32
  }
}

module attributes {stable_mosaic.version = 11 : i64} {
  func.func @_conv_stats_kernel(%arg0: i32, %arg1: i32, %arg2: memref<128x288xbf16, #tpu.memory_space<vmem>>, %arg3: memref<288x64xbf16, #tpu.memory_space<vmem>>, %arg4: memref<128x64xbf16, #tpu.memory_space<vmem>>, %arg5: memref<8x64xf32, #tpu.memory_space<vmem>>, %arg6: memref<8x64xf32, #tpu.memory_space<vmem>>) attributes {dimension_semantics = [#tpu.dimension_semantics<parallel>, #tpu.dimension_semantics<parallel>], iteration_bounds = array<i64: 1, 1>, scalar_prefetch = 0 : i64, scratch_operands = 0 : i64, tpu.core_type = #tpu.core_type<tc>, window_params = [{transform_indices = @transform_0, window_bounds = array<i64: 128, 288>}, {transform_indices = @transform_1, window_bounds = array<i64: 288, 64>}, {transform_indices = @transform_2, window_bounds = array<i64: 128, 64>}, {transform_indices = @transform_3, window_bounds = array<i64: 8, 64>}, {transform_indices = @transform_4, window_bounds = array<i64: 8, 64>}]} {
    %c0 = arith.constant 0 : index
    %c0_0 = arith.constant 0 : index
    %0 = vector.load %arg2[%c0, %c0_0] : memref<128x288xbf16, #tpu.memory_space<vmem>>, vector<128x288xbf16>
    %c0_1 = arith.constant 0 : index
    %c0_2 = arith.constant 0 : index
    %1 = vector.load %arg3[%c0_1, %c0_2] : memref<288x64xbf16, #tpu.memory_space<vmem>>, vector<288x64xbf16>
    %cst = arith.constant dense<0.000000e+00> : vector<128x64xf32>
    %2 = tpu.matmul %0, %1, %cst {dimension_numbers = #tpu.dot_dimension_numbers<[1], [0], [0], [1], [0, 0, 1, 1], [], []>} : vector<128x288xbf16>, vector<288x64xbf16>, vector<128x64xf32> -> vector<128x64xf32>
    %3 = arith.truncf %2 : vector<128x64xf32> to vector<128x64xbf16>
    %c0_3 = arith.constant 0 : index
    %c0_4 = arith.constant 0 : index
    %4 = vector.load %arg4[%c0_3, %c0_4] : memref<128x64xbf16, #tpu.memory_space<vmem>>, vector<128x64xbf16>
    tpu.vector_store %arg4[%c0_3, %c0_4], %3 {strides = array<i32>} : memref<128x64xbf16, #tpu.memory_space<vmem>>, vector<128x64xbf16>,
    %cst_5 = arith.constant dense<0.000000e+00> : vector<64xf32>
    %5 = vector.multi_reduction <add>, %2, %cst_5 [0] : vector<128x64xf32> to vector<64xf32>
    %6 = vector.shape_cast %5 : vector<64xf32> to vector<1x64xf32>
    %7 = arith.mulf %2, %2 : vector<128x64xf32>
    %cst_6 = arith.constant dense<0.000000e+00> : vector<64xf32>
    %8 = vector.multi_reduction <add>, %7, %cst_6 [0] : vector<128x64xf32> to vector<64xf32>
    %9 = vector.shape_cast %8 : vector<64xf32> to vector<1x64xf32>
    %10 = vector.shape_cast %6 : vector<1x64xf32> to vector<1x64xf32>
    %11 = vector.broadcast %10 : vector<1x64xf32> to vector<8x64xf32>
    %c0_7 = arith.constant 0 : index
    %c0_8 = arith.constant 0 : index
    %12 = vector.load %arg5[%c0_7, %c0_8] : memref<8x64xf32, #tpu.memory_space<vmem>>, vector<8x64xf32>
    tpu.vector_store %arg5[%c0_7, %c0_8], %11 {strides = array<i32>} : memref<8x64xf32, #tpu.memory_space<vmem>>, vector<8x64xf32>,
    %13 = vector.shape_cast %9 : vector<1x64xf32> to vector<1x64xf32>
    %14 = vector.broadcast %13 : vector<1x64xf32> to vector<8x64xf32>
    %c0_9 = arith.constant 0 : index
    %c0_10 = arith.constant 0 : index
    %15 = vector.load %arg6[%c0_9, %c0_10] : memref<8x64xf32, #tpu.memory_space<vmem>>, vector<8x64xf32>
    tpu.vector_store %arg6[%c0_9, %c0_10], %14 {strides = array<i32>} : memref<8x64xf32, #tpu.memory_space<vmem>>, vector<8x64xf32>,
    return
  }
  func.func @transform_0(%arg0: i32, %arg1: i32) -> (i32, i32) {
    %c0_i32 = arith.constant 0 : i32
    %c0_i32_0 = arith.constant 0 : i32
    return %arg0, %c0_i32 : i32, i32
  }
  func.func @transform_1(%arg0: i32, %arg1: i32) -> (i32, i32) {
    %c0_i32 = arith.constant 0 : i32
    %c0_i32_0 = arith.constant 0 : i32
    return %c0_i32, %arg1 : i32, i32
  }
  func.func @transform_2(%arg0: i32, %arg1: i32) -> (i32, i32) {
    %c0_i32 = arith.constant 0 : i32
    return %arg0, %arg1 : i32, i32
  }
  func.func @transform_3(%arg0: i32, %arg1: i32) -> (i32, i32) {
    %c0_i32 = arith.constant 0 : i32
    return %arg0, %arg1 : i32, i32
  }
  func.func @transform_4(%arg0: i32, %arg1: i32) -> (i32, i32) {
    %c0_i32 = arith.constant 0 : i32
    return %arg0, %arg1 : i32, i32
  }
}

module attributes {stable_mosaic.version = 11 : i64} {
  func.func @_scale_shift_relu_kernel(%arg0: i32, %arg1: memref<32x256xbf16, #tpu.memory_space<vmem>>, %arg2: memref<1x256xf32, #tpu.memory_space<vmem>>, %arg3: memref<1x256xf32, #tpu.memory_space<vmem>>, %arg4: memref<32x256xbf16, #tpu.memory_space<vmem>>) attributes {dimension_semantics = [#tpu.dimension_semantics<parallel>], iteration_bounds = array<i64: 1>, scalar_prefetch = 0 : i64, scratch_operands = 0 : i64, tpu.core_type = #tpu.core_type<tc>, window_params = [{transform_indices = @transform_0, window_bounds = array<i64: 32, 256>}, {pipeline_mode = #tpu.pipeline_mode<synchronous>, transform_indices = @transform_1, window_bounds = array<i64: 1, 256>}, {pipeline_mode = #tpu.pipeline_mode<synchronous>, transform_indices = @transform_2, window_bounds = array<i64: 1, 256>}, {transform_indices = @transform_3, window_bounds = array<i64: 32, 256>}]} {
    %c0 = arith.constant 0 : index
    %c0_0 = arith.constant 0 : index
    %0 = vector.load %arg1[%c0, %c0_0] : memref<32x256xbf16, #tpu.memory_space<vmem>>, vector<32x256xbf16>
    %1 = arith.extf %0 : vector<32x256xbf16> to vector<32x256xf32>
    %c0_1 = arith.constant 0 : index
    %c0_2 = arith.constant 0 : index
    %2 = vector.load %arg2[%c0_1, %c0_2] : memref<1x256xf32, #tpu.memory_space<vmem>>, vector<1x256xf32>
    %3 = vector.broadcast %2 : vector<1x256xf32> to vector<32x256xf32>
    %4 = arith.mulf %1, %3 : vector<32x256xf32>
    %c0_3 = arith.constant 0 : index
    %c0_4 = arith.constant 0 : index
    %5 = vector.load %arg3[%c0_3, %c0_4] : memref<1x256xf32, #tpu.memory_space<vmem>>, vector<1x256xf32>
    %6 = vector.broadcast %5 : vector<1x256xf32> to vector<32x256xf32>
    %7 = arith.addf %4, %6 : vector<32x256xf32>
    %cst = arith.constant 0.000000e+00 : f32
    %8 = vector.broadcast %cst : f32 to vector<32x256xf32>
    %9 = arith.maximumf %7, %8 : vector<32x256xf32>
    %10 = arith.truncf %9 : vector<32x256xf32> to vector<32x256xbf16>
    %c0_5 = arith.constant 0 : index
    %c0_6 = arith.constant 0 : index
    %11 = vector.load %arg4[%c0_5, %c0_6] : memref<32x256xbf16, #tpu.memory_space<vmem>>, vector<32x256xbf16>
    tpu.vector_store %arg4[%c0_5, %c0_6], %10 {strides = array<i32>} : memref<32x256xbf16, #tpu.memory_space<vmem>>, vector<32x256xbf16>,
    return
  }
  func.func @transform_0(%arg0: i32) -> (i32, i32) {
    %c0_i32 = arith.constant 0 : i32
    %c0_i32_0 = arith.constant 0 : i32
    return %arg0, %c0_i32 : i32, i32
  }
  func.func @transform_1(%arg0: i32) -> (i32, i32) {
    %c0_i32 = arith.constant 0 : i32
    %c0_i32_0 = arith.constant 0 : i32
    %c0_i32_1 = arith.constant 0 : i32
    return %c0_i32, %c0_i32_0 : i32, i32
  }
  func.func @transform_2(%arg0: i32) -> (i32, i32) {
    %c0_i32 = arith.constant 0 : i32
    %c0_i32_0 = arith.constant 0 : i32
    %c0_i32_1 = arith.constant 0 : i32
    return %c0_i32, %c0_i32_0 : i32, i32
  }
  func.func @transform_3(%arg0: i32) -> (i32, i32) {
    %c0_i32 = arith.constant 0 : i32
    %c0_i32_0 = arith.constant 0 : i32
    return %arg0, %c0_i32 : i32, i32
  }
}

module attributes {stable_mosaic.version = 11 : i64} {
  func.func @_conv_stats_kernel(%arg0: i32, %arg1: i32, %arg2: memref<512x144xbf16, #tpu.memory_space<vmem>>, %arg3: memref<144x32xbf16, #tpu.memory_space<vmem>>, %arg4: memref<512x32xbf16, #tpu.memory_space<vmem>>, %arg5: memref<8x32xf32, #tpu.memory_space<vmem>>, %arg6: memref<8x32xf32, #tpu.memory_space<vmem>>) attributes {dimension_semantics = [#tpu.dimension_semantics<parallel>, #tpu.dimension_semantics<parallel>], iteration_bounds = array<i64: 1, 1>, scalar_prefetch = 0 : i64, scratch_operands = 0 : i64, tpu.core_type = #tpu.core_type<tc>, window_params = [{transform_indices = @transform_0, window_bounds = array<i64: 512, 144>}, {transform_indices = @transform_1, window_bounds = array<i64: 144, 32>}, {transform_indices = @transform_2, window_bounds = array<i64: 512, 32>}, {transform_indices = @transform_3, window_bounds = array<i64: 8, 32>}, {transform_indices = @transform_4, window_bounds = array<i64: 8, 32>}]} {
    %c0 = arith.constant 0 : index
    %c0_0 = arith.constant 0 : index
    %0 = vector.load %arg2[%c0, %c0_0] : memref<512x144xbf16, #tpu.memory_space<vmem>>, vector<512x144xbf16>
    %c0_1 = arith.constant 0 : index
    %c0_2 = arith.constant 0 : index
    %1 = vector.load %arg3[%c0_1, %c0_2] : memref<144x32xbf16, #tpu.memory_space<vmem>>, vector<144x32xbf16>
    %cst = arith.constant dense<0.000000e+00> : vector<512x32xf32>
    %2 = tpu.matmul %0, %1, %cst {dimension_numbers = #tpu.dot_dimension_numbers<[1], [0], [0], [1], [0, 0, 1, 1], [], []>} : vector<512x144xbf16>, vector<144x32xbf16>, vector<512x32xf32> -> vector<512x32xf32>
    %3 = arith.truncf %2 : vector<512x32xf32> to vector<512x32xbf16>
    %c0_3 = arith.constant 0 : index
    %c0_4 = arith.constant 0 : index
    %4 = vector.load %arg4[%c0_3, %c0_4] : memref<512x32xbf16, #tpu.memory_space<vmem>>, vector<512x32xbf16>
    tpu.vector_store %arg4[%c0_3, %c0_4], %3 {strides = array<i32>} : memref<512x32xbf16, #tpu.memory_space<vmem>>, vector<512x32xbf16>,
    %cst_5 = arith.constant dense<0.000000e+00> : vector<32xf32>
    %5 = vector.multi_reduction <add>, %2, %cst_5 [0] : vector<512x32xf32> to vector<32xf32>
    %6 = vector.shape_cast %5 : vector<32xf32> to vector<1x32xf32>
    %7 = arith.mulf %2, %2 : vector<512x32xf32>
    %cst_6 = arith.constant dense<0.000000e+00> : vector<32xf32>
    %8 = vector.multi_reduction <add>, %7, %cst_6 [0] : vector<512x32xf32> to vector<32xf32>
    %9 = vector.shape_cast %8 : vector<32xf32> to vector<1x32xf32>
    %10 = vector.shape_cast %6 : vector<1x32xf32> to vector<1x32xf32>
    %11 = vector.broadcast %10 : vector<1x32xf32> to vector<8x32xf32>
    %c0_7 = arith.constant 0 : index
    %c0_8 = arith.constant 0 : index
    %12 = vector.load %arg5[%c0_7, %c0_8] : memref<8x32xf32, #tpu.memory_space<vmem>>, vector<8x32xf32>
    tpu.vector_store %arg5[%c0_7, %c0_8], %11 {strides = array<i32>} : memref<8x32xf32, #tpu.memory_space<vmem>>, vector<8x32xf32>,
    %13 = vector.shape_cast %9 : vector<1x32xf32> to vector<1x32xf32>
    %14 = vector.broadcast %13 : vector<1x32xf32> to vector<8x32xf32>
    %c0_9 = arith.constant 0 : index
    %c0_10 = arith.constant 0 : index
    %15 = vector.load %arg6[%c0_9, %c0_10] : memref<8x32xf32, #tpu.memory_space<vmem>>, vector<8x32xf32>
    tpu.vector_store %arg6[%c0_9, %c0_10], %14 {strides = array<i32>} : memref<8x32xf32, #tpu.memory_space<vmem>>, vector<8x32xf32>,
    return
  }
  func.func @transform_0(%arg0: i32, %arg1: i32) -> (i32, i32) {
    %c0_i32 = arith.constant 0 : i32
    %c0_i32_0 = arith.constant 0 : i32
    return %arg0, %c0_i32 : i32, i32
  }
  func.func @transform_1(%arg0: i32, %arg1: i32) -> (i32, i32) {
    %c0_i32 = arith.constant 0 : i32
    %c0_i32_0 = arith.constant 0 : i32
    return %c0_i32, %arg1 : i32, i32
  }
  func.func @transform_2(%arg0: i32, %arg1: i32) -> (i32, i32) {
    %c0_i32 = arith.constant 0 : i32
    return %arg0, %arg1 : i32, i32
  }
  func.func @transform_3(%arg0: i32, %arg1: i32) -> (i32, i32) {
    %c0_i32 = arith.constant 0 : i32
    return %arg0, %arg1 : i32, i32
  }
  func.func @transform_4(%arg0: i32, %arg1: i32) -> (i32, i32) {
    %c0_i32 = arith.constant 0 : i32
    return %arg0, %arg1 : i32, i32
  }
}

module attributes {stable_mosaic.version = 11 : i64} {
  func.func @_scale_shift_relu_kernel(%arg0: i32, %arg1: memref<64x256xbf16, #tpu.memory_space<vmem>>, %arg2: memref<1x256xf32, #tpu.memory_space<vmem>>, %arg3: memref<1x256xf32, #tpu.memory_space<vmem>>, %arg4: memref<64x256xbf16, #tpu.memory_space<vmem>>) attributes {dimension_semantics = [#tpu.dimension_semantics<parallel>], iteration_bounds = array<i64: 1>, scalar_prefetch = 0 : i64, scratch_operands = 0 : i64, tpu.core_type = #tpu.core_type<tc>, window_params = [{transform_indices = @transform_0, window_bounds = array<i64: 64, 256>}, {pipeline_mode = #tpu.pipeline_mode<synchronous>, transform_indices = @transform_1, window_bounds = array<i64: 1, 256>}, {pipeline_mode = #tpu.pipeline_mode<synchronous>, transform_indices = @transform_2, window_bounds = array<i64: 1, 256>}, {transform_indices = @transform_3, window_bounds = array<i64: 64, 256>}]} {
    %c0 = arith.constant 0 : index
    %c0_0 = arith.constant 0 : index
    %0 = vector.load %arg1[%c0, %c0_0] : memref<64x256xbf16, #tpu.memory_space<vmem>>, vector<64x256xbf16>
    %1 = arith.extf %0 : vector<64x256xbf16> to vector<64x256xf32>
    %c0_1 = arith.constant 0 : index
    %c0_2 = arith.constant 0 : index
    %2 = vector.load %arg2[%c0_1, %c0_2] : memref<1x256xf32, #tpu.memory_space<vmem>>, vector<1x256xf32>
    %3 = vector.broadcast %2 : vector<1x256xf32> to vector<64x256xf32>
    %4 = arith.mulf %1, %3 : vector<64x256xf32>
    %c0_3 = arith.constant 0 : index
    %c0_4 = arith.constant 0 : index
    %5 = vector.load %arg3[%c0_3, %c0_4] : memref<1x256xf32, #tpu.memory_space<vmem>>, vector<1x256xf32>
    %6 = vector.broadcast %5 : vector<1x256xf32> to vector<64x256xf32>
    %7 = arith.addf %4, %6 : vector<64x256xf32>
    %cst = arith.constant 0.000000e+00 : f32
    %8 = vector.broadcast %cst : f32 to vector<64x256xf32>
    %9 = arith.maximumf %7, %8 : vector<64x256xf32>
    %10 = arith.truncf %9 : vector<64x256xf32> to vector<64x256xbf16>
    %c0_5 = arith.constant 0 : index
    %c0_6 = arith.constant 0 : index
    %11 = vector.load %arg4[%c0_5, %c0_6] : memref<64x256xbf16, #tpu.memory_space<vmem>>, vector<64x256xbf16>
    tpu.vector_store %arg4[%c0_5, %c0_6], %10 {strides = array<i32>} : memref<64x256xbf16, #tpu.memory_space<vmem>>, vector<64x256xbf16>,
    return
  }
  func.func @transform_0(%arg0: i32) -> (i32, i32) {
    %c0_i32 = arith.constant 0 : i32
    %c0_i32_0 = arith.constant 0 : i32
    return %arg0, %c0_i32 : i32, i32
  }
  func.func @transform_1(%arg0: i32) -> (i32, i32) {
    %c0_i32 = arith.constant 0 : i32
    %c0_i32_0 = arith.constant 0 : i32
    %c0_i32_1 = arith.constant 0 : i32
    return %c0_i32, %c0_i32_0 : i32, i32
  }
  func.func @transform_2(%arg0: i32) -> (i32, i32) {
    %c0_i32 = arith.constant 0 : i32
    %c0_i32_0 = arith.constant 0 : i32
    %c0_i32_1 = arith.constant 0 : i32
    return %c0_i32, %c0_i32_0 : i32, i32
  }
  func.func @transform_3(%arg0: i32) -> (i32, i32) {
    %c0_i32 = arith.constant 0 : i32
    %c0_i32_0 = arith.constant 0 : i32
    return %arg0, %c0_i32 : i32, i32
  }
}

module attributes {stable_mosaic.version = 11 : i64} {
  func.func @_conv_bias_tanh_kernel(%arg0: i32, %arg1: i32, %arg2: memref<1024x72xbf16, #tpu.memory_space<vmem>>, %arg3: memref<72x12xbf16, #tpu.memory_space<vmem>>, %arg4: memref<1x12xf32, #tpu.memory_space<vmem>>, %arg5: memref<1024x12xf32, #tpu.memory_space<vmem>>) attributes {dimension_semantics = [#tpu.dimension_semantics<parallel>, #tpu.dimension_semantics<parallel>], iteration_bounds = array<i64: 2, 1>, scalar_prefetch = 0 : i64, scratch_operands = 0 : i64, tpu.core_type = #tpu.core_type<tc>, window_params = [{transform_indices = @transform_0, window_bounds = array<i64: 1024, 72>}, {transform_indices = @transform_1, window_bounds = array<i64: 72, 12>}, {transform_indices = @transform_2, window_bounds = array<i64: 1, 12>}, {transform_indices = @transform_3, window_bounds = array<i64: 1024, 12>}]} {
    %c0 = arith.constant 0 : index
    %c0_0 = arith.constant 0 : index
    %0 = vector.load %arg2[%c0, %c0_0] : memref<1024x72xbf16, #tpu.memory_space<vmem>>, vector<1024x72xbf16>
    %c0_1 = arith.constant 0 : index
    %c0_2 = arith.constant 0 : index
    %1 = vector.load %arg3[%c0_1, %c0_2] : memref<72x12xbf16, #tpu.memory_space<vmem>>, vector<72x12xbf16>
    %cst = arith.constant dense<0.000000e+00> : vector<1024x12xf32>
    %2 = tpu.matmul %0, %1, %cst {dimension_numbers = #tpu.dot_dimension_numbers<[1], [0], [0], [1], [0, 0, 1, 1], [], []>} : vector<1024x72xbf16>, vector<72x12xbf16>, vector<1024x12xf32> -> vector<1024x12xf32>
    %c0_3 = arith.constant 0 : index
    %c0_4 = arith.constant 0 : index
    %3 = vector.load %arg4[%c0_3, %c0_4] : memref<1x12xf32, #tpu.memory_space<vmem>>, vector<1x12xf32>
    %4 = vector.broadcast %3 : vector<1x12xf32> to vector<1024x12xf32>
    %5 = arith.addf %2, %4 : vector<1024x12xf32>
    %6 = math.tanh %5 : vector<1024x12xf32>
    %c0_5 = arith.constant 0 : index
    %c0_6 = arith.constant 0 : index
    %7 = vector.load %arg5[%c0_5, %c0_6] : memref<1024x12xf32, #tpu.memory_space<vmem>>, vector<1024x12xf32>
    tpu.vector_store %arg5[%c0_5, %c0_6], %6 {strides = array<i32>} : memref<1024x12xf32, #tpu.memory_space<vmem>>, vector<1024x12xf32>,
    return
  }
  func.func @transform_0(%arg0: i32, %arg1: i32) -> (i32, i32) {
    %c0_i32 = arith.constant 0 : i32
    %c0_i32_0 = arith.constant 0 : i32
    return %arg0, %c0_i32 : i32, i32
  }
  func.func @transform_1(%arg0: i32, %arg1: i32) -> (i32, i32) {
    %c0_i32 = arith.constant 0 : i32
    %c0_i32_0 = arith.constant 0 : i32
    return %c0_i32, %arg1 : i32, i32
  }
  func.func @transform_2(%arg0: i32, %arg1: i32) -> (i32, i32) {
    %c0_i32 = arith.constant 0 : i32
    %c0_i32_0 = arith.constant 0 : i32
    return %c0_i32, %arg1 : i32, i32
  }
  func.func @transform_3(%arg0: i32, %arg1: i32) -> (i32, i32) {
    %c0_i32 = arith.constant 0 : i32
    return %arg0, %arg1 : i32, i32
  }
}

</mosaic_0001>

<llo_original>
// kernel: tile.137
$region0: #{tile.137}
  %s0 = inlined_call_operand.vmem [shape: f32[4,3], index: 0, kind: input, shape index: {}]
  %s1 = inlined_call_operand.vmem [shape: f32[1,12], index: 1, kind: output, shape index: {}]
  $region1: #{tile.137} parent=0
    #allocation0 [shape = 'u8[4096]{0}', space=vmem, size = 0x1000, scoped, tag = 'scoped mem for output reshape']
    #allocation1 [shape = 'u8[4096]{0}', space=vmem, size = 0x1000, scoped, tag = 'scoped mem for input reshape']
    %s3 = sshllo.u32 0, 4
    %v4 = vld [vmem:[%s0] sm:%s3]
    %5 = vst [vmem:[#allocation1] sm:%s3] %v4
    %v6 = vld [vmem:[#allocation1] sm:$0x1]
    %vm7 = vcmask 23552
    %8 = vst.msk [vmem:[#allocation0] sm:$0x1] %vm7, %v6
    %s9 = scalar_lea.vmem [#allocation1], 3
    %v10 = vld [vmem:[%s9] sm:$0x1]
    %11 = vrot.lane.b32.xlu0 %v10, 9
    %v12 = vpop.permute.xlu0 %11
    %vm13 = vcmask 97352
    %14 = vst.msk [vmem:[#allocation0] sm:$0x1] %vm13, %v12
    %s15 = scalar_lea.vmem [#allocation1], 2
    %v16 = vld [vmem:[%s15] sm:$0x1]
    %17 = vrot.lane.b32.xlu0 %v16, 6
    %v18 = vpop.permute.xlu0 %17
    %vm19 = vcmask 72752
    %20 = vst.msk [vmem:[#allocation0] sm:$0x1] %vm19, %v18
    %s21 = scalar_lea.vmem [#allocation1], 1
    %v22 = vld [vmem:[%s21] sm:$0x1]
    %23 = vrot.lane.b32.xlu0 %v22, 3
    %v24 = vpop.permute.xlu0 %23
    %vm25 = vcmask 48152
    %26 = vst.msk [vmem:[#allocation0] sm:$0x1] %vm25, %v24
    %s28 = sshllo.u32 0, 1
    %v30 = vld [vmem:[#allocation0] sm:%s28]
    %s31 = sshllo.u32 0, 1
    %32 = vst [vmem:[%s1] sm:%s31] %v30

// kernel: tile.136
$region0: #{tile.136}
  #allocation2 [shape = 's32[1]{0}', space=sflag, size = 0x4, scoped, tag = 'scoped memory for tile.136']
  %s0 = inlined_call_operand.hbm [shape: f32[3], index: 0, kind: input, shape index: {}]
  %s1 = inlined_call_operand.vmem [shape: f32[4,3], index: 1, kind: output, shape index: {}]
  $region1: #{tile.136} parent=0
    #allocation0 [shape = 'u8[512]{0}', space=vmem, size = 0x400, scoped, tag = 'operand span for operand 0']
    #allocation1 [shape = 's32[1]{0}', space=sflag, size = 0x4, scoped, tag = 'scoped memory for tile.136']
    %2 = vsyncpa [#allocation1], 0
    // Predicated region
    $region2: #{tile.136} parent=1 // pred_check
      _
    $region3: #{tile.136} parent=1 // pred_check_branch
      %4 = sbr.rel (0) target = $region5
    $region4: #{tile.136} parent=1 // pred_region
      %s6 = ssub.s32 16, 16
      %7 = vsyncadd [#allocation1], %s6
      %s9 = sshll.u32 [#allocation0], 4
      %s10 = int_to_ptr.vmem [resolvable:$true] %s9
      %12 = dma.hbm_to_vmem [thread:$0]  %s0, 16, %s10, [#allocation1]
    $region5: #{tile.136} parent=1 // pred_fallthru
      _
    // Predicated region
    $region6: #{tile.136} parent=1 // pred_check
      _
    $region7: #{tile.136} parent=1 // pred_check_branch
      %14 = sbr.rel (0) target = $region9
    $region8: #{tile.136} parent=1 // pred_region
      %15 = dma.done [#allocation1], 16
    $region9: #{tile.136} parent=1 // pred_fallthru
      _
    %v16 = vld [vmem:[#allocation0] ss:$0 sm:$0xff]
    %17 = vst [vmem:[%s1] sm:$0xf] %v16
    %18 = vsyncpa [#allocation1], 1

// kernel: tile.76
$region0: #{tile.76}
  #allocation0 [shape = 's32[1]{0}', space=sflag, size = 0x4, scoped, tag = 'scoped memory for tile.76']
  %s0 = inlined_call_operand.vmem [shape: f32[64], index: 0, kind: input, shape index: {}]
  %s1 = inlined_call_operand.vmem [shape: f32[16,64], index: 1, kind: output, shape index: {}]
  // Predicated region
  $region2: #{tile.76} parent=0 // pred_check
    _
  $region3: #{tile.76} parent=0 // pred_check_branch
    %3 = sbr.rel (0) target = $region5
  $region4: #{tile.76} parent=0 // pred_region
    _
  $region5: #{tile.76} parent=0 // pred_fallthru
    _
  %v4 = vld [vmem:[%s0] ss:$0 sm:$0xff]
  %5 = vst [vmem:[%s1] sm:$0xff] %v4
  %s6 = scalar_lea.vmem %s1, 8
  %7 = vst [vmem:[%s6] sm:$0xff] %v4

// kernel: tile.78
$region0: #{tile.78}
  %s0 = inlined_call_operand.vmem [shape: f32[16,64], index: 0, kind: input, shape index: {}]
  %s1 = inlined_call_operand.vmem [shape: f32[1,1024], index: 1, kind: output, shape index: {}]
  $region1: #{tile.78} parent=0
    #allocation0 [shape = 'u8[32768]{0}', space=vmem, size = 0x8000, scoped, tag = 'scoped mem for output reshape']
    %v2 = vld [vmem:[%s0] ss:$2 sm:$0xff]
    %vm3 = vcmask 523264
    %4 = vst.msk [vmem:[#allocation0] ss:$8 sm:$0xf] %vm3, %v2
    %5 = vst.msk [vmem:[#allocation0] ss:$8 sm:$0xf0] %vm3, %v2
    %s6 = scalar_lea.vmem %s0, 1
    %v7 = vld [vmem:[%s6] ss:$2 sm:$0xff]
    %8 = vrot.lane.b32.xlu0 %v7, 64
    %v9 = vpop.permute.xlu0 %8
    %vm10 = vcmask 1048064
    %11 = vst.msk [vmem:[#allocation0] ss:$8 sm:$0xf] %vm10, %v9
    %12 = vst.msk [vmem:[#allocation0] ss:$8 sm:$0xf0] %vm10, %v9
    %s14 = sshllo.u32 0, 1
    %v16 = vld [vmem:[#allocation0] sm:%s14]
    %s17 = sshllo.u32 0, 1
    %18 = vst [vmem:[%s1] sm:%s17] %v16
    %s19 = scalar_lea.vmem [#allocation0], 8
    %v20 = vld [vmem:[%s19] sm:%s14]
    %s21 = sshllo.u32 0, 1
    %s22 = scalar_lea.vmem %s1, 1
    %23 = vst [vmem:[%s22] sm:%s21] %v20
    %s24 = scalar_lea.vmem [#allocation0], 16
    %v25 = vld [vmem:[%s24] sm:%s14]
    %s26 = sshllo.u32 0, 1
    %s27 = smul.addr 1, 2
    %s28 = scalar_lea.vmem %s1, %s27
    %29 = vst [vmem:[%s28] sm:%s26] %v25
    %s30 = scalar_lea.vmem [#allocation0], 24
    %v31 = vld [vmem:[%s30] sm:%s14]
    %s32 = sshllo.u32 0, 1
    %s33 = smul.addr 1, 3
    %s34 = scalar_lea.vmem %s1, %s33
    %35 = vst [vmem:[%s34] sm:%s32] %v31
    %s36 = scalar_lea.vmem [#allocation0], 32
    %v37 = vld [vmem:[%s36] sm:%s14]
    %s38 = sshllo.u32 0, 1
    %s39 = smul.addr 1, 4
    %s40 = scalar_lea.vmem %s1, %s39
    %41 = vst [vmem:[%s40] sm:%s38] %v37
    %s42 = scalar_lea.vmem [#allocation0], 40
    %v43 = vld [vmem:[%s42] sm:%s14]
    %s44 = sshllo.u32 0, 1
    %s45 = smul.addr 1, 5
    %s46 = scalar_lea.vmem %s1, %s45
    %47 = vst [vmem:[%s46] sm:%s44] %v43
    %s48 = scalar_lea.vmem [#allocation0], 48
    %v49 = vld [vmem:[%s48] sm:%s14]
    %s50 = sshllo.u32 0, 1
    %s51 = smul.addr 1, 6
    %s52 = scalar_lea.vmem %s1, %s51
    %53 = vst [vmem:[%s52] sm:%s50] %v49
    %s54 = scalar_lea.vmem [#allocation0], 56
    %v55 = vld [vmem:[%s54] sm:%s14]
    %s56 = sshllo.u32 0, 1
    %s57 = smul.addr 1, 7
    %s58 = scalar_lea.vmem %s1, %s57
    %59 = vst [vmem:[%s58] sm:%s56] %v55

// kernel: generator_forward.9
$region0: #{generator_forward.9}
  #allocation0 [shape = 'u32[]', space=smem, size = 0x4, offset = 0x4, fixed_abs, tag = 'smem constant byte address 0x4 - core index']
  #allocation1 [shape = 'u32[144,128]{1,0:T(1,128)}', space=vmem, size = 0x12000, scoped, tag = 'internal scratch']
  %s0 = inlined_call_operand.vmem [shape: bf16[2,8], index: 0, kind: input, shape index: {}]
  %s1 = inlined_call_operand.vmem [shape: bf16[8,1024], index: 1, kind: input, shape index: {}]
  %s2 = inlined_call_operand.vmem [shape: bf16[2,1024], index: 2, kind: output, shape index: {0}]
  %s3 = inlined_call_operand.vmem [shape: f32[8,1024], index: 3, kind: output, shape index: {1}]
  %s4 = inlined_call_operand.vmem [shape: f32[8,1024], index: 4, kind: output, shape index: {2}]
  %5 = xla_tuple %s2, %s3, %s4
  %s6 = sld [smem:[#allocation0]]
  $region57: #{generator_forward.9} parent=0
    _
  %s8 = ssub.s32 1, %s6
  %s9 = scalar_select 0, %s8, %s6
  loop: start=0, step=1, limit=4
  $region2: #{generator_forward.9} parent=0 // loop_pre_header
    _
  $region3: #{generator_forward.9} parent=0 // loop_header
    %s11 = sphi 0, %s15
    %p12 = scmp.ge.s32.totalorder %s11, 4
    %s18 = sphi 0, %s30
    %s19 = sphi 0, %s26
    %s20 = sphi 0, %s18
    %s21 = sphi 0, %s19
    %s22 = sphi 0, %s20
    %s23 = sphi 0, %s21
    %s33 = sphi 0, %s35
    %s36 = sphi 0, %s33
    %s37 = sphi 0, %s36
    %s53 = sphi 0, %s37
    %s59 = sphi 0, %s61
    %s62 = sphi 0, %s59
    %s63 = sphi 0, %s62
    %s79 = sphi 0, %s63
    %s87 = sphi 0, %s89
    %s90 = sphi 0, %s87
    %s91 = sphi 0, %s90
    %s107 = sphi 0, %s91
    %s115 = sphi 0, %s117
    %s118 = sphi 0, %s115
    %s119 = sphi 0, %s118
    %s135 = sphi 0, %s119
    %s143 = sphi 0, %s145
    %s146 = sphi 0, %s143
    %s147 = sphi 0, %s146
    %s163 = sphi 0, %s147
  $region4: #{generator_forward.9} parent=0 // loop_header_branch
    %14 = sbr.rel (%p12) target = $region8
  $region5: #{generator_forward.9} parent=0 // loop_body
    %s16 = ssub.s32 %s11, 1
    %s17 = ssub.s32 %s11, 2
    %s24 = sadd.s32 1, %s19
    %p25 = scmp.ge.s32.totalorder %s24, 2
    %s26 = scalar_select %p25, 0, %s24
    %s27 = sadd.s32 1, %s18
    %s28 = scalar_select %p25, %s27, %s18
    %p29 = scmp.ge.s32.totalorder %s28, 1
    %s30 = scalar_select %p29, 0, %s28
    %s31 = ssub.s32 %s18, %s30
    %p32 = scmp.eq.s32.totalorder %s31, 0
    %s34 = sadd.s32 %s33, 1
    %s35 = scalar_select %p32, %s33, %s34
    %p38 = pneg %p32
    %p39 = scmp.eq.s32.totalorder %s11, 1
    %p40 = por %p38, %p39
    %p41 = scmp.ne.s32.totalorder %s33, %s36
    %p42 = scmp.eq.s32.totalorder %s11, 0
    %p43 = por %p41, %p42
    %p44 = scmp.ne.s32.totalorder %s33, %s36
    %p45 = scmp.eq.s32.totalorder %s16, 1
    %p46 = por %p44, %p45
    %p47 = scmp.ne.s32.totalorder %s36, %s37
    %p48 = scmp.eq.s32.totalorder %s16, 0
    %p49 = por %p47, %p48
    %p50 = scmp.ne.s32.totalorder %s36, %s37
    %p51 = scmp.eq.s32.totalorder %s17, 1
    %p52 = por %p50, %p51
    %p54 = scmp.ne.s32.totalorder %s37, %s53
    %p55 = scmp.eq.s32.totalorder %s17, 0
    %p56 = por %p54, %p55
    %s57 = ssub.s32 %s19, %s26
    %p58 = scmp.eq.s32.totalorder %s57, 0
    %s60 = sadd.s32 %s59, 1
    %s61 = scalar_select %p58, %s59, %s60
    %p64 = pneg %p58
    %p65 = scmp.eq.s32.totalorder %s11, 1
    %p66 = por %p64, %p65
    %p67 = scmp.ne.s32.totalorder %s59, %s62
    %p68 = scmp.eq.s32.totalorder %s11, 0
    %p69 = por %p67, %p68
    %p70 = scmp.ne.s32.totalorder %s59, %s62
    %p71 = scmp.eq.s32.totalorder %s16, 1
    %p72 = por %p70, %p71
    %p73 = scmp.ne.s32.totalorder %s62, %s63
    %p74 = scmp.eq.s32.totalorder %s16, 0
    %p75 = por %p73, %p74
    %p76 = scmp.ne.s32.totalorder %s62, %s63
    %p77 = scmp.eq.s32.totalorder %s17, 1
    %p78 = por %p76, %p77
    %p80 = scmp.ne.s32.totalorder %s63, %s79
    %p81 = scmp.eq.s32.totalorder %s17, 0
    %p82 = por %p80, %p81
    %s83 = ssub.s32 %s18, %s30
    %s84 = ssub.s32 %s19, %s26
    %s85 = sor.u32 %s83, %s84
    %p86 = scmp.eq.s32.totalorder %s85, 0
    %s88 = sadd.s32 %s87, 1
    %s89 = scalar_select %p86, %s87, %s88
    %p92 = pneg %p86
    %p93 = scmp.eq.s32.totalorder %s11, 1
    %p94 = por %p92, %p93
    %p95 = scmp.ne.s32.totalorder %s87, %s90
    %p96 = scmp.eq.s32.totalorder %s11, 0
    %p97 = por %p95, %p96
    %p98 = scmp.ne.s32.totalorder %s87, %s90
    %p99 = scmp.eq.s32.totalorder %s16, 1
    %p100 = por %p98, %p99
    %p101 = scmp.ne.s32.totalorder %s90, %s91
    %p102 = scmp.eq.s32.totalorder %s16, 0
    %p103 = por %p101, %p102
    %p104 = scmp.ne.s32.totalorder %s90, %s91
    %p105 = scmp.eq.s32.totalorder %s17, 1
    %p106 = por %p104, %p105
    %p108 = scmp.ne.s32.totalorder %s91, %s107
    %p109 = scmp.eq.s32.totalorder %s17, 0
    %p110 = por %p108, %p109
    %s111 = ssub.s32 %s18, %s30
    %s112 = ssub.s32 %s19, %s26
    %s113 = sor.u32 %s111, %s112
    %p114 = scmp.eq.s32.totalorder %s113, 0
    %s116 = sadd.s32 %s115, 1
    %s117 = scalar_select %p114, %s115, %s116
    %p120 = pneg %p114
    %p121 = scmp.eq.s32.totalorder %s11, 1
    %p122 = por %p120, %p121
    %p123 = scmp.ne.s32.totalorder %s115, %s118
    %p124 = scmp.eq.s32.totalorder %s11, 0
    %p125 = por %p123, %p124
    %p126 = scmp.ne.s32.totalorder %s115, %s118
    %p127 = scmp.eq.s32.totalorder %s16, 1
    %p128 = por %p126, %p127
    %p129 = scmp.ne.s32.totalorder %s118, %s119
    %p130 = scmp.eq.s32.totalorder %s16, 0
    %p131 = por %p129, %p130
    %p132 = scmp.ne.s32.totalorder %s118, %s119
    %p133 = scmp.eq.s32.totalorder %s17, 1
    %p134 = por %p132, %p133
    %p136 = scmp.ne.s32.totalorder %s119, %s135
    %p137 = scmp.eq.s32.totalorder %s17, 0
    %p138 = por %p136, %p137
    %s139 = ssub.s32 %s18, %s30
    %s140 = ssub.s32 %s19, %s26
    %s141 = sor.u32 %s139, %s140
    %p142 = scmp.eq.s32.totalorder %s141, 0
    %s144 = sadd.s32 %s143, 1
    %s145 = scalar_select %p142, %s143, %s144
    %p148 = pneg %p142
    %p149 = scmp.eq.s32.totalorder %s11, 1
    %p150 = por %p148, %p149
    %p151 = scmp.ne.s32.totalorder %s143, %s146
    %p152 = scmp.eq.s32.totalorder %s11, 0
    %p153 = por %p151, %p152
    %p154 = scmp.ne.s32.totalorder %s143, %s146
    %p155 = scmp.eq.s32.totalorder %s16, 1
    %p156 = por %p154, %p155
    %p157 = scmp.ne.s32.totalorder %s146, %s147
    %p158 = scmp.eq.s32.totalorder %s16, 0
    %p159 = por %p157, %p158
    %p160 = scmp.ne.s32.totalorder %s146, %s147
    %p161 = scmp.eq.s32.totalorder %s17, 1
    %p162 = por %p160, %p161
    %p164 = scmp.ne.s32.totalorder %s147, %s163
    %p165 = scmp.eq.s32.totalorder %s17, 0
    %p166 = por %p164, %p165
    %p167 = scmp.le.s32.totalorder 1, %s11
    %p168 = scmp.lt.s32.totalorder %s11, 3
    %p169 = pnand %p167, %p168
    %p170 = pneg %p169
    // Predicated region
    $region9: #{generator_forward.9} parent=5 // pred_check
      _
    $region10: #{generator_forward.9} parent=5 // pred_check_branch
      %172 = sbr.rel (%p169) target = $region12
    $region11: #{generator_forward.9} parent=5 // pred_region
      %s173 = ssub.s32 %s11, 1
      // Predicated region
      $region13: #{generator_forward.9} parent=11 // pred_check
        %p174 = pneg %p49
      $region14: #{generator_forward.9} parent=11 // pred_check_branch
        %176 = sbr.rel (%p174) target = $region16
      $region15: #{generator_forward.9} parent=11 // pred_region
        %p177 = scmp.lt.s32.totalorder %s20, 0
        %s178 = scalar_select %p177, %s20, 0
        %s179 = scalar_lea.vmem %s0, %s178
      $region16: #{generator_forward.9} parent=11 // pred_fallthru
        _
    $region12: #{generator_forward.9} parent=5 // pred_fallthru
      _
    %p180 = scmp.lt.s32.totalorder %s11, 2
    // Predicated region
    $region17: #{generator_forward.9} parent=5 // pred_check
      %p181 = pneg %p180
    $region18: #{generator_forward.9} parent=5 // pred_check_branch
      %183 = sbr.rel (%p181) target = $region20
    $region19: #{generator_forward.9} parent=5 // pred_region
      // Predicated region
      $region21: #{generator_forward.9} parent=19 // pred_check
        %p184 = pneg %p69
      $region22: #{generator_forward.9} parent=19 // pred_check_branch
        %186 = sbr.rel (%p184) target = $region24
      $region23: #{generator_forward.9} parent=19 // pred_region
        %s187 = smul.u32 4, %s19
        %p188 = scmp.lt.s32.totalorder %s187, 7
        %s189 = scalar_select %p188, %s187, 7
        %s190 = smul.addr %s189, 4
        %s191 = scalar_lea.vmem %s1, %s190
        %s192 = smul.u32 4, %s19
      $region24: #{generator_forward.9} parent=19 // pred_fallthru
        _
    $region20: #{generator_forward.9} parent=5 // pred_fallthru
      _
    %p193 = scmp.le.s32.totalorder 1, %s11
    %p194 = scmp.lt.s32.totalorder %s11, 3
    %p195 = pnand %p193, %p194
    %p196 = pneg %p195
    // Predicated region
    $region25: #{generator_forward.9} parent=5 // pred_check
      _
    $region26: #{generator_forward.9} parent=5 // pred_check_branch
      %198 = sbr.rel (%p195) target = $region28
    $region27: #{generator_forward.9} parent=5 // pred_region
      %s199 = ssub.s32 %s11, 1
      %p200 = scmp.lt.s32.totalorder %s20, 0
      %s201 = scalar_select %p200, %s20, 0
      %s202 = scalar_lea.vmem %s0, %s201
      %p203 = pneg %p49
      %p204 = pneg %p46
      %s205 = smul.u32 4, %s21
      %p206 = scmp.lt.s32.totalorder %s205, 7
      %s207 = scalar_select %p206, %s205, 7
      %s208 = smul.addr %s207, 4
      %s209 = scalar_lea.vmem %s1, %s208
      %p210 = pneg %p75
      %p211 = pneg %p72
      %p212 = pneg %p103
      %p213 = pneg %p100
      %s214 = smul.u32 4, %s21
      %p215 = scmp.lt.s32.totalorder %s20, 0
      %s216 = scalar_select %p215, %s20, 0
      %p217 = scmp.lt.s32.totalorder %s214, 7
      %s218 = scalar_select %p217, %s214, 7
      %s219 = smul.addr %s216, 8
      %s220 = sadd.s32 %s218, %s219
      %s221 = scalar_lea.vmem %s2, %s220
      %p222 = pneg %p131
      %p223 = pneg %p128
      %s224 = smul.u32 4, %s21
      %p225 = scmp.lt.s32.totalorder %s20, 0
      %s226 = scalar_select %p225, %s20, 0
      %p227 = scmp.lt.s32.totalorder %s224, 7
      %s228 = scalar_select %p227, %s224, 7
      %s229 = smul.addr %s226, 8
      %s230 = sadd.s32 %s228, %s229
      %s231 = smul.addr %s230, 8
      %s232 = scalar_lea.vmem %s3, %s231
      %p233 = pneg %p159
      %p234 = pneg %p156
      %s235 = smul.u32 4, %s21
      %p236 = scmp.lt.s32.totalorder %s20, 0
      %s237 = scalar_select %p236, %s20, 0
      %p238 = scmp.lt.s32.totalorder %s235, 7
      %s239 = scalar_select %p238, %s235, 7
      %s240 = smul.addr %s237, 8
      %s241 = sadd.s32 %s239, %s240
      %s242 = smul.addr %s241, 8
      %s243 = scalar_lea.vmem %s4, %s242
      %p244 = scmp.lt.s32.totalorder %s20, 0
      %s245 = scalar_select %p244, %s20, 0
      %s246 = scalar_lea.vmem %s0, %s245
      %s247 = smul.u32 4, %s21
      %p248 = scmp.lt.s32.totalorder %s247, 7
      %s249 = scalar_select %p248, %s247, 7
      %s250 = smul.addr %s249, 4
      %s251 = scalar_lea.vmem %s1, %s250
      %s252 = smul.u32 4, %s21
      %s253 = smul.u32 4, %s21
      %p254 = scmp.lt.s32.totalorder %s20, 0
      %s255 = scalar_select %p254, %s20, 0
      %p256 = scmp.lt.s32.totalorder %s253, 7
      %s257 = scalar_select %p256, %s253, 7
      %s258 = smul.addr %s255, 8
      %s259 = sadd.s32 %s257, %s258
      %s260 = scalar_lea.vmem %s2, %s259
      %s261 = smul.u32 4, %s21
      %s262 = smul.u32 4, %s21
      %p263 = scmp.lt.s32.totalorder %s20, 0
      %s264 = scalar_select %p263, %s20, 0
      %p265 = scmp.lt.s32.totalorder %s262, 7
      %s266 = scalar_select %p265, %s262, 7
      %s267 = smul.addr %s264, 8
      %s268 = sadd.s32 %s266, %s267
      %s269 = smul.addr %s268, 8
      %s270 = scalar_lea.vmem %s3, %s269
      %s271 = smul.u32 4, %s21
      %s272 = smul.u32 4, %s21
      %p273 = scmp.lt.s32.totalorder %s20, 0
      %s274 = scalar_select %p273, %s20, 0
      %p275 = scmp.lt.s32.totalorder %s272, 7
      %s276 = scalar_select %p275, %s272, 7
      %s277 = smul.addr %s274, 8
      %s278 = sadd.s32 %s276, %s277
      %s279 = smul.addr %s278, 8
      %s280 = scalar_lea.vmem %s4, %s279
      %s281 = smul.u32 4, %s21
      %v283 = vld [vmem:[%s246] sm:$0x1]
      %v284 = vld [vmem:[%s251] sm:$0xff]
      %v285 = vld [vmem:[%s251 + $0x8] sm:$0xff]
      %v288 = vunpack.c.l.b16 %v284
      %v289 = vunpack.c.h.b16 %v284
      %v290 = vunpack.c.l.b16 %v285
      %v291 = vunpack.c.h.b16 %v285
      %v292 = vpack.c.b16 %v288, %v288
      %v293 = vpack.c.b16 %v289, %v289
      %v294 = vpack.c.b16 %v290, %v290
      %v295 = vpack.c.b16 %v291, %v291
      %vm296 = vcmask 64512
      %v298 = vsel %vm296, %v283, 0
      %vm300 = vcmask 1043456
      %v302 = vsel %vm300, %v292, 0
      %v305 = vsel %vm300, %v293, 0
      %v308 = vsel %vm300, %v294, 0
      %v311 = vsel %vm300, %v295, 0
      %313 = vmatprep.subr.bf16.mxu0 %v305
      %314 = vmatpush1.bf16.msra.mxu0 %v302
      %315 = vmatprep.subr.bf16.mxu0 0
      %316 = vmatpush1.bf16.msra.mxu0 0
      %317 = vmatprep.subr.bf16.mxu0 0
      %318 = vmatpush1.bf16.msra.mxu0 0
      %319 = vmatprep.subr.bf16.mxu0 0
      %320 = vmatpush1.bf16.msra.mxu0 0
      %321 = vmatprep.subr.bf16.mxu0 0
      %322 = vmatpush1.bf16.msra.mxu0 0
      %323 = vmatprep.subr.bf16.mxu0 0
      %324 = vmatpush1.bf16.msra.mxu0 0
      %325 = vmatprep.subr.bf16.mxu0 0
      %326 = vmatpush1.bf16.msra.mxu0 0
      %327 = vmatprep.subr.bf16.mxu0 0
      %328 = vmatpush1.bf16.msra.mxu0 0
      %329 = vmatprep.subr.bf16.mxu0 0
      %330 = vmatpush1.bf16.msra.mxu0 0
      %331 = vmatprep.subr.bf16.mxu0 0
      %332 = vmatpush1.bf16.msra.mxu0 0
      %333 = vmatprep.subr.bf16.mxu0 0
      %334 = vmatpush1.bf16.msra.mxu0 0
      %335 = vmatprep.subr.bf16.mxu0 0
      %336 = vmatpush1.bf16.msra.mxu0 0
      %337 = vmatprep.subr.bf16.mxu0 0
      %338 = vmatpush1.bf16.msra.mxu0 0
      %339 = vmatprep.subr.bf16.mxu0 0
      %340 = vmatpush1.bf16.msra.mxu0 0
      %341 = vmatprep.subr.bf16.mxu0 0
      %342 = vmatpush1.bf16.msra.mxu0 0
      %343 = vmatprep.subr.bf16.mxu0 0
      %344 = vmatpush1.bf16.msra.mxu0 0
      %345 = vmatprep.mubr.bf16.mxu0 0
      %346 = vmatmul.mubr.bf16.gmra.mrb[0].mxu0 %v298
      %v347 = vpop.f32.mrb[0].mxu0
      %v348 = vadd.f32 0.0, %v347
      %v349 = vpop.f32.mrb[0].mxu0
      %v350 = vadd.f32 0.0, %v349
      %v351 = vpop.f32.mrb[0].mxu0
      %v352 = vpop.f32.mrb[0].mxu0
      %353 = vdwg.mxu0
      %354 = vmatprep.subr.bf16.mxu0 %v311
      %355 = vmatpush1.bf16.msra.mxu0 %v308
      %356 = vmatprep.subr.bf16.mxu0 0
      %357 = vmatpush1.bf16.msra.mxu0 0
      %358 = vmatprep.subr.bf16.mxu0 0
      %359 = vmatpush1.bf16.msra.mxu0 0
      %360 = vmatprep.subr.bf16.mxu0 0
      %361 = vmatpush1.bf16.msra.mxu0 0
      %362 = vmatprep.subr.bf16.mxu0 0
      %363 = vmatpush1.bf16.msra.mxu0 0
      %364 = vmatprep.subr.bf16.mxu0 0
      %365 = vmatpush1.bf16.msra.mxu0 0
      %366 = vmatprep.subr.bf16.mxu0 0
      %367 = vmatpush1.bf16.msra.mxu0 0
      %368 = vmatprep.subr.bf16.mxu0 0
      %369 = vmatpush1.bf16.msra.mxu0 0
      %370 = vmatprep.subr.bf16.mxu0 0
      %371 = vmatpush1.bf16.msra.mxu0 0
      %372 = vmatprep.subr.bf16.mxu0 0
      %373 = vmatpush1.bf16.msra.mxu0 0
      %374 = vmatprep.subr.bf16.mxu0 0
      %375 = vmatpush1.bf16.msra.mxu0 0
      %376 = vmatprep.subr.bf16.mxu0 0
      %377 = vmatpush1.bf16.msra.mxu0 0
      %378 = vmatprep.subr.bf16.mxu0 0
      %379 = vmatpush1.bf16.msra.mxu0 0
      %380 = vmatprep.subr.bf16.mxu0 0
      %381 = vmatpush1.bf16.msra.mxu0 0
      %382 = vmatprep.subr.bf16.mxu0 0
      %383 = vmatpush1.bf16.msra.mxu0 0
      %384 = vmatprep.subr.bf16.mxu0 0
      %385 = vmatpush1.bf16.msra.mxu0 0
      %386 = vmatprep.mubr.bf16.mxu0 0
      %387 = vmatmul.mubr.bf16.gmra.mrb[0].mxu0 %v298
      %v388 = vpop.f32.mrb[0].mxu0
      %v389 = vadd.f32 0.0, %v388
      %v390 = vpop.f32.mrb[0].mxu0
      %v391 = vadd.f32 0.0, %v390
      %v392 = vpop.f32.mrb[0].mxu0
      %v393 = vpop.f32.mrb[0].mxu0
      %394 = vdwg.mxu0
      %v395 = vpack.c.bf16 %v348, %v348
      %v396 = vpack.c.bf16 %v350, %v350
      %v397 = vpack.c.bf16 %v389, %v389
      %v398 = vpack.c.bf16 %v391, %v391
      %v403 = vcombine.low %v395, %v396
      %v404 = vcombine.low %v397, %v398
      %v406 = vunpack.c.l.s4 1966171168
      %v407 = vunpack.c.0.s8 %v406
      %v408 = vlaneseq
      %v409 = vshrl.u32 %v408, 7
      %v410 = vsub.s32 %v407, %v409
      %v411 = vrot.slane %v403, %v410
      %v413 = vunpack.c.l.s4 1966171168
      %v414 = vunpack.c.0.s8 %v413
      %v415 = vlaneseq
      %v416 = vshrl.u32 %v415, 7
      %v417 = vsub.s32 %v414, %v416
      %v418 = vrot.slane %v404, %v417
      %v419 = vcombine.low %v411, %v418
      %v421 = vunpack.c.l.s4 1966171168
      %v422 = vunpack.c.0.s8 %v421
      %v423 = vlaneseq
      %v424 = vshrl.u32 %v423, 7
      %v425 = vsub.s32 %v422, %v424
      %v426 = vrot.slane %v419, %v425
      %428 = vst [vmem:[%s260] sm:$0xf] %v426
      %vm429 = vcmask 1041408
      %v430 = vsel %vm429, %v348, 0.0
      %v431 = vrot.slane %v430, 4
      %v432 = vadd.f32 %v430, %v431
      %v433 = vrot.slane %v432, 2
      %v434 = vadd.f32 %v432, %v433
      %v435 = vrot.slane %v434, 1
      %v436 = vadd.f32 %v434, %v435
      %v437 = vsel %vm429, %v350, 0.0
      %v438 = vrot.slane %v437, 4
      %v439 = vadd.f32 %v437, %v438
      %v440 = vrot.slane %v439, 2
      %v441 = vadd.f32 %v439, %v440
      %v442 = vrot.slane %v441, 1
      %v443 = vadd.f32 %v441, %v442
      %v444 = vsel %vm429, %v389, 0.0
      %v445 = vrot.slane %v444, 4
      %v446 = vadd.f32 %v444, %v445
      %v447 = vrot.slane %v446, 2
      %v448 = vadd.f32 %v446, %v447
      %v449 = vrot.slane %v448, 1
      %v450 = vadd.f32 %v448, %v449
      %v451 = vsel %vm429, %v391, 0.0
      %v452 = vrot.slane %v451, 4
      %v453 = vadd.f32 %v451, %v452
      %v454 = vrot.slane %v453, 2
      %v455 = vadd.f32 %v453, %v454
      %v456 = vrot.slane %v455, 1
      %v457 = vadd.f32 %v455, %v456
      %v458 = vmul.f32 %v348, %v348
      %v459 = vmul.f32 %v350, %v350
      %v460 = vmul.f32 %v389, %v389
      %v461 = vmul.f32 %v391, %v391
      %v462 = vsel %vm429, %v458, 0.0
      %v463 = vrot.slane %v462, 4
      %v464 = vadd.f32 %v462, %v463
      %v465 = vrot.slane %v464, 2
      %v466 = vadd.f32 %v464, %v465
      %v467 = vrot.slane %v466, 1
      %v468 = vadd.f32 %v466, %v467
      %v469 = vsel %vm429, %v459, 0.0
      %v470 = vrot.slane %v469, 4
      %v471 = vadd.f32 %v469, %v470
      %v472 = vrot.slane %v471, 2
      %v473 = vadd.f32 %v471, %v472
      %v474 = vrot.slane %v473, 1
      %v475 = vadd.f32 %v473, %v474
      %v476 = vsel %vm429, %v460, 0.0
      %v477 = vrot.slane %v476, 4
      %v478 = vadd.f32 %v476, %v477
      %v479 = vrot.slane %v478, 2
      %v480 = vadd.f32 %v478, %v479
      %v481 = vrot.slane %v480, 1
      %v482 = vadd.f32 %v480, %v481
      %v483 = vsel %vm429, %v461, 0.0
      %v484 = vrot.slane %v483, 4
      %v485 = vadd.f32 %v483, %v484
      %v486 = vrot.slane %v485, 2
      %v487 = vadd.f32 %v485, %v486
      %v488 = vrot.slane %v487, 1
      %v489 = vadd.f32 %v487, %v488
      %490 = vst [vmem:[%s270] sm:$0xff] %v436
      %491 = vst [vmem:[%s270 + $0x8] sm:$0xff] %v443
      %492 = vst [vmem:[%s270 + $0x10] sm:$0xff] %v450
      %493 = vst [vmem:[%s270 + $0x18] sm:$0xff] %v457
      %494 = vst [vmem:[%s280] sm:$0xff] %v468
      %495 = vst [vmem:[%s280 + $0x8] sm:$0xff] %v475
      %496 = vst [vmem:[%s280 + $0x10] sm:$0xff] %v482
      %497 = vst [vmem:[%s280 + $0x18] sm:$0xff] %v489
      %s498 = smul.u32 4, %s21
      %p499 = scmp.lt.s32.totalorder %s20, 0
      %s500 = scalar_select %p499, %s20, 0
      %p501 = scmp.lt.s32.totalorder %s498, 7
      %s502 = scalar_select %p501, %s498, 7
      %s503 = smul.addr %s500, 8
      %s504 = sadd.s32 %s502, %s503
      %s505 = scalar_lea.vmem %s2, %s504
      %s506 = smul.u32 4, %s21
      %p507 = scmp.lt.s32.totalorder %s20, 0
      %s508 = scalar_select %p507, %s20, 0
      %p509 = scmp.lt.s32.totalorder %s506, 7
      %s510 = scalar_select %p509, %s506, 7
      %s511 = smul.addr %s508, 8
      %s512 = sadd.s32 %s510, %s511
      %s513 = smul.addr %s512, 8
      %s514 = scalar_lea.vmem %s3, %s513
      %s515 = smul.u32 4, %s21
      %p516 = scmp.lt.s32.totalorder %s20, 0
      %s517 = scalar_select %p516, %s20, 0
      %p518 = scmp.lt.s32.totalorder %s515, 7
      %s519 = scalar_select %p518, %s515, 7
      %s520 = smul.addr %s517, 8
      %s521 = sadd.s32 %s519, %s520
      %s522 = smul.addr %s521, 8
      %s523 = scalar_lea.vmem %s4, %s522
      // Predicated region
      $region29: #{generator_forward.9} parent=27 // pred_check
        %p524 = pneg %p100
      $region30: #{generator_forward.9} parent=27 // pred_check_branch
        %526 = sbr.rel (%p524) target = $region32
      $region31: #{generator_forward.9} parent=27 // pred_region
        %s527 = smul.u32 4, %s21
      $region32: #{generator_forward.9} parent=27 // pred_fallthru
        _
      // Predicated region
      $region33: #{generator_forward.9} parent=27 // pred_check
        %p528 = pneg %p128
      $region34: #{generator_forward.9} parent=27 // pred_check_branch
        %530 = sbr.rel (%p528) target = $region36
      $region35: #{generator_forward.9} parent=27 // pred_region
        %s531 = smul.u32 4, %s21
      $region36: #{generator_forward.9} parent=27 // pred_fallthru
        _
      // Predicated region
      $region37: #{generator_forward.9} parent=27 // pred_check
        %p532 = pneg %p156
      $region38: #{generator_forward.9} parent=27 // pred_check_branch
        %534 = sbr.rel (%p532) target = $region40
      $region39: #{generator_forward.9} parent=27 // pred_region
        %s535 = smul.u32 4, %s21
      $region40: #{generator_forward.9} parent=27 // pred_fallthru
        _
    $region28: #{generator_forward.9} parent=5 // pred_fallthru
      _
    %p536 = scmp.le.s32.totalorder 2, %s11
    // Predicated region
    $region41: #{generator_forward.9} parent=5 // pred_check
      %p537 = pneg %p536
    $region42: #{generator_forward.9} parent=5 // pred_check_branch
      %539 = sbr.rel (%p537) target = $region44
    $region43: #{generator_forward.9} parent=5 // pred_region
      %s540 = ssub.s32 %s11, 2
      // Predicated region
      $region45: #{generator_forward.9} parent=43 // pred_check
        %p541 = pneg %p106
      $region46: #{generator_forward.9} parent=43 // pred_check_branch
        %543 = sbr.rel (%p541) target = $region48
      $region47: #{generator_forward.9} parent=43 // pred_region
        %s544 = smul.u32 4, %s23
        %p545 = scmp.lt.s32.totalorder %s22, 0
        %s546 = scalar_select %p545, %s22, 0
        %p547 = scmp.lt.s32.totalorder %s544, 7
        %s548 = scalar_select %p547, %s544, 7
        %s549 = smul.addr %s546, 8
        %s550 = sadd.s32 %s548, %s549
        %s551 = scalar_lea.vmem %s2, %s550
      $region48: #{generator_forward.9} parent=43 // pred_fallthru
        _
      // Predicated region
      $region49: #{generator_forward.9} parent=43 // pred_check
        %p552 = pneg %p134
      $region50: #{generator_forward.9} parent=43 // pred_check_branch
        %554 = sbr.rel (%p552) target = $region52
      $region51: #{generator_forward.9} parent=43 // pred_region
        %s555 = smul.u32 4, %s23
        %p556 = scmp.lt.s32.totalorder %s22, 0
        %s557 = scalar_select %p556, %s22, 0
        %p558 = scmp.lt.s32.totalorder %s555, 7
        %s559 = scalar_select %p558, %s555, 7
        %s560 = smul.addr %s557, 8
        %s561 = sadd.s32 %s559, %s560
        %s562 = smul.addr %s561, 8
        %s563 = scalar_lea.vmem %s3, %s562
      $region52: #{generator_forward.9} parent=43 // pred_fallthru
        _
      // Predicated region
      $region53: #{generator_forward.9} parent=43 // pred_check
        %p564 = pneg %p162
      $region54: #{generator_forward.9} parent=43 // pred_check_branch
        %566 = sbr.rel (%p564) target = $region56
      $region55: #{generator_forward.9} parent=43 // pred_region
        %s567 = smul.u32 4, %s23
        %p568 = scmp.lt.s32.totalorder %s22, 0
        %s569 = scalar_select %p568, %s22, 0
        %p570 = scmp.lt.s32.totalorder %s567, 7
        %s571 = scalar_select %p570, %s567, 7
        %s572 = smul.addr %s569, 8
        %s573 = sadd.s32 %s571, %s572
        %s574 = smul.addr %s573, 8
        %s575 = scalar_lea.vmem %s4, %s574
      $region56: #{generator_forward.9} parent=43 // pred_fallthru
        _
    $region44: #{generator_forward.9} parent=5 // pred_fallthru
      _
  $region6: #{generator_forward.9} parent=0 // loop_footer
    %s15 = sadd.s32 1, %s11
  $region7: #{generator_forward.9} parent=0 // loop_footer_branch
    %10 = sbr.rel target = $region3
  $region8: #{generator_forward.9} parent=0 // loop_exit
    _

// kernel: generator_forward.10
$region0: #{generator_forward.10}
  #allocation0 [shape = 'u32[]', space=smem, size = 0x4, offset = 0x4, fixed_abs, tag = 'smem constant byte address 0x4 - core index']
  #allocation1 [shape = 'u32[144,128]{1,0:T(1,128)}', space=vmem, size = 0x12000, scoped, tag = 'internal scratch']
  %s0 = inlined_call_operand.vmem [shape: bf16[2,1024], index: 0, kind: input, shape index: {}]
  %s1 = inlined_call_operand.vmem [shape: f32[1,1024], index: 1, kind: input, shape index: {}]
  %s2 = inlined_call_operand.vmem [shape: f32[1,1024], index: 2, kind: input, shape index: {}]
  %s3 = inlined_call_operand.vmem [shape: bf16[2,1024], index: 3, kind: output, shape index: {}]
  %s4 = sld [smem:[#allocation0]]
  $region22: #{generator_forward.10} parent=0
    _
  %s6 = ssub.s32 1, %s4
  %s7 = scalar_select 0, %s6, %s4
  // Predicated region
  $region2: #{generator_forward.10} parent=0 // pred_check
    _
  $region3: #{generator_forward.10} parent=0 // pred_check_branch
    %9 = sbr.rel (0) target = $region5
  $region4: #{generator_forward.10} parent=0 // pred_region
    _
  $region5: #{generator_forward.10} parent=0 // pred_fallthru
    _
  // Predicated region
  $region6: #{generator_forward.10} parent=0 // pred_check
    _
  $region7: #{generator_forward.10} parent=0 // pred_check_branch
    %11 = sbr.rel (0) target = $region9
  $region8: #{generator_forward.10} parent=0 // pred_region
    _
  $region9: #{generator_forward.10} parent=0 // pred_fallthru
    _
  // Predicated region
  $region10: #{generator_forward.10} parent=0 // pred_check
    _
  $region11: #{generator_forward.10} parent=0 // pred_check_branch
    %13 = sbr.rel (0) target = $region13
  $region12: #{generator_forward.10} parent=0 // pred_region
    _
  $region13: #{generator_forward.10} parent=0 // pred_fallthru
    _
  %v14 = vld [vmem:[%s0] sm:$0xff]
  %v15 = vunpack.c.l.bf16 %v14
  %v16 = vunpack.c.h.bf16 %v14
  %v17 = vld [vmem:[%s1] sm:$0xff]
  %v19 = vlaneseq
  %v20 = vshrl.u32 %v19, 7
  %v21 = vsub.s32 0, %v20
  %v22 = vrot.slane %v17, %v21
  %v23 = vlaneseq
  %v24 = vshrl.u32 %v23, 7
  %v25 = vsub.s32 1, %v24
  %v26 = vrot.slane %v17, %v25
  %v27 = vlaneseq
  %v28 = vshrl.u32 %v27, 7
  %v29 = vsub.s32 2, %v28
  %v30 = vrot.slane %v17, %v29
  %v31 = vlaneseq
  %v32 = vshrl.u32 %v31, 7
  %v33 = vsub.s32 3, %v32
  %v34 = vrot.slane %v17, %v33
  %v35 = vlaneseq
  %v36 = vshrl.u32 %v35, 7
  %v37 = vsub.s32 4, %v36
  %v38 = vrot.slane %v17, %v37
  %v39 = vlaneseq
  %v40 = vshrl.u32 %v39, 7
  %v41 = vsub.s32 5, %v40
  %v42 = vrot.slane %v17, %v41
  %v43 = vlaneseq
  %v44 = vshrl.u32 %v43, 7
  %v45 = vsub.s32 6, %v44
  %v46 = vrot.slane %v17, %v45
  %v47 = vlaneseq
  %v48 = vshrl.u32 %v47, 7
  %v49 = vsub.s32 7, %v48
  %v50 = vrot.slane %v17, %v49
  %v51 = vcombine.low %v22, %v26
  %v52 = vcombine.low %v30, %v34
  %v54 = vunpack.c.l.s4 1983009808
  %v55 = vunpack.c.0.s8 %v54
  %v56 = vlaneseq
  %v57 = vshrl.u32 %v56, 7
  %v58 = vsub.s32 %v55, %v57
  %v59 = vrot.slane %v51, %v58
  %v61 = vunpack.c.l.s4 1983009808
  %v62 = vunpack.c.0.s8 %v61
  %v63 = vlaneseq
  %v64 = vshrl.u32 %v63, 7
  %v65 = vsub.s32 %v62, %v64
  %v66 = vrot.slane %v52, %v65
  %v67 = vcombine.low %v59, %v66
  %v68 = vcombine.low %v38, %v42
  %v69 = vcombine.low %v46, %v50
  %v71 = vunpack.c.l.s4 1983009808
  %v72 = vunpack.c.0.s8 %v71
  %v73 = vlaneseq
  %v74 = vshrl.u32 %v73, 7
  %v75 = vsub.s32 %v72, %v74
  %v76 = vrot.slane %v68, %v75
  %v78 = vunpack.c.l.s4 1983009808
  %v79 = vunpack.c.0.s8 %v78
  %v80 = vlaneseq
  %v81 = vshrl.u32 %v80, 7
  %v82 = vsub.s32 %v79, %v81
  %v83 = vrot.slane %v69, %v82
  %v84 = vcombine.low %v76, %v83
  %v87 = vmul.f32 %v15, %v67
  %v88 = vmul.f32 %v16, %v84
  %v89 = vld [vmem:[%s2] sm:$0xff]
  %v91 = vlaneseq
  %v92 = vshrl.u32 %v91, 7
  %v93 = vsub.s32 0, %v92
  %v94 = vrot.slane %v89, %v93
  %v95 = vlaneseq
  %v96 = vshrl.u32 %v95, 7
  %v97 = vsub.s32 1, %v96
  %v98 = vrot.slane %v89, %v97
  %v99 = vlaneseq
  %v100 = vshrl.u32 %v99, 7
  %v101 = vsub.s32 2, %v100
  %v102 = vrot.slane %v89, %v101
  %v103 = vlaneseq
  %v104 = vshrl.u32 %v103, 7
  %v105 = vsub.s32 3, %v104
  %v106 = vrot.slane %v89, %v105
  %v107 = vlaneseq
  %v108 = vshrl.u32 %v107, 7
  %v109 = vsub.s32 4, %v108
  %v110 = vrot.slane %v89, %v109
  %v111 = vlaneseq
  %v112 = vshrl.u32 %v111, 7
  %v113 = vsub.s32 5, %v112
  %v114 = vrot.slane %v89, %v113
  %v115 = vlaneseq
  %v116 = vshrl.u32 %v115, 7
  %v117 = vsub.s32 6, %v116
  %v118 = vrot.slane %v89, %v117
  %v119 = vlaneseq
  %v120 = vshrl.u32 %v119, 7
  %v121 = vsub.s32 7, %v120
  %v122 = vrot.slane %v89, %v121
  %v123 = vcombine.low %v94, %v98
  %v124 = vcombine.low %v102, %v106
  %v126 = vunpack.c.l.s4 1983009808
  %v127 = vunpack.c.0.s8 %v126
  %v128 = vlaneseq
  %v129 = vshrl.u32 %v128, 7
  %v130 = vsub.s32 %v127, %v129
  %v131 = vrot.slane %v123, %v130
  %v133 = vunpack.c.l.s4 1983009808
  %v134 = vunpack.c.0.s8 %v133
  %v135 = vlaneseq
  %v136 = vshrl.u32 %v135, 7
  %v137 = vsub.s32 %v134, %v136
  %v138 = vrot.slane %v124, %v137
  %v139 = vcombine.low %v131, %v138
  %v140 = vcombine.low %v110, %v114
  %v141 = vcombine.low %v118, %v122
  %v143 = vunpack.c.l.s4 1983009808
  %v144 = vunpack.c.0.s8 %v143
  %v145 = vlaneseq
  %v146 = vshrl.u32 %v145, 7
  %v147 = vsub.s32 %v144, %v146
  %v148 = vrot.slane %v140, %v147
  %v150 = vunpack.c.l.s4 1983009808
  %v151 = vunpack.c.0.s8 %v150
  %v152 = vlaneseq
  %v153 = vshrl.u32 %v152, 7
  %v154 = vsub.s32 %v151, %v153
  %v155 = vrot.slane %v141, %v154
  %v156 = vcombine.low %v148, %v155
  %v159 = vadd.f32 %v87, %v139
  %v160 = vadd.f32 %v88, %v156
  %v161 = vmax.f32 %v159, 0.0
  %v162 = vmax.f32 %v160, 0.0
  %v165 = vcombine.high %v161, %v161
  %v167 = vunpack.c.l.s4 1983009808
  %v168 = vunpack.c.0.s8 %v167
  %v169 = vlaneseq
  %v170 = vshrl.u32 %v169, 7
  %v171 = vsub.s32 %v168, %v170
  %v172 = vrot.slane %v161, %v171
  %v174 = vunpack.c.l.s4 1983009808
  %v175 = vunpack.c.0.s8 %v174
  %v176 = vlaneseq
  %v177 = vshrl.u32 %v176, 7
  %v178 = vsub.s32 %v175, %v177
  %v179 = vrot.slane %v165, %v178
  %v180 = vcombine.high %v172, %v172
  %v181 = vcombine.high %v179, %v179
  %v182 = vcombine.high %v162, %v162
  %v184 = vunpack.c.l.s4 1983009808
  %v185 = vunpack.c.0.s8 %v184
  %v186 = vlaneseq
  %v187 = vshrl.u32 %v186, 7
  %v188 = vsub.s32 %v185, %v187
  %v189 = vrot.slane %v162, %v188
  %v191 = vunpack.c.l.s4 1983009808
  %v192 = vunpack.c.0.s8 %v191
  %v193 = vlaneseq
  %v194 = vshrl.u32 %v193, 7
  %v195 = vsub.s32 %v192, %v194
  %v196 = vrot.slane %v182, %v195
  %v197 = vcombine.high %v189, %v189
  %v198 = vcombine.high %v196, %v196
  %v207 = vpack.c.bf16 %v172, %v172
  %v208 = vpack.c.bf16 %v180, %v180
  %v209 = vpack.c.bf16 %v179, %v179
  %v210 = vpack.c.bf16 %v181, %v181
  %v211 = vpack.c.bf16 %v189, %v189
  %v212 = vpack.c.bf16 %v197, %v197
  %v213 = vpack.c.bf16 %v196, %v196
  %v214 = vpack.c.bf16 %v198, %v198
  %v223 = vcombine.low %v207, %v208
  %v224 = vcombine.low %v209, %v210
  %v225 = vcombine.low %v211, %v212
  %v226 = vcombine.low %v213, %v214
  %v228 = vunpack.c.l.s4 1966171168
  %v229 = vunpack.c.0.s8 %v228
  %v230 = vlaneseq
  %v231 = vshrl.u32 %v230, 7
  %v232 = vsub.s32 %v229, %v231
  %v233 = vrot.slane %v223, %v232
  %v235 = vunpack.c.l.s4 1966171168
  %v236 = vunpack.c.0.s8 %v235
  %v237 = vlaneseq
  %v238 = vshrl.u32 %v237, 7
  %v239 = vsub.s32 %v236, %v238
  %v240 = vrot.slane %v224, %v239
  %v242 = vunpack.c.l.s4 1966171168
  %v243 = vunpack.c.0.s8 %v242
  %v244 = vlaneseq
  %v245 = vshrl.u32 %v244, 7
  %v246 = vsub.s32 %v243, %v245
  %v247 = vrot.slane %v225, %v246
  %v249 = vunpack.c.l.s4 1966171168
  %v250 = vunpack.c.0.s8 %v249
  %v251 = vlaneseq
  %v252 = vshrl.u32 %v251, 7
  %v253 = vsub.s32 %v250, %v252
  %v254 = vrot.slane %v226, %v253
  %v255 = vcombine.low %v233, %v240
  %v256 = vcombine.low %v247, %v254
  %v258 = vunpack.c.l.s4 1966171168
  %v259 = vunpack.c.0.s8 %v258
  %v260 = vlaneseq
  %v261 = vshrl.u32 %v260, 7
  %v262 = vsub.s32 %v259, %v261
  %v263 = vrot.slane %v255, %v262
  %v265 = vunpack.c.l.s4 1966171168
  %v266 = vunpack.c.0.s8 %v265
  %v267 = vlaneseq
  %v268 = vshrl.u32 %v267, 7
  %v269 = vsub.s32 %v266, %v268
  %v270 = vrot.slane %v256, %v269
  %v271 = vcombine.low %v263, %v270
  %273 = vst [vmem:[%s3] sm:$0xff] %v271
  // Predicated region
  $region14: #{generator_forward.10} parent=0 // pred_check
    _
  $region15: #{generator_forward.10} parent=0 // pred_check_branch
    %275 = sbr.rel (0) target = $region17
  $region16: #{generator_forward.10} parent=0 // pred_region
    _
  $region17: #{generator_forward.10} parent=0 // pred_fallthru
    _
  // Predicated region
  $region18: #{generator_forward.10} parent=0 // pred_check
    _
  $region19: #{generator_forward.10} parent=0 // pred_check_branch
    %277 = sbr.rel (0) target = $region21
  $region20: #{generator_forward.10} parent=0 // pred_region
    _
  $region21: #{generator_forward.10} parent=0 // pred_fallthru
    _

// kernel: tile.86
$region0: #{tile.86}
  #allocation0 [shape = 's32[1]{0}', space=sflag, size = 0x4, scoped, tag = 'scoped memory for tile.86']
  %s0 = inlined_call_operand.vmem [shape: f32[32], index: 0, kind: input, shape index: {}]
  %s1 = inlined_call_operand.vmem [shape: f32[4,32], index: 1, kind: output, shape index: {}]
  // Predicated region
  $region2: #{tile.86} parent=0 // pred_check
    _
  $region3: #{tile.86} parent=0 // pred_check_branch
    %3 = sbr.rel (0) target = $region5
  $region4: #{tile.86} parent=0 // pred_region
    _
  $region5: #{tile.86} parent=0 // pred_fallthru
    _
  %v4 = vld [vmem:[%s0] ss:$0 sm:$0xff]
  %5 = vst [vmem:[%s1] sm:$0xf] %v4

// kernel: tile.94
$region0: #{tile.94}
  %s0 = inlined_call_operand.vmem [shape: f32[4,32], index: 0, kind: input, shape index: {}]
  %s1 = inlined_call_operand.vmem [shape: f32[128], index: 1, kind: output, shape index: {}]
  $region1: #{tile.94} parent=0
    #allocation0 [shape = 'u8[4096]{0}', space=vmem, size = 0x1000, scoped, tag = 'scoped mem for output reshape']
    #allocation1 [shape = 'u8[4096]{0}', space=vmem, size = 0x1000, scoped, tag = 'scoped mem for input reshape']
    %s3 = sshllo.u32 0, 4
    %v4 = vld [vmem:[%s0] sm:%s3]
    %5 = vst [vmem:[#allocation1] sm:%s3] %v4
    %v6 = vld [vmem:[#allocation1] sm:$0x1]
    %vm7 = vcmask 261120
    %8 = vst.msk [vmem:[#allocation0] sm:$0x1] %vm7, %v6
    %s9 = scalar_lea.vmem [#allocation1], 3
    %v10 = vld [vmem:[%s9] sm:$0x1]
    %11 = vrot.lane.b32.xlu0 %v10, 96
    %v12 = vpop.permute.xlu0 %11
    %vm13 = vcmask 1048320
    %14 = vst.msk [vmem:[#allocation0] sm:$0x1] %vm13, %v12
    %s15 = scalar_lea.vmem [#allocation1], 2
    %v16 = vld [vmem:[%s15] sm:$0x1]
    %17 = vrot.lane.b32.xlu0 %v16, 64
    %v18 = vpop.permute.xlu0 %17
    %vm19 = vcmask 785920
    %20 = vst.msk [vmem:[#allocation0] sm:$0x1] %vm19, %v18
    %s21 = scalar_lea.vmem [#allocation1], 1
    %v22 = vld [vmem:[%s21] sm:$0x1]
    %23 = vrot.lane.b32.xlu0 %v22, 32
    %v24 = vpop.permute.xlu0 %23
    %vm25 = vcmask 523520
    %26 = vst.msk [vmem:[#allocation0] sm:$0x1] %vm25, %v24
    %s28 = sshllo.u32 0, 1
    %v30 = vld [vmem:[#allocation0] sm:%s28]
    %s31 = sshllo.u32 0, 1
    %32 = vst [vmem:[%s1] sm:%s31] %v30

// kernel: tile.95
$region0: #{tile.95}
  #allocation0 [shape = 's32[1]{0}', space=sflag, size = 0x4, scoped, tag = 'scoped memory for tile.95']
  %s0 = inlined_call_operand.vmem [shape: f32[128], index: 0, kind: input, shape index: {}]
  %s1 = inlined_call_operand.vmem [shape: f32[2,128], index: 1, kind: output, shape index: {}]
  // Predicated region
  $region2: #{tile.95} parent=0 // pred_check
    _
  $region3: #{tile.95} parent=0 // pred_check_branch
    %3 = sbr.rel (0) target = $region5
  $region4: #{tile.95} parent=0 // pred_region
    _
  $region5: #{tile.95} parent=0 // pred_fallthru
    _
  %v4 = vld [vmem:[%s0] ss:$0 sm:$0xff]
  %5 = vst [vmem:[%s1] sm:$0x3] %v4

// kernel: generator_forward.12
$region0: #{generator_forward.12}
  #allocation0 [shape = 'u32[]', space=smem, size = 0x4, offset = 0x4, fixed_abs, tag = 'smem constant byte address 0x4 - core index']
  #allocation1 [shape = 'u32[144,128]{1,0:T(1,128)}', space=vmem, size = 0x12000, scoped, tag = 'internal scratch']
  %s0 = inlined_call_operand.vmem [shape: bf16[16,256], index: 0, kind: input, shape index: {}]
  %s1 = inlined_call_operand.vmem [shape: f32[1,256], index: 1, kind: input, shape index: {}]
  %s2 = inlined_call_operand.vmem [shape: f32[1,256], index: 2, kind: input, shape index: {}]
  %s3 = inlined_call_operand.vmem [shape: bf16[16,256], index: 3, kind: output, shape index: {}]
  %s4 = sld [smem:[#allocation0]]
  $region22: #{generator_forward.12} parent=0
    _
  %s6 = ssub.s32 1, %s4
  %s7 = scalar_select 0, %s6, %s4
  // Predicated region
  $region2: #{generator_forward.12} parent=0 // pred_check
    _
  $region3: #{generator_forward.12} parent=0 // pred_check_branch
    %9 = sbr.rel (0) target = $region5
  $region4: #{generator_forward.12} parent=0 // pred_region
    _
  $region5: #{generator_forward.12} parent=0 // pred_fallthru
    _
  // Predicated region
  $region6: #{generator_forward.12} parent=0 // pred_check
    _
  $region7: #{generator_forward.12} parent=0 // pred_check_branch
    %11 = sbr.rel (0) target = $region9
  $region8: #{generator_forward.12} parent=0 // pred_region
    _
  $region9: #{generator_forward.12} parent=0 // pred_fallthru
    _
  // Predicated region
  $region10: #{generator_forward.12} parent=0 // pred_check
    _
  $region11: #{generator_forward.12} parent=0 // pred_check_branch
    %13 = sbr.rel (0) target = $region13
  $region12: #{generator_forward.12} parent=0 // pred_region
    _
  $region13: #{generator_forward.12} parent=0 // pred_fallthru
    _
  %v14 = vld [vmem:[%s0] sm:$0xff]
  %v15 = vld [vmem:[%s0 + $0x8] sm:$0xff]
  %v16 = vunpack.c.l.bf16 %v14
  %v17 = vunpack.c.h.bf16 %v14
  %v18 = vunpack.c.l.bf16 %v15
  %v19 = vunpack.c.h.bf16 %v15
  %v20 = vld [vmem:[%s1] sm:$0x3]
  %v22 = vlaneseq
  %v23 = vshrl.u32 %v22, 7
  %v24 = vsub.s32 0, %v23
  %v25 = vrot.slane %v20, %v24
  %v26 = vlaneseq
  %v27 = vshrl.u32 %v26, 7
  %v28 = vsub.s32 1, %v27
  %v29 = vrot.slane %v20, %v28
  %v32 = vmul.f32 %v16, %v25
  %v33 = vmul.f32 %v17, %v29
  %v34 = vmul.f32 %v18, %v25
  %v35 = vmul.f32 %v19, %v29
  %v36 = vld [vmem:[%s2] sm:$0x3]
  %v38 = vlaneseq
  %v39 = vshrl.u32 %v38, 7
  %v40 = vsub.s32 0, %v39
  %v41 = vrot.slane %v36, %v40
  %v42 = vlaneseq
  %v43 = vshrl.u32 %v42, 7
  %v44 = vsub.s32 1, %v43
  %v45 = vrot.slane %v36, %v44
  %v48 = vadd.f32 %v32, %v41
  %v49 = vadd.f32 %v33, %v45
  %v50 = vadd.f32 %v34, %v41
  %v51 = vadd.f32 %v35, %v45
  %v52 = vmax.f32 %v48, 0.0
  %v53 = vmax.f32 %v49, 0.0
  %v54 = vmax.f32 %v50, 0.0
  %v55 = vmax.f32 %v51, 0.0
  %v56 = vpack.c.bf16 %v54, %v52
  %v57 = vpack.c.bf16 %v55, %v53
  %v60 = vunpack.c.l.b16 %v56
  %v61 = vunpack.c.l.b16 %v57
  %v62 = vunpack.c.h.b16 %v56
  %v63 = vunpack.c.h.b16 %v57
  %v64 = vpack.c.b16 %v61, %v60
  %v65 = vpack.c.b16 %v63, %v62
  %68 = vst [vmem:[%s3] sm:$0xff] %v64
  %69 = vst [vmem:[%s3 + $0x8] sm:$0xff] %v65
  // Predicated region
  $region14: #{generator_forward.12} parent=0 // pred_check
    _
  $region15: #{generator_forward.12} parent=0 // pred_check_branch
    %71 = sbr.rel (0) target = $region17
  $region16: #{generator_forward.12} parent=0 // pred_region
    _
  $region17: #{generator_forward.12} parent=0 // pred_fallthru
    _
  // Predicated region
  $region18: #{generator_forward.12} parent=0 // pred_check
    _
  $region19: #{generator_forward.12} parent=0 // pred_check_branch
    %73 = sbr.rel (0) target = $region21
  $region20: #{generator_forward.12} parent=0 // pred_region
    _
  $region21: #{generator_forward.12} parent=0 // pred_fallthru
    _

// kernel: generator_forward.11
$region0: #{generator_forward.11}
  #allocation0 [shape = 'u32[]', space=smem, size = 0x4, offset = 0x4, fixed_abs, tag = 'smem constant byte address 0x4 - core index']
  #allocation1 [shape = 'u32[144,128]{1,0:T(1,128)}', space=vmem, size = 0x12000, scoped, tag = 'internal scratch']
  %s0 = inlined_call_operand.vmem [shape: bf16[32,576], index: 0, kind: input, shape index: {}]
  %s1 = inlined_call_operand.vmem [shape: bf16[576,128], index: 1, kind: input, shape index: {}]
  %s2 = inlined_call_operand.vmem [shape: bf16[32,128], index: 2, kind: output, shape index: {0}]
  %s3 = inlined_call_operand.vmem [shape: f32[8,128], index: 3, kind: output, shape index: {1}]
  %s4 = inlined_call_operand.vmem [shape: f32[8,128], index: 4, kind: output, shape index: {2}]
  %5 = xla_tuple %s2, %s3, %s4
  %s6 = sld [smem:[#allocation0]]
  $region34: #{generator_forward.11} parent=0
    _
  %s8 = ssub.s32 1, %s6
  %s9 = scalar_select 0, %s8, %s6
  // Predicated region
  $region2: #{generator_forward.11} parent=0 // pred_check
    _
  $region3: #{generator_forward.11} parent=0 // pred_check_branch
    %11 = sbr.rel (0) target = $region5
  $region4: #{generator_forward.11} parent=0 // pred_region
    _
  $region5: #{generator_forward.11} parent=0 // pred_fallthru
    _
  // Predicated region
  $region6: #{generator_forward.11} parent=0 // pred_check
    _
  $region7: #{generator_forward.11} parent=0 // pred_check_branch
    %13 = sbr.rel (0) target = $region9
  $region8: #{generator_forward.11} parent=0 // pred_region
    _
  $region9: #{generator_forward.11} parent=0 // pred_fallthru
    _
  %v15 = vld [vmem:[%s0] sm:$0xff]
  %v16 = vld [vmem:[%s0 + $0x8] sm:$0xff]
  %v17 = vld [vmem:[%s0 + $0x10] sm:$0xf]
  %v18 = vld [vmem:[%s0 + $0x14] sm:$0xff]
  %v19 = vld [vmem:[%s0 + $0x1c] sm:$0xff]
  %v20 = vld [vmem:[%s0 + $0x24] sm:$0xf]
  %v21 = vld [vmem:[%s0 + $0x28] sm:$0xff]
  %v22 = vld [vmem:[%s0 + $0x30] sm:$0xff]
  %v23 = vld [vmem:[%s0 + $0x38] sm:$0xf]
  %v24 = vld [vmem:[%s0 + $0x3c] sm:$0xff]
  %v25 = vld [vmem:[%s0 + $0x44] sm:$0xff]
  %v26 = vld [vmem:[%s0 + $0x4c] sm:$0xf]
  %v27 = vld [vmem:[%s1] sm:$0xf]
  %v28 = vld [vmem:[%s1 + $0x4] sm:$0xf]
  %v29 = vld [vmem:[%s1 + $0x8] sm:$0xf]
  %v30 = vld [vmem:[%s1 + $0xc] sm:$0xf]
  %v31 = vld [vmem:[%s1 + $0x10] sm:$0xf]
  %v32 = vld [vmem:[%s1 + $0x14] sm:$0xf]
  %v33 = vld [vmem:[%s1 + $0x18] sm:$0xf]
  %v34 = vld [vmem:[%s1 + $0x1c] sm:$0xf]
  %v35 = vld [vmem:[%s1 + $0x20] sm:$0xf]
  %v36 = vld [vmem:[%s1 + $0x24] sm:$0xf]
  %v37 = vld [vmem:[%s1 + $0x28] sm:$0xf]
  %v38 = vld [vmem:[%s1 + $0x2c] sm:$0xf]
  %v39 = vld [vmem:[%s1 + $0x30] sm:$0xf]
  %v40 = vld [vmem:[%s1 + $0x34] sm:$0xf]
  %v41 = vld [vmem:[%s1 + $0x38] sm:$0xf]
  %v42 = vld [vmem:[%s1 + $0x3c] sm:$0xf]
  %v43 = vld [vmem:[%s1 + $0x40] sm:$0xf]
  %v44 = vld [vmem:[%s1 + $0x44] sm:$0xf]
  %v45 = vld [vmem:[%s1 + $0x48] sm:$0xf]
  %v46 = vld [vmem:[%s1 + $0x4c] sm:$0xf]
  %v47 = vld [vmem:[%s1 + $0x50] sm:$0xf]
  %v48 = vld [vmem:[%s1 + $0x54] sm:$0xf]
  %v49 = vld [vmem:[%s1 + $0x58] sm:$0xf]
  %v50 = vld [vmem:[%s1 + $0x5c] sm:$0xf]
  %v51 = vld [vmem:[%s1 + $0x60] sm:$0xf]
  %v52 = vld [vmem:[%s1 + $0x64] sm:$0xf]
  %v53 = vld [vmem:[%s1 + $0x68] sm:$0xf]
  %v54 = vld [vmem:[%s1 + $0x6c] sm:$0xf]
  %v55 = vld [vmem:[%s1 + $0x70] sm:$0xf]
  %v56 = vld [vmem:[%s1 + $0x74] sm:$0xf]
  %v57 = vld [vmem:[%s1 + $0x78] sm:$0xf]
  %v58 = vld [vmem:[%s1 + $0x7c] sm:$0xf]
  %v59 = vld [vmem:[%s1 + $0x80] sm:$0xf]
  %v60 = vld [vmem:[%s1 + $0x84] sm:$0xf]
  %v61 = vld [vmem:[%s1 + $0x88] sm:$0xf]
  %v62 = vld [vmem:[%s1 + $0x8c] sm:$0xf]
  %v63 = vld [vmem:[%s1 + $0x90] sm:$0xf]
  %v64 = vld [vmem:[%s1 + $0x94] sm:$0xf]
  %v65 = vld [vmem:[%s1 + $0x98] sm:$0xf]
  %v66 = vld [vmem:[%s1 + $0x9c] sm:$0xf]
  %v67 = vld [vmem:[%s1 + $0xa0] sm:$0xf]
  %v68 = vld [vmem:[%s1 + $0xa4] sm:$0xf]
  %v69 = vld [vmem:[%s1 + $0xa8] sm:$0xf]
  %v70 = vld [vmem:[%s1 + $0xac] sm:$0xf]
  %v71 = vld [vmem:[%s1 + $0xb0] sm:$0xf]
  %v72 = vld [vmem:[%s1 + $0xb4] sm:$0xf]
  %v73 = vld [vmem:[%s1 + $0xb8] sm:$0xf]
  %v74 = vld [vmem:[%s1 + $0xbc] sm:$0xf]
  %v75 = vld [vmem:[%s1 + $0xc0] sm:$0xf]
  %v76 = vld [vmem:[%s1 + $0xc4] sm:$0xf]
  %v77 = vld [vmem:[%s1 + $0xc8] sm:$0xf]
  %v78 = vld [vmem:[%s1 + $0xcc] sm:$0xf]
  %v79 = vld [vmem:[%s1 + $0xd0] sm:$0xf]
  %v80 = vld [vmem:[%s1 + $0xd4] sm:$0xf]
  %v81 = vld [vmem:[%s1 + $0xd8] sm:$0xf]
  %v82 = vld [vmem:[%s1 + $0xdc] sm:$0xf]
  %v83 = vld [vmem:[%s1 + $0xe0] sm:$0xf]
  %v84 = vld [vmem:[%s1 + $0xe4] sm:$0xf]
  %v85 = vld [vmem:[%s1 + $0xe8] sm:$0xf]
  %v86 = vld [vmem:[%s1 + $0xec] sm:$0xf]
  %v87 = vld [vmem:[%s1 + $0xf0] sm:$0xf]
  %v88 = vld [vmem:[%s1 + $0xf4] sm:$0xf]
  %v89 = vld [vmem:[%s1 + $0xf8] sm:$0xf]
  %v90 = vld [vmem:[%s1 + $0xfc] sm:$0xf]
  %v91 = vld [vmem:[%s1 + $0x100] sm:$0xf]
  %v92 = vld [vmem:[%s1 + $0x104] sm:$0xf]
  %v93 = vld [vmem:[%s1 + $0x108] sm:$0xf]
  %v94 = vld [vmem:[%s1 + $0x10c] sm:$0xf]
  %v95 = vld [vmem:[%s1 + $0x110] sm:$0xf]
  %v96 = vld [vmem:[%s1 + $0x114] sm:$0xf]
  %v97 = vld [vmem:[%s1 + $0x118] sm:$0xf]
  %v98 = vld [vmem:[%s1 + $0x11c] sm:$0xf]
  %v111 = vunpack.c.l.b16 %v15
  %v112 = vunpack.c.h.b16 %v15
  %v113 = vunpack.c.l.b16 %v16
  %v114 = vunpack.c.h.b16 %v16
  %v115 = vunpack.c.l.b16 %v17
  %v116 = vunpack.c.l.b16 %v18
  %v117 = vunpack.c.h.b16 %v18
  %v118 = vunpack.c.l.b16 %v19
  %v119 = vunpack.c.h.b16 %v19
  %v120 = vunpack.c.l.b16 %v20
  %v121 = vunpack.c.l.b16 %v21
  %v122 = vunpack.c.h.b16 %v21
  %v123 = vunpack.c.l.b16 %v22
  %v124 = vunpack.c.h.b16 %v22
  %v125 = vunpack.c.l.b16 %v23
  %v126 = vunpack.c.l.b16 %v24
  %v127 = vunpack.c.h.b16 %v24
  %v128 = vunpack.c.l.b16 %v25
  %v129 = vunpack.c.h.b16 %v25
  %v130 = vunpack.c.l.b16 %v26
  %v131 = vpack.c.b16 %v116, %v111
  %v132 = vpack.c.b16 %v117, %v112
  %v133 = vpack.c.b16 %v118, %v113
  %v134 = vpack.c.b16 %v119, %v114
  %v135 = vpack.c.b16 %v120, %v115
  %v136 = vpack.c.b16 %v126, %v121
  %v137 = vpack.c.b16 %v127, %v122
  %v138 = vpack.c.b16 %v128, %v123
  %v139 = vpack.c.b16 %v129, %v124
  %v140 = vpack.c.b16 %v130, %v125
  %v221 = vunpack.c.l.b16 %v27
  %v222 = vunpack.c.l.b16 %v28
  %v223 = vunpack.c.l.b16 %v29
  %v224 = vunpack.c.l.b16 %v30
  %v225 = vunpack.c.l.b16 %v31
  %v226 = vunpack.c.l.b16 %v32
  %v227 = vunpack.c.l.b16 %v33
  %v228 = vunpack.c.l.b16 %v34
  %v229 = vunpack.c.l.b16 %v35
  %v230 = vunpack.c.l.b16 %v36
  %v231 = vunpack.c.l.b16 %v37
  %v232 = vunpack.c.l.b16 %v38
  %v233 = vunpack.c.l.b16 %v39
  %v234 = vunpack.c.l.b16 %v40
  %v235 = vunpack.c.l.b16 %v41
  %v236 = vunpack.c.l.b16 %v42
  %v237 = vunpack.c.l.b16 %v43
  %v238 = vunpack.c.l.b16 %v44
  %v239 = vunpack.c.l.b16 %v45
  %v240 = vunpack.c.l.b16 %v46
  %v241 = vunpack.c.l.b16 %v47
  %v242 = vunpack.c.l.b16 %v48
  %v243 = vunpack.c.l.b16 %v49
  %v244 = vunpack.c.l.b16 %v50
  %v245 = vunpack.c.l.b16 %v51
  %v246 = vunpack.c.l.b16 %v52
  %v247 = vunpack.c.l.b16 %v53
  %v248 = vunpack.c.l.b16 %v54
  %v249 = vunpack.c.l.b16 %v55
  %v250 = vunpack.c.l.b16 %v56
  %v251 = vunpack.c.l.b16 %v57
  %v252 = vunpack.c.l.b16 %v58
  %v253 = vunpack.c.l.b16 %v59
  %v254 = vunpack.c.l.b16 %v60
  %v255 = vunpack.c.l.b16 %v61
  %v256 = vunpack.c.l.b16 %v62
  %v257 = vunpack.c.l.b16 %v63
  %v258 = vunpack.c.l.b16 %v64
  %v259 = vunpack.c.l.b16 %v65
  %v260 = vunpack.c.l.b16 %v66
  %v261 = vunpack.c.l.b16 %v67
  %v262 = vunpack.c.l.b16 %v68
  %v263 = vunpack.c.l.b16 %v69
  %v264 = vunpack.c.l.b16 %v70
  %v265 = vunpack.c.l.b16 %v71
  %v266 = vunpack.c.l.b16 %v72
  %v267 = vunpack.c.l.b16 %v73
  %v268 = vunpack.c.l.b16 %v74
  %v269 = vunpack.c.l.b16 %v75
  %v270 = vunpack.c.l.b16 %v76
  %v271 = vunpack.c.l.b16 %v77
  %v272 = vunpack.c.l.b16 %v78
  %v273 = vunpack.c.l.b16 %v79
  %v274 = vunpack.c.l.b16 %v80
  %v275 = vunpack.c.l.b16 %v81
  %v276 = vunpack.c.l.b16 %v82
  %v277 = vunpack.c.l.b16 %v83
  %v278 = vunpack.c.l.b16 %v84
  %v279 = vunpack.c.l.b16 %v85
  %v280 = vunpack.c.l.b16 %v86
  %v281 = vunpack.c.l.b16 %v87
  %v282 = vunpack.c.l.b16 %v88
  %v283 = vunpack.c.l.b16 %v89
  %v284 = vunpack.c.l.b16 %v90
  %v285 = vunpack.c.l.b16 %v91
  %v286 = vunpack.c.l.b16 %v92
  %v287 = vunpack.c.l.b16 %v93
  %v288 = vunpack.c.l.b16 %v94
  %v289 = vunpack.c.l.b16 %v95
  %v290 = vunpack.c.l.b16 %v96
  %v291 = vunpack.c.l.b16 %v97
  %v292 = vunpack.c.l.b16 %v98
  %v293 = vpack.c.b16 %v222, %v221
  %v294 = vpack.c.b16 %v224, %v223
  %v295 = vpack.c.b16 %v226, %v225
  %v296 = vpack.c.b16 %v228, %v227
  %v297 = vpack.c.b16 %v230, %v229
  %v298 = vpack.c.b16 %v232, %v231
  %v299 = vpack.c.b16 %v234, %v233
  %v300 = vpack.c.b16 %v236, %v235
  %v301 = vpack.c.b16 %v238, %v237
  %v302 = vpack.c.b16 %v240, %v239
  %v303 = vpack.c.b16 %v242, %v241
  %v304 = vpack.c.b16 %v244, %v243
  %v305 = vpack.c.b16 %v246, %v245
  %v306 = vpack.c.b16 %v248, %v247
  %v307 = vpack.c.b16 %v250, %v249
  %v308 = vpack.c.b16 %v252, %v251
  %v309 = vpack.c.b16 %v254, %v253
  %v310 = vpack.c.b16 %v256, %v255
  %v311 = vpack.c.b16 %v258, %v257
  %v312 = vpack.c.b16 %v260, %v259
  %v313 = vpack.c.b16 %v262, %v261
  %v314 = vpack.c.b16 %v264, %v263
  %v315 = vpack.c.b16 %v266, %v265
  %v316 = vpack.c.b16 %v268, %v267
  %v317 = vpack.c.b16 %v270, %v269
  %v318 = vpack.c.b16 %v272, %v271
  %v319 = vpack.c.b16 %v274, %v273
  %v320 = vpack.c.b16 %v276, %v275
  %v321 = vpack.c.b16 %v278, %v277
  %v322 = vpack.c.b16 %v280, %v279
  %v323 = vpack.c.b16 %v282, %v281
  %v324 = vpack.c.b16 %v284, %v283
  %v325 = vpack.c.b16 %v286, %v285
  %v326 = vpack.c.b16 %v288, %v287
  %v327 = vpack.c.b16 %v290, %v289
  %v328 = vpack.c.b16 %v292, %v291
  %vm365 = vcmask 523264
  %v367 = vsel %vm365, %v135, 0
  %v370 = vsel %vm365, %v140, 0
  %372 = vmatprep.subr.bf16.mxu0 0
  %373 = vmatpush1.bf16.msra.mxu0 %v293
  %374 = vmatprep.subr.bf16.mxu0 0
  %375 = vmatpush1.bf16.msra.mxu0 %v294
  %376 = vmatprep.subr.bf16.mxu0 0
  %377 = vmatpush1.bf16.msra.mxu0 %v295
  %378 = vmatprep.subr.bf16.mxu0 0
  %379 = vmatpush1.bf16.msra.mxu0 %v296
  %380 = vmatprep.subr.bf16.mxu0 0
  %381 = vmatpush1.bf16.msra.mxu0 %v297
  %382 = vmatprep.subr.bf16.mxu0 0
  %383 = vmatpush1.bf16.msra.mxu0 %v298
  %384 = vmatprep.subr.bf16.mxu0 0
  %385 = vmatpush1.bf16.msra.mxu0 %v299
  %386 = vmatprep.subr.bf16.mxu0 0
  %387 = vmatpush1.bf16.msra.mxu0 %v300
  %388 = vmatprep.subr.bf16.mxu0 0
  %389 = vmatpush1.bf16.msra.mxu0 %v301
  %390 = vmatprep.subr.bf16.mxu0 0
  %391 = vmatpush1.bf16.msra.mxu0 %v302
  %392 = vmatprep.subr.bf16.mxu0 0
  %393 = vmatpush1.bf16.msra.mxu0 %v303
  %394 = vmatprep.subr.bf16.mxu0 0
  %395 = vmatpush1.bf16.msra.mxu0 %v304
  %396 = vmatprep.subr.bf16.mxu0 0
  %397 = vmatpush1.bf16.msra.mxu0 %v305
  %398 = vmatprep.subr.bf16.mxu0 0
  %399 = vmatpush1.bf16.msra.mxu0 %v306
  %400 = vmatprep.subr.bf16.mxu0 0
  %401 = vmatpush1.bf16.msra.mxu0 %v307
  %402 = vmatprep.subr.bf16.mxu0 0
  %403 = vmatpush1.bf16.msra.mxu0 %v308
  %404 = vmatprep.mubr.bf16.mxu0 %v132
  %405 = vmatmul.mubr.bf16.gmra.mrb[0].mxu0 %v131
  %v406 = vpop.f32.mrb[0].mxu0
  %v407 = vadd.f32 0.0, %v406
  %v408 = vpop.f32.mrb[0].mxu0
  %v409 = vpop.f32.mrb[0].mxu0
  %v410 = vadd.f32 0.0, %v409
  %v411 = vpop.f32.mrb[0].mxu0
  %412 = vmatprep.mubr.bf16.mxu0 %v137
  %413 = vmatmul.mubr.bf16.gmra.mrb[0].mxu0 %v136
  %v414 = vpop.f32.mrb[0].mxu0
  %v415 = vadd.f32 0.0, %v414
  %v416 = vpop.f32.mrb[0].mxu0
  %v417 = vpop.f32.mrb[0].mxu0
  %v418 = vadd.f32 0.0, %v417
  %v419 = vpop.f32.mrb[0].mxu0
  %420 = vdwg.mxu0
  %421 = vmatprep.subr.bf16.mxu0 0
  %422 = vmatpush1.bf16.msra.mxu0 %v309
  %423 = vmatprep.subr.bf16.mxu0 0
  %424 = vmatpush1.bf16.msra.mxu0 %v310
  %425 = vmatprep.subr.bf16.mxu0 0
  %426 = vmatpush1.bf16.msra.mxu0 %v311
  %427 = vmatprep.subr.bf16.mxu0 0
  %428 = vmatpush1.bf16.msra.mxu0 %v312
  %429 = vmatprep.subr.bf16.mxu0 0
  %430 = vmatpush1.bf16.msra.mxu0 %v313
  %431 = vmatprep.subr.bf16.mxu0 0
  %432 = vmatpush1.bf16.msra.mxu0 %v314
  %433 = vmatprep.subr.bf16.mxu0 0
  %434 = vmatpush1.bf16.msra.mxu0 %v315
  %435 = vmatprep.subr.bf16.mxu0 0
  %436 = vmatpush1.bf16.msra.mxu0 %v316
  %437 = vmatprep.subr.bf16.mxu0 0
  %438 = vmatpush1.bf16.msra.mxu0 %v317
  %439 = vmatprep.subr.bf16.mxu0 0
  %440 = vmatpush1.bf16.msra.mxu0 %v318
  %441 = vmatprep.subr.bf16.mxu0 0
  %442 = vmatpush1.bf16.msra.mxu0 %v319
  %443 = vmatprep.subr.bf16.mxu0 0
  %444 = vmatpush1.bf16.msra.mxu0 %v320
  %445 = vmatprep.subr.bf16.mxu0 0
  %446 = vmatpush1.bf16.msra.mxu0 %v321
  %447 = vmatprep.subr.bf16.mxu0 0
  %448 = vmatpush1.bf16.msra.mxu0 %v322
  %449 = vmatprep.subr.bf16.mxu0 0
  %450 = vmatpush1.bf16.msra.mxu0 %v323
  %451 = vmatprep.subr.bf16.mxu0 0
  %452 = vmatpush1.bf16.msra.mxu0 %v324
  %453 = vmatprep.mubr.bf16.mxu0 %v134
  %454 = vmatmul.mubr.bf16.gmra.mrb[0].mxu0 %v133
  %v455 = vpop.f32.mrb[0].mxu0
  %v456 = vadd.f32 %v407, %v455
  %v457 = vpop.f32.mrb[0].mxu0
  %v458 = vpop.f32.mrb[0].mxu0
  %v459 = vadd.f32 %v410, %v458
  %v460 = vpop.f32.mrb[0].mxu0
  %461 = vmatprep.mubr.bf16.mxu0 %v139
  %462 = vmatmul.mubr.bf16.gmra.mrb[0].mxu0 %v138
  %v463 = vpop.f32.mrb[0].mxu0
  %v464 = vadd.f32 %v415, %v463
  %v465 = vpop.f32.mrb[0].mxu0
  %v466 = vpop.f32.mrb[0].mxu0
  %v467 = vadd.f32 %v418, %v466
  %v468 = vpop.f32.mrb[0].mxu0
  %469 = vdwg.mxu0
  %470 = vmatprep.subr.bf16.mxu0 0
  %471 = vmatpush1.bf16.msra.mxu0 %v325
  %472 = vmatprep.subr.bf16.mxu0 0
  %473 = vmatpush1.bf16.msra.mxu0 %v326
  %474 = vmatprep.subr.bf16.mxu0 0
  %475 = vmatpush1.bf16.msra.mxu0 %v327
  %476 = vmatprep.subr.bf16.mxu0 0
  %477 = vmatpush1.bf16.msra.mxu0 %v328
  %478 = vmatprep.subr.bf16.mxu0 0
  %479 = vmatpush1.bf16.msra.mxu0 0
  %480 = vmatprep.subr.bf16.mxu0 0
  %481 = vmatpush1.bf16.msra.mxu0 0
  %482 = vmatprep.subr.bf16.mxu0 0
  %483 = vmatpush1.bf16.msra.mxu0 0
  %484 = vmatprep.subr.bf16.mxu0 0
  %485 = vmatpush1.bf16.msra.mxu0 0
  %486 = vmatprep.subr.bf16.mxu0 0
  %487 = vmatpush1.bf16.msra.mxu0 0
  %488 = vmatprep.subr.bf16.mxu0 0
  %489 = vmatpush1.bf16.msra.mxu0 0
  %490 = vmatprep.subr.bf16.mxu0 0
  %491 = vmatpush1.bf16.msra.mxu0 0
  %492 = vmatprep.subr.bf16.mxu0 0
  %493 = vmatpush1.bf16.msra.mxu0 0
  %494 = vmatprep.subr.bf16.mxu0 0
  %495 = vmatpush1.bf16.msra.mxu0 0
  %496 = vmatprep.subr.bf16.mxu0 0
  %497 = vmatpush1.bf16.msra.mxu0 0
  %498 = vmatprep.subr.bf16.mxu0 0
  %499 = vmatpush1.bf16.msra.mxu0 0
  %500 = vmatprep.subr.bf16.mxu0 0
  %501 = vmatpush1.bf16.msra.mxu0 0
  %502 = vmatprep.mubr.bf16.mxu0 0
  %503 = vmatmul.mubr.bf16.gmra.mrb[0].mxu0 %v367
  %v504 = vpop.f32.mrb[0].mxu0
  %v505 = vadd.f32 %v456, %v504
  %v506 = vpop.f32.mrb[0].mxu0
  %v507 = vpop.f32.mrb[0].mxu0
  %v508 = vadd.f32 %v459, %v507
  %v509 = vpop.f32.mrb[0].mxu0
  %510 = vmatprep.mubr.bf16.mxu0 0
  %511 = vmatmul.mubr.bf16.gmra.mrb[0].mxu0 %v370
  %v512 = vpop.f32.mrb[0].mxu0
  %v513 = vadd.f32 %v464, %v512
  %v514 = vpop.f32.mrb[0].mxu0
  %v515 = vpop.f32.mrb[0].mxu0
  %v516 = vadd.f32 %v467, %v515
  %v517 = vpop.f32.mrb[0].mxu0
  %518 = vdwg.mxu0
  %v519 = vpack.c.bf16 %v508, %v505
  %v520 = vpack.c.bf16 %v516, %v513
  %v523 = vunpack.c.l.b16 %v519
  %v524 = vunpack.c.h.b16 %v519
  %v525 = vunpack.c.l.b16 %v520
  %v526 = vunpack.c.h.b16 %v520
  %v527 = vpack.c.b16 %v523, %v523
  %v528 = vpack.c.b16 %v524, %v524
  %v529 = vpack.c.b16 %v525, %v525
  %v530 = vpack.c.b16 %v526, %v526
  %535 = vst [vmem:[%s2] sm:$0xf] %v527
  %536 = vst [vmem:[%s2 + $0x4] sm:$0xf] %v528
  %537 = vst [vmem:[%s2 + $0x8] sm:$0xf] %v529
  %538 = vst [vmem:[%s2 + $0xc] sm:$0xf] %v530
  %v539 = vadd.f32 %v505, %v508
  %v540 = vadd.f32 %v539, %v513
  %v541 = vadd.f32 %v540, %v516
  %v542 = vrot.slane %v541, 4
  %v543 = vadd.f32 %v541, %v542
  %v544 = vrot.slane %v543, 2
  %v545 = vadd.f32 %v543, %v544
  %v546 = vrot.slane %v545, 1
  %v547 = vadd.f32 %v545, %v546
  %v548 = vmul.f32 %v505, %v505
  %v549 = vmul.f32 %v508, %v508
  %v550 = vmul.f32 %v513, %v513
  %v551 = vmul.f32 %v516, %v516
  %v552 = vadd.f32 %v548, %v549
  %v553 = vadd.f32 %v552, %v550
  %v554 = vadd.f32 %v553, %v551
  %v555 = vrot.slane %v554, 4
  %v556 = vadd.f32 %v554, %v555
  %v557 = vrot.slane %v556, 2
  %v558 = vadd.f32 %v556, %v557
  %v559 = vrot.slane %v558, 1
  %v560 = vadd.f32 %v558, %v559
  %561 = vst [vmem:[%s3] sm:$0xff] %v547
  %562 = vst [vmem:[%s4] sm:$0xff] %v560
  // Predicated region
  $region10: #{generator_forward.11} parent=0 // pred_check
    _
  $region11: #{generator_forward.11} parent=0 // pred_check_branch
    %564 = sbr.rel (0) target = $region13
  $region12: #{generator_forward.11} parent=0 // pred_region
    _
  $region13: #{generator_forward.11} parent=0 // pred_fallthru
    _
  // Predicated region
  $region14: #{generator_forward.11} parent=0 // pred_check
    _
  $region15: #{generator_forward.11} parent=0 // pred_check_branch
    %566 = sbr.rel (0) target = $region17
  $region16: #{generator_forward.11} parent=0 // pred_region
    _
  $region17: #{generator_forward.11} parent=0 // pred_fallthru
    _
  // Predicated region
  $region18: #{generator_forward.11} parent=0 // pred_check
    _
  $region19: #{generator_forward.11} parent=0 // pred_check_branch
    %568 = sbr.rel (0) target = $region21
  $region20: #{generator_forward.11} parent=0 // pred_region
    _
  $region21: #{generator_forward.11} parent=0 // pred_fallthru
    _
  // Predicated region
  $region22: #{generator_forward.11} parent=0 // pred_check
    _
  $region23: #{generator_forward.11} parent=0 // pred_check_branch
    %570 = sbr.rel (0) target = $region25
  $region24: #{generator_forward.11} parent=0 // pred_region
    _
  $region25: #{generator_forward.11} parent=0 // pred_fallthru
    _
  // Predicated region
  $region26: #{generator_forward.11} parent=0 // pred_check
    _
  $region27: #{generator_forward.11} parent=0 // pred_check_branch
    %572 = sbr.rel (0) target = $region29
  $region28: #{generator_forward.11} parent=0 // pred_region
    _
  $region29: #{generator_forward.11} parent=0 // pred_fallthru
    _
  // Predicated region
  $region30: #{generator_forward.11} parent=0 // pred_check
    _
  $region31: #{generator_forward.11} parent=0 // pred_check_branch
    %574 = sbr.rel (0) target = $region33
  $region32: #{generator_forward.11} parent=0 // pred_region
    _
  $region33: #{generator_forward.11} parent=0 // pred_fallthru
    _

// kernel: tile.104
$region0: #{tile.104}
  #allocation0 [shape = 's32[1]{0}', space=sflag, size = 0x4, scoped, tag = 'scoped memory for tile.104']
  %s0 = inlined_call_operand.vmem [shape: f32[16], index: 0, kind: input, shape index: {}]
  %s1 = inlined_call_operand.vmem [shape: f32[4,16], index: 1, kind: output, shape index: {}]
  // Predicated region
  $region2: #{tile.104} parent=0 // pred_check
    _
  $region3: #{tile.104} parent=0 // pred_check_branch
    %3 = sbr.rel (0) target = $region5
  $region4: #{tile.104} parent=0 // pred_region
    _
  $region5: #{tile.104} parent=0 // pred_fallthru
    _
  %v4 = vld [vmem:[%s0] ss:$0 sm:$0xff]
  %5 = vst [vmem:[%s1] sm:$0xf] %v4

// kernel: generator_forward.13
$region0: #{generator_forward.13}
  #allocation0 [shape = 'u32[]', space=smem, size = 0x4, offset = 0x4, fixed_abs, tag = 'smem constant byte address 0x4 - core index']
  #allocation1 [shape = 'u32[144,128]{1,0:T(1,128)}', space=vmem, size = 0x12000, scoped, tag = 'internal scratch']
  %s0 = inlined_call_operand.vmem [shape: bf16[128,288], index: 0, kind: input, shape index: {}]
  %s1 = inlined_call_operand.vmem [shape: bf16[288,64], index: 1, kind: input, shape index: {}]
  %s2 = inlined_call_operand.vmem [shape: bf16[128,64], index: 2, kind: output, shape index: {0}]
  %s3 = inlined_call_operand.vmem [shape: f32[8,64], index: 3, kind: output, shape index: {1}]
  %s4 = inlined_call_operand.vmem [shape: f32[8,64], index: 4, kind: output, shape index: {2}]
  %5 = xla_tuple %s2, %s3, %s4
  %s6 = sld [smem:[#allocation0]]
  $region34: #{generator_forward.13} parent=0
    _
  %s8 = ssub.s32 1, %s6
  %s9 = scalar_select 0, %s8, %s6
  // Predicated region
  $region2: #{generator_forward.13} parent=0 // pred_check
    _
  $region3: #{generator_forward.13} parent=0 // pred_check_branch
    %11 = sbr.rel (0) target = $region5
  $region4: #{generator_forward.13} parent=0 // pred_region
    _
  $region5: #{generator_forward.13} parent=0 // pred_fallthru
    _
  // Predicated region
  $region6: #{generator_forward.13} parent=0 // pred_check
    _
  $region7: #{generator_forward.13} parent=0 // pred_check_branch
    %13 = sbr.rel (0) target = $region9
  $region8: #{generator_forward.13} parent=0 // pred_region
    _
  $region9: #{generator_forward.13} parent=0 // pred_fallthru
    _
  %v15 = vld [vmem:[%s0] sm:$0xff]
  %v16 = vld [vmem:[%s0 + $0x8] sm:$0xf]
  %v17 = vld [vmem:[%s0 + $0xc] sm:$0xff]
  %v18 = vld [vmem:[%s0 + $0x14] sm:$0xf]
  %v19 = vld [vmem:[%s0 + $0x18] sm:$0xff]
  %v20 = vld [vmem:[%s0 + $0x20] sm:$0xf]
  %v21 = vld [vmem:[%s0 + $0x24] sm:$0xff]
  %v22 = vld [vmem:[%s0 + $0x2c] sm:$0xf]
  %v23 = vld [vmem:[%s0 + $0x30] sm:$0xff]
  %v24 = vld [vmem:[%s0 + $0x38] sm:$0xf]
  %v25 = vld [vmem:[%s0 + $0x3c] sm:$0xff]
  %v26 = vld [vmem:[%s0 + $0x44] sm:$0xf]
  %v27 = vld [vmem:[%s0 + $0x48] sm:$0xff]
  %v28 = vld [vmem:[%s0 + $0x50] sm:$0xf]
  %v29 = vld [vmem:[%s0 + $0x54] sm:$0xff]
  %v30 = vld [vmem:[%s0 + $0x5c] sm:$0xf]
  %v31 = vld [vmem:[%s0 + $0x60] sm:$0xff]
  %v32 = vld [vmem:[%s0 + $0x68] sm:$0xf]
  %v33 = vld [vmem:[%s0 + $0x6c] sm:$0xff]
  %v34 = vld [vmem:[%s0 + $0x74] sm:$0xf]
  %v35 = vld [vmem:[%s0 + $0x78] sm:$0xff]
  %v36 = vld [vmem:[%s0 + $0x80] sm:$0xf]
  %v37 = vld [vmem:[%s0 + $0x84] sm:$0xff]
  %v38 = vld [vmem:[%s0 + $0x8c] sm:$0xf]
  %v39 = vld [vmem:[%s0 + $0x90] sm:$0xff]
  %v40 = vld [vmem:[%s0 + $0x98] sm:$0xf]
  %v41 = vld [vmem:[%s0 + $0x9c] sm:$0xff]
  %v42 = vld [vmem:[%s0 + $0xa4] sm:$0xf]
  %v43 = vld [vmem:[%s0 + $0xa8] sm:$0xff]
  %v44 = vld [vmem:[%s0 + $0xb0] sm:$0xf]
  %v45 = vld [vmem:[%s0 + $0xb4] sm:$0xff]
  %v46 = vld [vmem:[%s0 + $0xbc] sm:$0xf]
  %v47 = vld [vmem:[%s1] sm:$0xf]
  %v48 = vld [vmem:[%s1 + $0x4] sm:$0xf]
  %v49 = vld [vmem:[%s1 + $0x8] sm:$0xf]
  %v50 = vld [vmem:[%s1 + $0xc] sm:$0xf]
  %v51 = vld [vmem:[%s1 + $0x10] sm:$0xf]
  %v52 = vld [vmem:[%s1 + $0x14] sm:$0xf]
  %v53 = vld [vmem:[%s1 + $0x18] sm:$0xf]
  %v54 = vld [vmem:[%s1 + $0x1c] sm:$0xf]
  %v55 = vld [vmem:[%s1 + $0x20] sm:$0xf]
  %v56 = vld [vmem:[%s1 + $0x24] sm:$0xf]
  %v57 = vld [vmem:[%s1 + $0x28] sm:$0xf]
  %v58 = vld [vmem:[%s1 + $0x2c] sm:$0xf]
  %v59 = vld [vmem:[%s1 + $0x30] sm:$0xf]
  %v60 = vld [vmem:[%s1 + $0x34] sm:$0xf]
  %v61 = vld [vmem:[%s1 + $0x38] sm:$0xf]
  %v62 = vld [vmem:[%s1 + $0x3c] sm:$0xf]
  %v63 = vld [vmem:[%s1 + $0x40] sm:$0xf]
  %v64 = vld [vmem:[%s1 + $0x44] sm:$0xf]
  %v65 = vld [vmem:[%s1 + $0x48] sm:$0xf]
  %v66 = vld [vmem:[%s1 + $0x4c] sm:$0xf]
  %v67 = vld [vmem:[%s1 + $0x50] sm:$0xf]
  %v68 = vld [vmem:[%s1 + $0x54] sm:$0xf]
  %v69 = vld [vmem:[%s1 + $0x58] sm:$0xf]
  %v70 = vld [vmem:[%s1 + $0x5c] sm:$0xf]
  %v71 = vld [vmem:[%s1 + $0x60] sm:$0xf]
  %v72 = vld [vmem:[%s1 + $0x64] sm:$0xf]
  %v73 = vld [vmem:[%s1 + $0x68] sm:$0xf]
  %v74 = vld [vmem:[%s1 + $0x6c] sm:$0xf]
  %v75 = vld [vmem:[%s1 + $0x70] sm:$0xf]
  %v76 = vld [vmem:[%s1 + $0x74] sm:$0xf]
  %v77 = vld [vmem:[%s1 + $0x78] sm:$0xf]
  %v78 = vld [vmem:[%s1 + $0x7c] sm:$0xf]
  %v79 = vld [vmem:[%s1 + $0x80] sm:$0xf]
  %v80 = vld [vmem:[%s1 + $0x84] sm:$0xf]
  %v81 = vld [vmem:[%s1 + $0x88] sm:$0xf]
  %v82 = vld [vmem:[%s1 + $0x8c] sm:$0xf]
  %v115 = vunpack.c.l.b16 %v15
  %v116 = vunpack.c.h.b16 %v15
  %v117 = vunpack.c.l.b16 %v16
  %v118 = vunpack.c.l.b16 %v17
  %v119 = vunpack.c.h.b16 %v17
  %v120 = vunpack.c.l.b16 %v18
  %v121 = vunpack.c.l.b16 %v19
  %v122 = vunpack.c.h.b16 %v19
  %v123 = vunpack.c.l.b16 %v20
  %v124 = vunpack.c.l.b16 %v21
  %v125 = vunpack.c.h.b16 %v21
  %v126 = vunpack.c.l.b16 %v22
  %v127 = vunpack.c.l.b16 %v23
  %v128 = vunpack.c.h.b16 %v23
  %v129 = vunpack.c.l.b16 %v24
  %v130 = vunpack.c.l.b16 %v25
  %v131 = vunpack.c.h.b16 %v25
  %v132 = vunpack.c.l.b16 %v26
  %v133 = vunpack.c.l.b16 %v27
  %v134 = vunpack.c.h.b16 %v27
  %v135 = vunpack.c.l.b16 %v28
  %v136 = vunpack.c.l.b16 %v29
  %v137 = vunpack.c.h.b16 %v29
  %v138 = vunpack.c.l.b16 %v30
  %v139 = vunpack.c.l.b16 %v31
  %v140 = vunpack.c.h.b16 %v31
  %v141 = vunpack.c.l.b16 %v32
  %v142 = vunpack.c.l.b16 %v33
  %v143 = vunpack.c.h.b16 %v33
  %v144 = vunpack.c.l.b16 %v34
  %v145 = vunpack.c.l.b16 %v35
  %v146 = vunpack.c.h.b16 %v35
  %v147 = vunpack.c.l.b16 %v36
  %v148 = vunpack.c.l.b16 %v37
  %v149 = vunpack.c.h.b16 %v37
  %v150 = vunpack.c.l.b16 %v38
  %v151 = vunpack.c.l.b16 %v39
  %v152 = vunpack.c.h.b16 %v39
  %v153 = vunpack.c.l.b16 %v40
  %v154 = vunpack.c.l.b16 %v41
  %v155 = vunpack.c.h.b16 %v41
  %v156 = vunpack.c.l.b16 %v42
  %v157 = vunpack.c.l.b16 %v43
  %v158 = vunpack.c.h.b16 %v43
  %v159 = vunpack.c.l.b16 %v44
  %v160 = vunpack.c.l.b16 %v45
  %v161 = vunpack.c.h.b16 %v45
  %v162 = vunpack.c.l.b16 %v46
  %v163 = vpack.c.b16 %v118, %v115
  %v164 = vpack.c.b16 %v119, %v116
  %v165 = vpack.c.b16 %v120, %v117
  %v166 = vpack.c.b16 %v124, %v121
  %v167 = vpack.c.b16 %v125, %v122
  %v168 = vpack.c.b16 %v126, %v123
  %v169 = vpack.c.b16 %v130, %v127
  %v170 = vpack.c.b16 %v131, %v128
  %v171 = vpack.c.b16 %v132, %v129
  %v172 = vpack.c.b16 %v136, %v133
  %v173 = vpack.c.b16 %v137, %v134
  %v174 = vpack.c.b16 %v138, %v135
  %v175 = vpack.c.b16 %v142, %v139
  %v176 = vpack.c.b16 %v143, %v140
  %v177 = vpack.c.b16 %v144, %v141
  %v178 = vpack.c.b16 %v148, %v145
  %v179 = vpack.c.b16 %v149, %v146
  %v180 = vpack.c.b16 %v150, %v147
  %v181 = vpack.c.b16 %v154, %v151
  %v182 = vpack.c.b16 %v155, %v152
  %v183 = vpack.c.b16 %v156, %v153
  %v184 = vpack.c.b16 %v160, %v157
  %v185 = vpack.c.b16 %v161, %v158
  %v186 = vpack.c.b16 %v162, %v159
  %v239 = vunpack.c.l.b16 %v47
  %v240 = vunpack.c.l.b16 %v48
  %v241 = vunpack.c.l.b16 %v49
  %v242 = vunpack.c.l.b16 %v50
  %v243 = vunpack.c.l.b16 %v51
  %v244 = vunpack.c.l.b16 %v52
  %v245 = vunpack.c.l.b16 %v53
  %v246 = vunpack.c.l.b16 %v54
  %v247 = vunpack.c.l.b16 %v55
  %v248 = vunpack.c.l.b16 %v56
  %v249 = vunpack.c.l.b16 %v57
  %v250 = vunpack.c.l.b16 %v58
  %v251 = vunpack.c.l.b16 %v59
  %v252 = vunpack.c.l.b16 %v60
  %v253 = vunpack.c.l.b16 %v61
  %v254 = vunpack.c.l.b16 %v62
  %v255 = vunpack.c.l.b16 %v63
  %v256 = vunpack.c.l.b16 %v64
  %v257 = vunpack.c.l.b16 %v65
  %v258 = vunpack.c.l.b16 %v66
  %v259 = vunpack.c.l.b16 %v67
  %v260 = vunpack.c.l.b16 %v68
  %v261 = vunpack.c.l.b16 %v69
  %v262 = vunpack.c.l.b16 %v70
  %v263 = vunpack.c.l.b16 %v71
  %v264 = vunpack.c.l.b16 %v72
  %v265 = vunpack.c.l.b16 %v73
  %v266 = vunpack.c.l.b16 %v74
  %v267 = vunpack.c.l.b16 %v75
  %v268 = vunpack.c.l.b16 %v76
  %v269 = vunpack.c.l.b16 %v77
  %v270 = vunpack.c.l.b16 %v78
  %v271 = vunpack.c.l.b16 %v79
  %v272 = vunpack.c.l.b16 %v80
  %v273 = vunpack.c.l.b16 %v81
  %v274 = vunpack.c.l.b16 %v82
  %v275 = vpack.c.b16 %v240, %v239
  %v276 = vpack.c.b16 %v242, %v241
  %v277 = vpack.c.b16 %v244, %v243
  %v278 = vpack.c.b16 %v246, %v245
  %v279 = vpack.c.b16 %v248, %v247
  %v280 = vpack.c.b16 %v250, %v249
  %v281 = vpack.c.b16 %v252, %v251
  %v282 = vpack.c.b16 %v254, %v253
  %v283 = vpack.c.b16 %v256, %v255
  %v284 = vpack.c.b16 %v258, %v257
  %v285 = vpack.c.b16 %v260, %v259
  %v286 = vpack.c.b16 %v262, %v261
  %v287 = vpack.c.b16 %v264, %v263
  %v288 = vpack.c.b16 %v266, %v265
  %v289 = vpack.c.b16 %v268, %v267
  %v290 = vpack.c.b16 %v270, %v269
  %v291 = vpack.c.b16 %v272, %v271
  %v292 = vpack.c.b16 %v274, %v273
  %vm311 = vcmask 261120
  %v313 = vsel %vm311, %v165, 0
  %v316 = vsel %vm311, %v168, 0
  %v319 = vsel %vm311, %v171, 0
  %v322 = vsel %vm311, %v174, 0
  %v325 = vsel %vm311, %v177, 0
  %v328 = vsel %vm311, %v180, 0
  %v331 = vsel %vm311, %v183, 0
  %v334 = vsel %vm311, %v186, 0
  %336 = vmatprep.subr.bf16.mxu0 0
  %337 = vmatpush1.bf16.msra.mxu0 %v275
  %338 = vmatprep.subr.bf16.mxu0 0
  %339 = vmatpush1.bf16.msra.mxu0 %v276
  %340 = vmatprep.subr.bf16.mxu0 0
  %341 = vmatpush1.bf16.msra.mxu0 %v277
  %342 = vmatprep.subr.bf16.mxu0 0
  %343 = vmatpush1.bf16.msra.mxu0 %v278
  %344 = vmatprep.subr.bf16.mxu0 0
  %345 = vmatpush1.bf16.msra.mxu0 %v279
  %346 = vmatprep.subr.bf16.mxu0 0
  %347 = vmatpush1.bf16.msra.mxu0 %v280
  %348 = vmatprep.subr.bf16.mxu0 0
  %349 = vmatpush1.bf16.msra.mxu0 %v281
  %350 = vmatprep.subr.bf16.mxu0 0
  %351 = vmatpush1.bf16.msra.mxu0 %v282
  %352 = vmatprep.subr.bf16.mxu0 0
  %353 = vmatpush1.bf16.msra.mxu0 %v283
  %354 = vmatprep.subr.bf16.mxu0 0
  %355 = vmatpush1.bf16.msra.mxu0 %v284
  %356 = vmatprep.subr.bf16.mxu0 0
  %357 = vmatpush1.bf16.msra.mxu0 %v285
  %358 = vmatprep.subr.bf16.mxu0 0
  %359 = vmatpush1.bf16.msra.mxu0 %v286
  %360 = vmatprep.subr.bf16.mxu0 0
  %361 = vmatpush1.bf16.msra.mxu0 %v287
  %362 = vmatprep.subr.bf16.mxu0 0
  %363 = vmatpush1.bf16.msra.mxu0 %v288
  %364 = vmatprep.subr.bf16.mxu0 0
  %365 = vmatpush1.bf16.msra.mxu0 %v289
  %366 = vmatprep.subr.bf16.mxu0 0
  %367 = vmatpush1.bf16.msra.mxu0 %v290
  %368 = vmatprep.mubr.bf16.mxu0 %v164
  %369 = vmatmul.mubr.bf16.gmra.mrb[0].mxu0 %v163
  %v370 = vpop.f32.mrb[0].mxu0
  %v371 = vadd.f32 0.0, %v370
  %v372 = vpop.f32.mrb[0].mxu0
  %v373 = vpop.f32.mrb[0].mxu0
  %v374 = vadd.f32 0.0, %v373
  %v375 = vpop.f32.mrb[0].mxu0
  %376 = vmatprep.mubr.bf16.mxu0 %v167
  %377 = vmatmul.mubr.bf16.gmra.mrb[0].mxu0 %v166
  %v378 = vpop.f32.mrb[0].mxu0
  %v379 = vadd.f32 0.0, %v378
  %v380 = vpop.f32.mrb[0].mxu0
  %v381 = vpop.f32.mrb[0].mxu0
  %v382 = vadd.f32 0.0, %v381
  %v383 = vpop.f32.mrb[0].mxu0
  %384 = vmatprep.mubr.bf16.mxu0 %v170
  %385 = vmatmul.mubr.bf16.gmra.mrb[0].mxu0 %v169
  %v386 = vpop.f32.mrb[0].mxu0
  %v387 = vadd.f32 0.0, %v386
  %v388 = vpop.f32.mrb[0].mxu0
  %v389 = vpop.f32.mrb[0].mxu0
  %v390 = vadd.f32 0.0, %v389
  %v391 = vpop.f32.mrb[0].mxu0
  %392 = vmatprep.mubr.bf16.mxu0 %v173
  %393 = vmatmul.mubr.bf16.gmra.mrb[0].mxu0 %v172
  %v394 = vpop.f32.mrb[0].mxu0
  %v395 = vadd.f32 0.0, %v394
  %v396 = vpop.f32.mrb[0].mxu0
  %v397 = vpop.f32.mrb[0].mxu0
  %v398 = vadd.f32 0.0, %v397
  %v399 = vpop.f32.mrb[0].mxu0
  %400 = vmatprep.mubr.bf16.mxu0 %v176
  %401 = vmatmul.mubr.bf16.gmra.mrb[0].mxu0 %v175
  %v402 = vpop.f32.mrb[0].mxu0
  %v403 = vadd.f32 0.0, %v402
  %v404 = vpop.f32.mrb[0].mxu0
  %v405 = vpop.f32.mrb[0].mxu0
  %v406 = vadd.f32 0.0, %v405
  %v407 = vpop.f32.mrb[0].mxu0
  %408 = vmatprep.mubr.bf16.mxu0 %v179
  %409 = vmatmul.mubr.bf16.gmra.mrb[0].mxu0 %v178
  %v410 = vpop.f32.mrb[0].mxu0
  %v411 = vadd.f32 0.0, %v410
  %v412 = vpop.f32.mrb[0].mxu0
  %v413 = vpop.f32.mrb[0].mxu0
  %v414 = vadd.f32 0.0, %v413
  %v415 = vpop.f32.mrb[0].mxu0
  %416 = vmatprep.mubr.bf16.mxu0 %v182
  %417 = vmatmul.mubr.bf16.gmra.mrb[0].mxu0 %v181
  %v418 = vpop.f32.mrb[0].mxu0
  %v419 = vadd.f32 0.0, %v418
  %v420 = vpop.f32.mrb[0].mxu0
  %v421 = vpop.f32.mrb[0].mxu0
  %v422 = vadd.f32 0.0, %v421
  %v423 = vpop.f32.mrb[0].mxu0
  %424 = vmatprep.mubr.bf16.mxu0 %v185
  %425 = vmatmul.mubr.bf16.gmra.mrb[0].mxu0 %v184
  %v426 = vpop.f32.mrb[0].mxu0
  %v427 = vadd.f32 0.0, %v426
  %v428 = vpop.f32.mrb[0].mxu0
  %v429 = vpop.f32.mrb[0].mxu0
  %v430 = vadd.f32 0.0, %v429
  %v431 = vpop.f32.mrb[0].mxu0
  %432 = vdwg.mxu0
  %433 = vmatprep.subr.bf16.mxu0 0
  %434 = vmatpush1.bf16.msra.mxu0 %v291
  %435 = vmatprep.subr.bf16.mxu0 0
  %436 = vmatpush1.bf16.msra.mxu0 %v292
  %437 = vmatprep.subr.bf16.mxu0 0
  %438 = vmatpush1.bf16.msra.mxu0 0
  %439 = vmatprep.subr.bf16.mxu0 0
  %440 = vmatpush1.bf16.msra.mxu0 0
  %441 = vmatprep.subr.bf16.mxu0 0
  %442 = vmatpush1.bf16.msra.mxu0 0
  %443 = vmatprep.subr.bf16.mxu0 0
  %444 = vmatpush1.bf16.msra.mxu0 0
  %445 = vmatprep.subr.bf16.mxu0 0
  %446 = vmatpush1.bf16.msra.mxu0 0
  %447 = vmatprep.subr.bf16.mxu0 0
  %448 = vmatpush1.bf16.msra.mxu0 0
  %449 = vmatprep.subr.bf16.mxu0 0
  %450 = vmatpush1.bf16.msra.mxu0 0
  %451 = vmatprep.subr.bf16.mxu0 0
  %452 = vmatpush1.bf16.msra.mxu0 0
  %453 = vmatprep.subr.bf16.mxu0 0
  %454 = vmatpush1.bf16.msra.mxu0 0
  %455 = vmatprep.subr.bf16.mxu0 0
  %456 = vmatpush1.bf16.msra.mxu0 0
  %457 = vmatprep.subr.bf16.mxu0 0
  %458 = vmatpush1.bf16.msra.mxu0 0
  %459 = vmatprep.subr.bf16.mxu0 0
  %460 = vmatpush1.bf16.msra.mxu0 0
  %461 = vmatprep.subr.bf16.mxu0 0
  %462 = vmatpush1.bf16.msra.mxu0 0
  %463 = vmatprep.subr.bf16.mxu0 0
  %464 = vmatpush1.bf16.msra.mxu0 0
  %465 = vmatprep.mubr.bf16.mxu0 0
  %466 = vmatmul.mubr.bf16.gmra.mrb[0].mxu0 %v313
  %v467 = vpop.f32.mrb[0].mxu0
  %v468 = vadd.f32 %v371, %v467
  %v469 = vpop.f32.mrb[0].mxu0
  %v470 = vpop.f32.mrb[0].mxu0
  %v471 = vadd.f32 %v374, %v470
  %v472 = vpop.f32.mrb[0].mxu0
  %473 = vmatprep.mubr.bf16.mxu0 0
  %474 = vmatmul.mubr.bf16.gmra.mrb[0].mxu0 %v316
  %v475 = vpop.f32.mrb[0].mxu0
  %v476 = vadd.f32 %v379, %v475
  %v477 = vpop.f32.mrb[0].mxu0
  %v478 = vpop.f32.mrb[0].mxu0
  %v479 = vadd.f32 %v382, %v478
  %v480 = vpop.f32.mrb[0].mxu0
  %481 = vmatprep.mubr.bf16.mxu0 0
  %482 = vmatmul.mubr.bf16.gmra.mrb[0].mxu0 %v319
  %v483 = vpop.f32.mrb[0].mxu0
  %v484 = vadd.f32 %v387, %v483
  %v485 = vpop.f32.mrb[0].mxu0
  %v486 = vpop.f32.mrb[0].mxu0
  %v487 = vadd.f32 %v390, %v486
  %v488 = vpop.f32.mrb[0].mxu0
  %489 = vmatprep.mubr.bf16.mxu0 0
  %490 = vmatmul.mubr.bf16.gmra.mrb[0].mxu0 %v322
  %v491 = vpop.f32.mrb[0].mxu0
  %v492 = vadd.f32 %v395, %v491
  %v493 = vpop.f32.mrb[0].mxu0
  %v494 = vpop.f32.mrb[0].mxu0
  %v495 = vadd.f32 %v398, %v494
  %v496 = vpop.f32.mrb[0].mxu0
  %497 = vmatprep.mubr.bf16.mxu0 0
  %498 = vmatmul.mubr.bf16.gmra.mrb[0].mxu0 %v325
  %v499 = vpop.f32.mrb[0].mxu0
  %v500 = vadd.f32 %v403, %v499
  %v501 = vpop.f32.mrb[0].mxu0
  %v502 = vpop.f32.mrb[0].mxu0
  %v503 = vadd.f32 %v406, %v502
  %v504 = vpop.f32.mrb[0].mxu0
  %505 = vmatprep.mubr.bf16.mxu0 0
  %506 = vmatmul.mubr.bf16.gmra.mrb[0].mxu0 %v328
  %v507 = vpop.f32.mrb[0].mxu0
  %v508 = vadd.f32 %v411, %v507
  %v509 = vpop.f32.mrb[0].mxu0
  %v510 = vpop.f32.mrb[0].mxu0
  %v511 = vadd.f32 %v414, %v510
  %v512 = vpop.f32.mrb[0].mxu0
  %513 = vmatprep.mubr.bf16.mxu0 0
  %514 = vmatmul.mubr.bf16.gmra.mrb[0].mxu0 %v331
  %v515 = vpop.f32.mrb[0].mxu0
  %v516 = vadd.f32 %v419, %v515
  %v517 = vpop.f32.mrb[0].mxu0
  %v518 = vpop.f32.mrb[0].mxu0
  %v519 = vadd.f32 %v422, %v518
  %v520 = vpop.f32.mrb[0].mxu0
  %521 = vmatprep.mubr.bf16.mxu0 0
  %522 = vmatmul.mubr.bf16.gmra.mrb[0].mxu0 %v334
  %v523 = vpop.f32.mrb[0].mxu0
  %v524 = vadd.f32 %v427, %v523
  %v525 = vpop.f32.mrb[0].mxu0
  %v526 = vpop.f32.mrb[0].mxu0
  %v527 = vadd.f32 %v430, %v526
  %v528 = vpop.f32.mrb[0].mxu0
  %529 = vdwg.mxu0
  %v530 = vpack.c.bf16 %v471, %v468
  %v531 = vpack.c.bf16 %v479, %v476
  %v532 = vpack.c.bf16 %v487, %v484
  %v533 = vpack.c.bf16 %v495, %v492
  %v534 = vpack.c.bf16 %v503, %v500
  %v535 = vpack.c.bf16 %v511, %v508
  %v536 = vpack.c.bf16 %v519, %v516
  %v537 = vpack.c.bf16 %v527, %v524
  %v546 = vunpack.c.l.b16 %v530
  %v547 = vunpack.c.h.b16 %v530
  %v548 = vunpack.c.l.b16 %v531
  %v549 = vunpack.c.h.b16 %v531
  %v550 = vunpack.c.l.b16 %v532
  %v551 = vunpack.c.h.b16 %v532
  %v552 = vunpack.c.l.b16 %v533
  %v553 = vunpack.c.h.b16 %v533
  %v554 = vunpack.c.l.b16 %v534
  %v555 = vunpack.c.h.b16 %v534
  %v556 = vunpack.c.l.b16 %v535
  %v557 = vunpack.c.h.b16 %v535
  %v558 = vunpack.c.l.b16 %v536
  %v559 = vunpack.c.h.b16 %v536
  %v560 = vunpack.c.l.b16 %v537
  %v561 = vunpack.c.h.b16 %v537
  %v562 = vpack.c.b16 %v546, %v546
  %v563 = vpack.c.b16 %v547, %v547
  %v564 = vpack.c.b16 %v548, %v548
  %v565 = vpack.c.b16 %v549, %v549
  %v566 = vpack.c.b16 %v550, %v550
  %v567 = vpack.c.b16 %v551, %v551
  %v568 = vpack.c.b16 %v552, %v552
  %v569 = vpack.c.b16 %v553, %v553
  %v570 = vpack.c.b16 %v554, %v554
  %v571 = vpack.c.b16 %v555, %v555
  %v572 = vpack.c.b16 %v556, %v556
  %v573 = vpack.c.b16 %v557, %v557
  %v574 = vpack.c.b16 %v558, %v558
  %v575 = vpack.c.b16 %v559, %v559
  %v576 = vpack.c.b16 %v560, %v560
  %v577 = vpack.c.b16 %v561, %v561
  %vm594 = vcmask 519168
  %595 = vst.msk [vmem:[%s2] sm:$0xf] %vm594, %v562
  %596 = vst.msk [vmem:[%s2 + $0x4] sm:$0xf] %vm594, %v563
  %597 = vst.msk [vmem:[%s2 + $0x8] sm:$0xf] %vm594, %v564
  %598 = vst.msk [vmem:[%s2 + $0xc] sm:$0xf] %vm594, %v565
  %599 = vst.msk [vmem:[%s2 + $0x10] sm:$0xf] %vm594, %v566
  %600 = vst.msk [vmem:[%s2 + $0x14] sm:$0xf] %vm594, %v567
  %601 = vst.msk [vmem:[%s2 + $0x18] sm:$0xf] %vm594, %v568
  %602 = vst.msk [vmem:[%s2 + $0x1c] sm:$0xf] %vm594, %v569
  %603 = vst.msk [vmem:[%s2 + $0x20] sm:$0xf] %vm594, %v570
  %604 = vst.msk [vmem:[%s2 + $0x24] sm:$0xf] %vm594, %v571
  %605 = vst.msk [vmem:[%s2 + $0x28] sm:$0xf] %vm594, %v572
  %606 = vst.msk [vmem:[%s2 + $0x2c] sm:$0xf] %vm594, %v573
  %607 = vst.msk [vmem:[%s2 + $0x30] sm:$0xf] %vm594, %v574
  %608 = vst.msk [vmem:[%s2 + $0x34] sm:$0xf] %vm594, %v575
  %609 = vst.msk [vmem:[%s2 + $0x38] sm:$0xf] %vm594, %v576
  %610 = vst.msk [vmem:[%s2 + $0x3c] sm:$0xf] %vm594, %v577
  %vm611 = vcmask 523264
  %v612 = vsel %vm611, %v468, 0.0
  %v613 = vsel %vm611, %v471, 0.0
  %v614 = vadd.f32 %v612, %v613
  %v615 = vsel %vm611, %v476, 0.0
  %v616 = vadd.f32 %v614, %v615
  %v617 = vsel %vm611, %v479, 0.0
  %v618 = vadd.f32 %v616, %v617
  %v619 = vsel %vm611, %v484, 0.0
  %v620 = vadd.f32 %v618, %v619
  %v621 = vsel %vm611, %v487, 0.0
  %v622 = vadd.f32 %v620, %v621
  %v623 = vsel %vm611, %v492, 0.0
  %v624 = vadd.f32 %v622, %v623
  %v625 = vsel %vm611, %v495, 0.0
  %v626 = vadd.f32 %v624, %v625
  %v627 = vsel %vm611, %v500, 0.0
  %v628 = vadd.f32 %v626, %v627
  %v629 = vsel %vm611, %v503, 0.0
  %v630 = vadd.f32 %v628, %v629
  %v631 = vsel %vm611, %v508, 0.0
  %v632 = vadd.f32 %v630, %v631
  %v633 = vsel %vm611, %v511, 0.0
  %v634 = vadd.f32 %v632, %v633
  %v635 = vsel %vm611, %v516, 0.0
  %v636 = vadd.f32 %v634, %v635
  %v637 = vsel %vm611, %v519, 0.0
  %v638 = vadd.f32 %v636, %v637
  %v639 = vsel %vm611, %v524, 0.0
  %v640 = vadd.f32 %v638, %v639
  %v641 = vsel %vm611, %v527, 0.0
  %v642 = vadd.f32 %v640, %v641
  %v643 = vrot.slane %v642, 4
  %v644 = vadd.f32 %v642, %v643
  %v645 = vrot.slane %v644, 2
  %v646 = vadd.f32 %v644, %v645
  %v647 = vrot.slane %v646, 1
  %v648 = vadd.f32 %v646, %v647
  %v649 = vmul.f32 %v468, %v468
  %v650 = vmul.f32 %v471, %v471
  %v651 = vmul.f32 %v476, %v476
  %v652 = vmul.f32 %v479, %v479
  %v653 = vmul.f32 %v484, %v484
  %v654 = vmul.f32 %v487, %v487
  %v655 = vmul.f32 %v492, %v492
  %v656 = vmul.f32 %v495, %v495
  %v657 = vmul.f32 %v500, %v500
  %v658 = vmul.f32 %v503, %v503
  %v659 = vmul.f32 %v508, %v508
  %v660 = vmul.f32 %v511, %v511
  %v661 = vmul.f32 %v516, %v516
  %v662 = vmul.f32 %v519, %v519
  %v663 = vmul.f32 %v524, %v524
  %v664 = vmul.f32 %v527, %v527
  %v665 = vsel %vm611, %v649, 0.0
  %v666 = vsel %vm611, %v650, 0.0
  %v667 = vadd.f32 %v665, %v666
  %v668 = vsel %vm611, %v651, 0.0
  %v669 = vadd.f32 %v667, %v668
  %v670 = vsel %vm611, %v652, 0.0
  %v671 = vadd.f32 %v669, %v670
  %v672 = vsel %vm611, %v653, 0.0
  %v673 = vadd.f32 %v671, %v672
  %v674 = vsel %vm611, %v654, 0.0
  %v675 = vadd.f32 %v673, %v674
  %v676 = vsel %vm611, %v655, 0.0
  %v677 = vadd.f32 %v675, %v676
  %v678 = vsel %vm611, %v656, 0.0
  %v679 = vadd.f32 %v677, %v678
  %v680 = vsel %vm611, %v657, 0.0
  %v681 = vadd.f32 %v679, %v680
  %v682 = vsel %vm611, %v658, 0.0
  %v683 = vadd.f32 %v681, %v682
  %v684 = vsel %vm611, %v659, 0.0
  %v685 = vadd.f32 %v683, %v684
  %v686 = vsel %vm611, %v660, 0.0
  %v687 = vadd.f32 %v685, %v686
  %v688 = vsel %vm611, %v661, 0.0
  %v689 = vadd.f32 %v687, %v688
  %v690 = vsel %vm611, %v662, 0.0
  %v691 = vadd.f32 %v689, %v690
  %v692 = vsel %vm611, %v663, 0.0
  %v693 = vadd.f32 %v691, %v692
  %v694 = vsel %vm611, %v664, 0.0
  %v695 = vadd.f32 %v693, %v694
  %v696 = vrot.slane %v695, 4
  %v697 = vadd.f32 %v695, %v696
  %v698 = vrot.slane %v697, 2
  %v699 = vadd.f32 %v697, %v698
  %v700 = vrot.slane %v699, 1
  %v701 = vadd.f32 %v699, %v700
  %702 = vst.msk [vmem:[%s3] sm:$0xff] %vm611, %v648
  %703 = vst.msk [vmem:[%s4] sm:$0xff] %vm611, %v701
  // Predicated region
  $region10: #{generator_forward.13} parent=0 // pred_check
    _
  $region11: #{generator_forward.13} parent=0 // pred_check_branch
    %705 = sbr.rel (0) target = $region13
  $region12: #{generator_forward.13} parent=0 // pred_region
    _
  $region13: #{generator_forward.13} parent=0 // pred_fallthru
    _
  // Predicated region
  $region14: #{generator_forward.13} parent=0 // pred_check
    _
  $region15: #{generator_forward.13} parent=0 // pred_check_branch
    %707 = sbr.rel (0) target = $region17
  $region16: #{generator_forward.13} parent=0 // pred_region
    _
  $region17: #{generator_forward.13} parent=0 // pred_fallthru
    _
  // Predicated region
  $region18: #{generator_forward.13} parent=0 // pred_check
    _
  $region19: #{generator_forward.13} parent=0 // pred_check_branch
    %709 = sbr.rel (0) target = $region21
  $region20: #{generator_forward.13} parent=0 // pred_region
    _
  $region21: #{generator_forward.13} parent=0 // pred_fallthru
    _
  // Predicated region
  $region22: #{generator_forward.13} parent=0 // pred_check
    _
  $region23: #{generator_forward.13} parent=0 // pred_check_branch
    %711 = sbr.rel (0) target = $region25
  $region24: #{generator_forward.13} parent=0 // pred_region
    _
  $region25: #{generator_forward.13} parent=0 // pred_fallthru
    _
  // Predicated region
  $region26: #{generator_forward.13} parent=0 // pred_check
    _
  $region27: #{generator_forward.13} parent=0 // pred_check_branch
    %713 = sbr.rel (0) target = $region29
  $region28: #{generator_forward.13} parent=0 // pred_region
    _
  $region29: #{generator_forward.13} parent=0 // pred_fallthru
    _
  // Predicated region
  $region30: #{generator_forward.13} parent=0 // pred_check
    _
  $region31: #{generator_forward.13} parent=0 // pred_check_branch
    %715 = sbr.rel (0) target = $region33
  $region32: #{generator_forward.13} parent=0 // pred_region
    _
  $region33: #{generator_forward.13} parent=0 // pred_fallthru
    _

// kernel: tile.112
$region0: #{tile.112}
  %s0 = inlined_call_operand.vmem [shape: f32[4,16], index: 0, kind: input, shape index: {}]
  %s1 = inlined_call_operand.vmem [shape: f32[64], index: 1, kind: output, shape index: {}]
  $region1: #{tile.112} parent=0
    #allocation0 [shape = 'u8[4096]{0}', space=vmem, size = 0x1000, scoped, tag = 'scoped mem for output reshape']
    #allocation1 [shape = 'u8[4096]{0}', space=vmem, size = 0x1000, scoped, tag = 'scoped mem for input reshape']
    %s3 = sshllo.u32 0, 4
    %v4 = vld [vmem:[%s0] sm:%s3]
    %5 = vst [vmem:[#allocation1] sm:%s3] %v4
    %v6 = vld [vmem:[#allocation1] sm:$0x1]
    %vm7 = vcmask 130048
    %8 = vst.msk [vmem:[#allocation0] sm:$0x1] %vm7, %v6
    %s9 = scalar_lea.vmem [#allocation1], 3
    %v10 = vld [vmem:[%s9] sm:$0x1]
    %11 = vrot.lane.b32.xlu0 %v10, 48
    %v12 = vpop.permute.xlu0 %11
    %vm13 = vcmask 523648
    %14 = vst.msk [vmem:[#allocation0] sm:$0x1] %vm13, %v12
    %s15 = scalar_lea.vmem [#allocation1], 2
    %v16 = vld [vmem:[%s15] sm:$0x1]
    %17 = vrot.lane.b32.xlu0 %v16, 32
    %v18 = vpop.permute.xlu0 %17
    %vm19 = vcmask 392448
    %20 = vst.msk [vmem:[#allocation0] sm:$0x1] %vm19, %v18
    %s21 = scalar_lea.vmem [#allocation1], 1
    %v22 = vld [vmem:[%s21] sm:$0x1]
    %23 = vrot.lane.b32.xlu0 %v22, 16
    %v24 = vpop.permute.xlu0 %23
    %vm25 = vcmask 261248
    %26 = vst.msk [vmem:[#allocation0] sm:$0x1] %vm25, %v24
    %s28 = sshllo.u32 0, 1
    %v30 = vld [vmem:[#allocation0] sm:%s28]
    %s31 = sshllo.u32 0, 1
    %32 = vst [vmem:[%s1] sm:%s31] %v30

// kernel: tile.113
$region0: #{tile.113}
  #allocation0 [shape = 's32[1]{0}', space=sflag, size = 0x4, scoped, tag = 'scoped memory for tile.113']
  %s0 = inlined_call_operand.vmem [shape: f32[64], index: 0, kind: input, shape index: {}]
  %s1 = inlined_call_operand.vmem [shape: f32[4,64], index: 1, kind: output, shape index: {}]
  // Predicated region
  $region2: #{tile.113} parent=0 // pred_check
    _
  $region3: #{tile.113} parent=0 // pred_check_branch
    %3 = sbr.rel (0) target = $region5
  $region4: #{tile.113} parent=0 // pred_region
    _
  $region5: #{tile.113} parent=0 // pred_fallthru
    _
  %v4 = vld [vmem:[%s0] ss:$0 sm:$0xff]
  %5 = vst [vmem:[%s1] sm:$0xf] %v4

// kernel: tile.114
$region0: #{tile.114}
  %s0 = inlined_call_operand.vmem [shape: f32[4,64], index: 0, kind: input, shape index: {}]
  %s1 = inlined_call_operand.vmem [shape: f32[1,256], index: 1, kind: output, shape index: {}]
  $region1: #{tile.114} parent=0
    #allocation0 [shape = 'u8[8192]{0}', space=vmem, size = 0x2000, scoped, tag = 'scoped mem for output reshape']
    #allocation1 [shape = 'u8[4096]{0}', space=vmem, size = 0x1000, scoped, tag = 'scoped mem for input reshape']
    %s3 = sshllo.u32 0, 4
    %v4 = vld [vmem:[%s0] sm:%s3]
    %5 = vst [vmem:[#allocation1] sm:%s3] %v4
    %s6 = smov 3
    %v7 = vld [vmem:[#allocation1] ss:$2 sm:%s6]
    %vm8 = vcmask 523264
    %9 = vst.msk [vmem:[#allocation0] ss:$8 sm:$0x3] %vm8, %v7
    %s10 = scalar_lea.vmem [#allocation1], 1
    %s11 = smov 3
    %v12 = vld [vmem:[%s10] ss:$2 sm:%s11]
    %13 = vrot.lane.b32.xlu0 %v12, 64
    %v14 = vpop.permute.xlu0 %13
    %vm15 = vcmask 1048064
    %16 = vst.msk [vmem:[#allocation0] ss:$8 sm:$0x3] %vm15, %v14
    %s18 = sshllo.u32 0, 1
    %v20 = vld [vmem:[#allocation0] sm:%s18]
    %s21 = sshllo.u32 0, 1
    %22 = vst [vmem:[%s1] sm:%s21] %v20
    %s23 = scalar_lea.vmem [#allocation0], 8
    %v24 = vld [vmem:[%s23] sm:%s18]
    %s25 = sshllo.u32 0, 1
    %s26 = scalar_lea.vmem %s1, 1
    %27 = vst [vmem:[%s26] sm:%s25] %v24

// kernel: generator_forward.14
$region0: #{generator_forward.14}
  #allocation0 [shape = 'u32[]', space=smem, size = 0x4, offset = 0x4, fixed_abs, tag = 'smem constant byte address 0x4 - core index']
  #allocation1 [shape = 'u32[144,128]{1,0:T(1,128)}', space=vmem, size = 0x12000, scoped, tag = 'internal scratch']
  %s0 = inlined_call_operand.vmem [shape: bf16[32,256], index: 0, kind: input, shape index: {}]
  %s1 = inlined_call_operand.vmem [shape: f32[1,256], index: 1, kind: input, shape index: {}]
  %s2 = inlined_call_operand.vmem [shape: f32[1,256], index: 2, kind: input, shape index: {}]
  %s3 = inlined_call_operand.vmem [shape: bf16[32,256], index: 3, kind: output, shape index: {}]
  %s4 = sld [smem:[#allocation0]]
  $region22: #{generator_forward.14} parent=0
    _
  %s6 = ssub.s32 1, %s4
  %s7 = scalar_select 0, %s6, %s4
  // Predicated region
  $region2: #{generator_forward.14} parent=0 // pred_check
    _
  $region3: #{generator_forward.14} parent=0 // pred_check_branch
    %9 = sbr.rel (0) target = $region5
  $region4: #{generator_forward.14} parent=0 // pred_region
    _
  $region5: #{generator_forward.14} parent=0 // pred_fallthru
    _
  // Predicated region
  $region6: #{generator_forward.14} parent=0 // pred_check
    _
  $region7: #{generator_forward.14} parent=0 // pred_check_branch
    %11 = sbr.rel (0) target = $region9
  $region8: #{generator_forward.14} parent=0 // pred_region
    _
  $region9: #{generator_forward.14} parent=0 // pred_fallthru
    _
  // Predicated region
  $region10: #{generator_forward.14} parent=0 // pred_check
    _
  $region11: #{generator_forward.14} parent=0 // pred_check_branch
    %13 = sbr.rel (0) target = $region13
  $region12: #{generator_forward.14} parent=0 // pred_region
    _
  $region13: #{generator_forward.14} parent=0 // pred_fallthru
    _
  %v14 = vld [vmem:[%s0] sm:$0xff]
  %v15 = vld [vmem:[%s0 + $0x8] sm:$0xff]
  %v16 = vld [vmem:[%s0 + $0x10] sm:$0xff]
  %v17 = vld [vmem:[%s0 + $0x18] sm:$0xff]
  %v18 = vunpack.c.l.bf16 %v14
  %v19 = vunpack.c.h.bf16 %v14
  %v20 = vunpack.c.l.bf16 %v15
  %v21 = vunpack.c.h.bf16 %v15
  %v22 = vunpack.c.l.bf16 %v16
  %v23 = vunpack.c.h.bf16 %v16
  %v24 = vunpack.c.l.bf16 %v17
  %v25 = vunpack.c.h.bf16 %v17
  %v26 = vld [vmem:[%s1] sm:$0x3]
  %v28 = vlaneseq
  %v29 = vshrl.u32 %v28, 7
  %v30 = vsub.s32 0, %v29
  %v31 = vrot.slane %v26, %v30
  %v32 = vlaneseq
  %v33 = vshrl.u32 %v32, 7
  %v34 = vsub.s32 1, %v33
  %v35 = vrot.slane %v26, %v34
  %v38 = vmul.f32 %v18, %v31
  %v39 = vmul.f32 %v19, %v35
  %v40 = vmul.f32 %v20, %v31
  %v41 = vmul.f32 %v21, %v35
  %v42 = vmul.f32 %v22, %v31
  %v43 = vmul.f32 %v23, %v35
  %v44 = vmul.f32 %v24, %v31
  %v45 = vmul.f32 %v25, %v35
  %v46 = vld [vmem:[%s2] sm:$0x3]
  %v48 = vlaneseq
  %v49 = vshrl.u32 %v48, 7
  %v50 = vsub.s32 0, %v49
  %v51 = vrot.slane %v46, %v50
  %v52 = vlaneseq
  %v53 = vshrl.u32 %v52, 7
  %v54 = vsub.s32 1, %v53
  %v55 = vrot.slane %v46, %v54
  %v58 = vadd.f32 %v38, %v51
  %v59 = vadd.f32 %v39, %v55
  %v60 = vadd.f32 %v40, %v51
  %v61 = vadd.f32 %v41, %v55
  %v62 = vadd.f32 %v42, %v51
  %v63 = vadd.f32 %v43, %v55
  %v64 = vadd.f32 %v44, %v51
  %v65 = vadd.f32 %v45, %v55
  %v66 = vmax.f32 %v58, 0.0
  %v67 = vmax.f32 %v59, 0.0
  %v68 = vmax.f32 %v60, 0.0
  %v69 = vmax.f32 %v61, 0.0
  %v70 = vmax.f32 %v62, 0.0
  %v71 = vmax.f32 %v63, 0.0
  %v72 = vmax.f32 %v64, 0.0
  %v73 = vmax.f32 %v65, 0.0
  %v74 = vpack.c.bf16 %v68, %v66
  %v75 = vpack.c.bf16 %v69, %v67
  %v76 = vpack.c.bf16 %v72, %v70
  %v77 = vpack.c.bf16 %v73, %v71
  %v82 = vunpack.c.l.b16 %v74
  %v83 = vunpack.c.l.b16 %v75
  %v84 = vunpack.c.h.b16 %v74
  %v85 = vunpack.c.h.b16 %v75
  %v86 = vunpack.c.l.b16 %v76
  %v87 = vunpack.c.l.b16 %v77
  %v88 = vunpack.c.h.b16 %v76
  %v89 = vunpack.c.h.b16 %v77
  %v90 = vpack.c.b16 %v83, %v82
  %v91 = vpack.c.b16 %v85, %v84
  %v92 = vpack.c.b16 %v87, %v86
  %v93 = vpack.c.b16 %v89, %v88
  %98 = vst [vmem:[%s3] sm:$0xff] %v90
  %99 = vst [vmem:[%s3 + $0x8] sm:$0xff] %v91
  %100 = vst [vmem:[%s3 + $0x10] sm:$0xff] %v92
  %101 = vst [vmem:[%s3 + $0x18] sm:$0xff] %v93
  // Predicated region
  $region14: #{generator_forward.14} parent=0 // pred_check
    _
  $region15: #{generator_forward.14} parent=0 // pred_check_branch
    %103 = sbr.rel (0) target = $region17
  $region16: #{generator_forward.14} parent=0 // pred_region
    _
  $region17: #{generator_forward.14} parent=0 // pred_fallthru
    _
  // Predicated region
  $region18: #{generator_forward.14} parent=0 // pred_check
    _
  $region19: #{generator_forward.14} parent=0 // pred_check_branch
    %105 = sbr.rel (0) target = $region21
  $region20: #{generator_forward.14} parent=0 // pred_region
    _
  $region21: #{generator_forward.14} parent=0 // pred_fallthru
    _

// kernel: generator_forward.15
$region0: #{generator_forward.15}
  #allocation0 [shape = 'u32[]', space=smem, size = 0x4, offset = 0x4, fixed_abs, tag = 'smem constant byte address 0x4 - core index']
  #allocation1 [shape = 'u32[144,128]{1,0:T(1,128)}', space=vmem, size = 0x12000, scoped, tag = 'internal scratch']
  %s0 = inlined_call_operand.vmem [shape: bf16[512,144], index: 0, kind: input, shape index: {}]
  %s1 = inlined_call_operand.vmem [shape: bf16[144,32], index: 1, kind: input, shape index: {}]
  %s2 = inlined_call_operand.vmem [shape: bf16[512,32], index: 2, kind: output, shape index: {0}]
  %s3 = inlined_call_operand.vmem [shape: f32[8,32], index: 3, kind: output, shape index: {1}]
  %s4 = inlined_call_operand.vmem [shape: f32[8,32], index: 4, kind: output, shape index: {2}]
  %5 = xla_tuple %s2, %s3, %s4
  %s6 = sld [smem:[#allocation0]]
  $region34: #{generator_forward.15} parent=0
    _
  %s8 = ssub.s32 1, %s6
  %s9 = scalar_select 0, %s8, %s6
  // Predicated region
  $region2: #{generator_forward.15} parent=0 // pred_check
    _
  $region3: #{generator_forward.15} parent=0 // pred_check_branch
    %11 = sbr.rel (0) target = $region5
  $region4: #{generator_forward.15} parent=0 // pred_region
    _
  $region5: #{generator_forward.15} parent=0 // pred_fallthru
    _
  // Predicated region
  $region6: #{generator_forward.15} parent=0 // pred_check
    _
  $region7: #{generator_forward.15} parent=0 // pred_check_branch
    %13 = sbr.rel (0) target = $region9
  $region8: #{generator_forward.15} parent=0 // pred_region
    _
  $region9: #{generator_forward.15} parent=0 // pred_fallthru
    _
  %v15 = vld [vmem:[%s0] sm:$0xff]
  %v16 = vld [vmem:[%s0 + $0x8] sm:$0xff]
  %v17 = vld [vmem:[%s0 + $0x10] sm:$0xff]
  %v18 = vld [vmem:[%s0 + $0x18] sm:$0xff]
  %v19 = vld [vmem:[%s0 + $0x20] sm:$0xff]
  %v20 = vld [vmem:[%s0 + $0x28] sm:$0xff]
  %v21 = vld [vmem:[%s0 + $0x30] sm:$0xff]
  %v22 = vld [vmem:[%s0 + $0x38] sm:$0xff]
  %v23 = vld [vmem:[%s0 + $0x40] sm:$0xff]
  %v24 = vld [vmem:[%s0 + $0x48] sm:$0xff]
  %v25 = vld [vmem:[%s0 + $0x50] sm:$0xff]
  %v26 = vld [vmem:[%s0 + $0x58] sm:$0xff]
  %v27 = vld [vmem:[%s0 + $0x60] sm:$0xff]
  %v28 = vld [vmem:[%s0 + $0x68] sm:$0xff]
  %v29 = vld [vmem:[%s0 + $0x70] sm:$0xff]
  %v30 = vld [vmem:[%s0 + $0x78] sm:$0xff]
  %v31 = vld [vmem:[%s0 + $0x80] sm:$0xff]
  %v32 = vld [vmem:[%s0 + $0x88] sm:$0xff]
  %v33 = vld [vmem:[%s0 + $0x90] sm:$0xff]
  %v34 = vld [vmem:[%s0 + $0x98] sm:$0xff]
  %v35 = vld [vmem:[%s0 + $0xa0] sm:$0xff]
  %v36 = vld [vmem:[%s0 + $0xa8] sm:$0xff]
  %v37 = vld [vmem:[%s0 + $0xb0] sm:$0xff]
  %v38 = vld [vmem:[%s0 + $0xb8] sm:$0xff]
  %v39 = vld [vmem:[%s0 + $0xc0] sm:$0xff]
  %v40 = vld [vmem:[%s0 + $0xc8] sm:$0xff]
  %v41 = vld [vmem:[%s0 + $0xd0] sm:$0xff]
  %v42 = vld [vmem:[%s0 + $0xd8] sm:$0xff]
  %v43 = vld [vmem:[%s0 + $0xe0] sm:$0xff]
  %v44 = vld [vmem:[%s0 + $0xe8] sm:$0xff]
  %v45 = vld [vmem:[%s0 + $0xf0] sm:$0xff]
  %v46 = vld [vmem:[%s0 + $0xf8] sm:$0xff]
  %v47 = vld [vmem:[%s0 + $0x100] sm:$0xff]
  %v48 = vld [vmem:[%s0 + $0x108] sm:$0xff]
  %v49 = vld [vmem:[%s0 + $0x110] sm:$0xff]
  %v50 = vld [vmem:[%s0 + $0x118] sm:$0xff]
  %v51 = vld [vmem:[%s0 + $0x120] sm:$0xff]
  %v52 = vld [vmem:[%s0 + $0x128] sm:$0xff]
  %v53 = vld [vmem:[%s0 + $0x130] sm:$0xff]
  %v54 = vld [vmem:[%s0 + $0x138] sm:$0xff]
  %v55 = vld [vmem:[%s0 + $0x140] sm:$0xff]
  %v56 = vld [vmem:[%s0 + $0x148] sm:$0xff]
  %v57 = vld [vmem:[%s0 + $0x150] sm:$0xff]
  %v58 = vld [vmem:[%s0 + $0x158] sm:$0xff]
  %v59 = vld [vmem:[%s0 + $0x160] sm:$0xff]
  %v60 = vld [vmem:[%s0 + $0x168] sm:$0xff]
  %v61 = vld [vmem:[%s0 + $0x170] sm:$0xff]
  %v62 = vld [vmem:[%s0 + $0x178] sm:$0xff]
  %v63 = vld [vmem:[%s0 + $0x180] sm:$0xff]
  %v64 = vld [vmem:[%s0 + $0x188] sm:$0xff]
  %v65 = vld [vmem:[%s0 + $0x190] sm:$0xff]
  %v66 = vld [vmem:[%s0 + $0x198] sm:$0xff]
  %v67 = vld [vmem:[%s0 + $0x1a0] sm:$0xff]
  %v68 = vld [vmem:[%s0 + $0x1a8] sm:$0xff]
  %v69 = vld [vmem:[%s0 + $0x1b0] sm:$0xff]
  %v70 = vld [vmem:[%s0 + $0x1b8] sm:$0xff]
  %v71 = vld [vmem:[%s0 + $0x1c0] sm:$0xff]
  %v72 = vld [vmem:[%s0 + $0x1c8] sm:$0xff]
  %v73 = vld [vmem:[%s0 + $0x1d0] sm:$0xff]
  %v74 = vld [vmem:[%s0 + $0x1d8] sm:$0xff]
  %v75 = vld [vmem:[%s0 + $0x1e0] sm:$0xff]
  %v76 = vld [vmem:[%s0 + $0x1e8] sm:$0xff]
  %v77 = vld [vmem:[%s0 + $0x1f0] sm:$0xff]
  %v78 = vld [vmem:[%s0 + $0x1f8] sm:$0xff]
  %v79 = vld [vmem:[%s1] sm:$0xf]
  %v80 = vld [vmem:[%s1 + $0x4] sm:$0xf]
  %v81 = vld [vmem:[%s1 + $0x8] sm:$0xf]
  %v82 = vld [vmem:[%s1 + $0xc] sm:$0xf]
  %v83 = vld [vmem:[%s1 + $0x10] sm:$0xf]
  %v84 = vld [vmem:[%s1 + $0x14] sm:$0xf]
  %v85 = vld [vmem:[%s1 + $0x18] sm:$0xf]
  %v86 = vld [vmem:[%s1 + $0x1c] sm:$0xf]
  %v87 = vld [vmem:[%s1 + $0x20] sm:$0xf]
  %v88 = vld [vmem:[%s1 + $0x24] sm:$0xf]
  %v89 = vld [vmem:[%s1 + $0x28] sm:$0xf]
  %v90 = vld [vmem:[%s1 + $0x2c] sm:$0xf]
  %v91 = vld [vmem:[%s1 + $0x30] sm:$0xf]
  %v92 = vld [vmem:[%s1 + $0x34] sm:$0xf]
  %v93 = vld [vmem:[%s1 + $0x38] sm:$0xf]
  %v94 = vld [vmem:[%s1 + $0x3c] sm:$0xf]
  %v95 = vld [vmem:[%s1 + $0x40] sm:$0xf]
  %v96 = vld [vmem:[%s1 + $0x44] sm:$0xf]
  %v161 = vunpack.c.l.b16 %v15
  %v162 = vunpack.c.h.b16 %v15
  %v163 = vunpack.c.l.b16 %v16
  %v164 = vunpack.c.h.b16 %v16
  %v165 = vunpack.c.l.b16 %v17
  %v166 = vunpack.c.h.b16 %v17
  %v167 = vunpack.c.l.b16 %v18
  %v168 = vunpack.c.h.b16 %v18
  %v169 = vunpack.c.l.b16 %v19
  %v170 = vunpack.c.h.b16 %v19
  %v171 = vunpack.c.l.b16 %v20
  %v172 = vunpack.c.h.b16 %v20
  %v173 = vunpack.c.l.b16 %v21
  %v174 = vunpack.c.h.b16 %v21
  %v175 = vunpack.c.l.b16 %v22
  %v176 = vunpack.c.h.b16 %v22
  %v177 = vunpack.c.l.b16 %v23
  %v178 = vunpack.c.h.b16 %v23
  %v179 = vunpack.c.l.b16 %v24
  %v180 = vunpack.c.h.b16 %v24
  %v181 = vunpack.c.l.b16 %v25
  %v182 = vunpack.c.h.b16 %v25
  %v183 = vunpack.c.l.b16 %v26
  %v184 = vunpack.c.h.b16 %v26
  %v185 = vunpack.c.l.b16 %v27
  %v186 = vunpack.c.h.b16 %v27
  %v187 = vunpack.c.l.b16 %v28
  %v188 = vunpack.c.h.b16 %v28
  %v189 = vunpack.c.l.b16 %v29
  %v190 = vunpack.c.h.b16 %v29
  %v191 = vunpack.c.l.b16 %v30
  %v192 = vunpack.c.h.b16 %v30
  %v193 = vunpack.c.l.b16 %v31
  %v194 = vunpack.c.h.b16 %v31
  %v195 = vunpack.c.l.b16 %v32
  %v196 = vunpack.c.h.b16 %v32
  %v197 = vunpack.c.l.b16 %v33
  %v198 = vunpack.c.h.b16 %v33
  %v199 = vunpack.c.l.b16 %v34
  %v200 = vunpack.c.h.b16 %v34
  %v201 = vunpack.c.l.b16 %v35
  %v202 = vunpack.c.h.b16 %v35
  %v203 = vunpack.c.l.b16 %v36
  %v204 = vunpack.c.h.b16 %v36
  %v205 = vunpack.c.l.b16 %v37
  %v206 = vunpack.c.h.b16 %v37
  %v207 = vunpack.c.l.b16 %v38
  %v208 = vunpack.c.h.b16 %v38
  %v209 = vunpack.c.l.b16 %v39
  %v210 = vunpack.c.h.b16 %v39
  %v211 = vunpack.c.l.b16 %v40
  %v212 = vunpack.c.h.b16 %v40
  %v213 = vunpack.c.l.b16 %v41
  %v214 = vunpack.c.h.b16 %v41
  %v215 = vunpack.c.l.b16 %v42
  %v216 = vunpack.c.h.b16 %v42
  %v217 = vunpack.c.l.b16 %v43
  %v218 = vunpack.c.h.b16 %v43
  %v219 = vunpack.c.l.b16 %v44
  %v220 = vunpack.c.h.b16 %v44
  %v221 = vunpack.c.l.b16 %v45
  %v222 = vunpack.c.h.b16 %v45
  %v223 = vunpack.c.l.b16 %v46
  %v224 = vunpack.c.h.b16 %v46
  %v225 = vunpack.c.l.b16 %v47
  %v226 = vunpack.c.h.b16 %v47
  %v227 = vunpack.c.l.b16 %v48
  %v228 = vunpack.c.h.b16 %v48
  %v229 = vunpack.c.l.b16 %v49
  %v230 = vunpack.c.h.b16 %v49
  %v231 = vunpack.c.l.b16 %v50
  %v232 = vunpack.c.h.b16 %v50
  %v233 = vunpack.c.l.b16 %v51
  %v234 = vunpack.c.h.b16 %v51
  %v235 = vunpack.c.l.b16 %v52
  %v236 = vunpack.c.h.b16 %v52
  %v237 = vunpack.c.l.b16 %v53
  %v238 = vunpack.c.h.b16 %v53
  %v239 = vunpack.c.l.b16 %v54
  %v240 = vunpack.c.h.b16 %v54
  %v241 = vunpack.c.l.b16 %v55
  %v242 = vunpack.c.h.b16 %v55
  %v243 = vunpack.c.l.b16 %v56
  %v244 = vunpack.c.h.b16 %v56
  %v245 = vunpack.c.l.b16 %v57
  %v246 = vunpack.c.h.b16 %v57
  %v247 = vunpack.c.l.b16 %v58
  %v248 = vunpack.c.h.b16 %v58
  %v249 = vunpack.c.l.b16 %v59
  %v250 = vunpack.c.h.b16 %v59
  %v251 = vunpack.c.l.b16 %v60
  %v252 = vunpack.c.h.b16 %v60
  %v253 = vunpack.c.l.b16 %v61
  %v254 = vunpack.c.h.b16 %v61
  %v255 = vunpack.c.l.b16 %v62
  %v256 = vunpack.c.h.b16 %v62
  %v257 = vunpack.c.l.b16 %v63
  %v258 = vunpack.c.h.b16 %v63
  %v259 = vunpack.c.l.b16 %v64
  %v260 = vunpack.c.h.b16 %v64
  %v261 = vunpack.c.l.b16 %v65
  %v262 = vunpack.c.h.b16 %v65
  %v263 = vunpack.c.l.b16 %v66
  %v264 = vunpack.c.h.b16 %v66
  %v265 = vunpack.c.l.b16 %v67
  %v266 = vunpack.c.h.b16 %v67
  %v267 = vunpack.c.l.b16 %v68
  %v268 = vunpack.c.h.b16 %v68
  %v269 = vunpack.c.l.b16 %v69
  %v270 = vunpack.c.h.b16 %v69
  %v271 = vunpack.c.l.b16 %v70
  %v272 = vunpack.c.h.b16 %v70
  %v273 = vunpack.c.l.b16 %v71
  %v274 = vunpack.c.h.b16 %v71
  %v275 = vunpack.c.l.b16 %v72
  %v276 = vunpack.c.h.b16 %v72
  %v277 = vunpack.c.l.b16 %v73
  %v278 = vunpack.c.h.b16 %v73
  %v279 = vunpack.c.l.b16 %v74
  %v280 = vunpack.c.h.b16 %v74
  %v281 = vunpack.c.l.b16 %v75
  %v282 = vunpack.c.h.b16 %v75
  %v283 = vunpack.c.l.b16 %v76
  %v284 = vunpack.c.h.b16 %v76
  %v285 = vunpack.c.l.b16 %v77
  %v286 = vunpack.c.h.b16 %v77
  %v287 = vunpack.c.l.b16 %v78
  %v288 = vunpack.c.h.b16 %v78
  %v289 = vpack.c.b16 %v163, %v161
  %v290 = vpack.c.b16 %v164, %v162
  %v291 = vpack.c.b16 %v167, %v165
  %v292 = vpack.c.b16 %v168, %v166
  %v293 = vpack.c.b16 %v171, %v169
  %v294 = vpack.c.b16 %v172, %v170
  %v295 = vpack.c.b16 %v175, %v173
  %v296 = vpack.c.b16 %v176, %v174
  %v297 = vpack.c.b16 %v179, %v177
  %v298 = vpack.c.b16 %v180, %v178
  %v299 = vpack.c.b16 %v183, %v181
  %v300 = vpack.c.b16 %v184, %v182
  %v301 = vpack.c.b16 %v187, %v185
  %v302 = vpack.c.b16 %v188, %v186
  %v303 = vpack.c.b16 %v191, %v189
  %v304 = vpack.c.b16 %v192, %v190
  %v305 = vpack.c.b16 %v195, %v193
  %v306 = vpack.c.b16 %v196, %v194
  %v307 = vpack.c.b16 %v199, %v197
  %v308 = vpack.c.b16 %v200, %v198
  %v309 = vpack.c.b16 %v203, %v201
  %v310 = vpack.c.b16 %v204, %v202
  %v311 = vpack.c.b16 %v207, %v205
  %v312 = vpack.c.b16 %v208, %v206
  %v313 = vpack.c.b16 %v211, %v209
  %v314 = vpack.c.b16 %v212, %v210
  %v315 = vpack.c.b16 %v215, %v213
  %v316 = vpack.c.b16 %v216, %v214
  %v317 = vpack.c.b16 %v219, %v217
  %v318 = vpack.c.b16 %v220, %v218
  %v319 = vpack.c.b16 %v223, %v221
  %v320 = vpack.c.b16 %v224, %v222
  %v321 = vpack.c.b16 %v227, %v225
  %v322 = vpack.c.b16 %v228, %v226
  %v323 = vpack.c.b16 %v231, %v229
  %v324 = vpack.c.b16 %v232, %v230
  %v325 = vpack.c.b16 %v235, %v233
  %v326 = vpack.c.b16 %v236, %v234
  %v327 = vpack.c.b16 %v239, %v237
  %v328 = vpack.c.b16 %v240, %v238
  %v329 = vpack.c.b16 %v243, %v241
  %v330 = vpack.c.b16 %v244, %v242
  %v331 = vpack.c.b16 %v247, %v245
  %v332 = vpack.c.b16 %v248, %v246
  %v333 = vpack.c.b16 %v251, %v249
  %v334 = vpack.c.b16 %v252, %v250
  %v335 = vpack.c.b16 %v255, %v253
  %v336 = vpack.c.b16 %v256, %v254
  %v337 = vpack.c.b16 %v259, %v257
  %v338 = vpack.c.b16 %v260, %v258
  %v339 = vpack.c.b16 %v263, %v261
  %v340 = vpack.c.b16 %v264, %v262
  %v341 = vpack.c.b16 %v267, %v265
  %v342 = vpack.c.b16 %v268, %v266
  %v343 = vpack.c.b16 %v271, %v269
  %v344 = vpack.c.b16 %v272, %v270
  %v345 = vpack.c.b16 %v275, %v273
  %v346 = vpack.c.b16 %v276, %v274
  %v347 = vpack.c.b16 %v279, %v277
  %v348 = vpack.c.b16 %v280, %v278
  %v349 = vpack.c.b16 %v283, %v281
  %v350 = vpack.c.b16 %v284, %v282
  %v351 = vpack.c.b16 %v287, %v285
  %v352 = vpack.c.b16 %v288, %v286
  %v403 = vunpack.c.l.b16 %v79
  %v404 = vunpack.c.l.b16 %v80
  %v405 = vunpack.c.l.b16 %v81
  %v406 = vunpack.c.l.b16 %v82
  %v407 = vunpack.c.l.b16 %v83
  %v408 = vunpack.c.l.b16 %v84
  %v409 = vunpack.c.l.b16 %v85
  %v410 = vunpack.c.l.b16 %v86
  %v411 = vunpack.c.l.b16 %v87
  %v412 = vunpack.c.l.b16 %v88
  %v413 = vunpack.c.l.b16 %v89
  %v414 = vunpack.c.l.b16 %v90
  %v415 = vunpack.c.l.b16 %v91
  %v416 = vunpack.c.l.b16 %v92
  %v417 = vunpack.c.l.b16 %v93
  %v418 = vunpack.c.l.b16 %v94
  %v419 = vunpack.c.l.b16 %v95
  %v420 = vunpack.c.l.b16 %v96
  %v421 = vpack.c.b16 %v404, %v403
  %v422 = vpack.c.b16 %v406, %v405
  %v423 = vpack.c.b16 %v408, %v407
  %v424 = vpack.c.b16 %v410, %v409
  %v425 = vpack.c.b16 %v412, %v411
  %v426 = vpack.c.b16 %v414, %v413
  %v427 = vpack.c.b16 %v416, %v415
  %v428 = vpack.c.b16 %v418, %v417
  %v429 = vpack.c.b16 %v420, %v419
  %vm439 = vcmask 130048
  %v441 = vsel %vm439, %v290, 0
  %v444 = vsel %vm439, %v292, 0
  %v447 = vsel %vm439, %v294, 0
  %v450 = vsel %vm439, %v296, 0
  %v453 = vsel %vm439, %v298, 0
  %v456 = vsel %vm439, %v300, 0
  %v459 = vsel %vm439, %v302, 0
  %v462 = vsel %vm439, %v304, 0
  %v465 = vsel %vm439, %v306, 0
  %v468 = vsel %vm439, %v308, 0
  %v471 = vsel %vm439, %v310, 0
  %v474 = vsel %vm439, %v312, 0
  %v477 = vsel %vm439, %v314, 0
  %v480 = vsel %vm439, %v316, 0
  %v483 = vsel %vm439, %v318, 0
  %v486 = vsel %vm439, %v320, 0
  %v489 = vsel %vm439, %v322, 0
  %v492 = vsel %vm439, %v324, 0
  %v495 = vsel %vm439, %v326, 0
  %v498 = vsel %vm439, %v328, 0
  %v501 = vsel %vm439, %v330, 0
  %v504 = vsel %vm439, %v332, 0
  %v507 = vsel %vm439, %v334, 0
  %v510 = vsel %vm439, %v336, 0
  %v513 = vsel %vm439, %v338, 0
  %v516 = vsel %vm439, %v340, 0
  %v519 = vsel %vm439, %v342, 0
  %v522 = vsel %vm439, %v344, 0
  %v525 = vsel %vm439, %v346, 0
  %v528 = vsel %vm439, %v348, 0
  %v531 = vsel %vm439, %v350, 0
  %v534 = vsel %vm439, %v352, 0
  %536 = vmatprep.subr.bf16.mxu0 0
  %537 = vmatpush1.bf16.msra.mxu0 %v421
  %538 = vmatprep.subr.bf16.mxu0 0
  %539 = vmatpush1.bf16.msra.mxu0 %v422
  %540 = vmatprep.subr.bf16.mxu0 0
  %541 = vmatpush1.bf16.msra.mxu0 %v423
  %542 = vmatprep.subr.bf16.mxu0 0
  %543 = vmatpush1.bf16.msra.mxu0 %v424
  %544 = vmatprep.subr.bf16.mxu0 0
  %545 = vmatpush1.bf16.msra.mxu0 %v425
  %546 = vmatprep.subr.bf16.mxu0 0
  %547 = vmatpush1.bf16.msra.mxu0 %v426
  %548 = vmatprep.subr.bf16.mxu0 0
  %549 = vmatpush1.bf16.msra.mxu0 %v427
  %550 = vmatprep.subr.bf16.mxu0 0
  %551 = vmatpush1.bf16.msra.mxu0 %v428
  %552 = vmatprep.subr.bf16.mxu0 0
  %553 = vmatpush1.bf16.msra.mxu0 %v429
  %554 = vmatprep.subr.bf16.mxu0 0
  %555 = vmatpush1.bf16.msra.mxu0 0
  %556 = vmatprep.subr.bf16.mxu0 0
  %557 = vmatpush1.bf16.msra.mxu0 0
  %558 = vmatprep.subr.bf16.mxu0 0
  %559 = vmatpush1.bf16.msra.mxu0 0
  %560 = vmatprep.subr.bf16.mxu0 0
  %561 = vmatpush1.bf16.msra.mxu0 0
  %562 = vmatprep.subr.bf16.mxu0 0
  %563 = vmatpush1.bf16.msra.mxu0 0
  %564 = vmatprep.subr.bf16.mxu0 0
  %565 = vmatpush1.bf16.msra.mxu0 0
  %566 = vmatprep.subr.bf16.mxu0 0
  %567 = vmatpush1.bf16.msra.mxu0 0
  %568 = vmatprep.mubr.bf16.mxu0 %v441
  %569 = vmatmul.mubr.bf16.gmra.mrb[0].mxu0 %v289
  %v570 = vpop.f32.mrb[0].mxu0
  %v571 = vadd.f32 0.0, %v570
  %v572 = vpop.f32.mrb[0].mxu0
  %v573 = vpop.f32.mrb[0].mxu0
  %v574 = vadd.f32 0.0, %v573
  %v575 = vpop.f32.mrb[0].mxu0
  %576 = vmatprep.mubr.bf16.mxu0 %v444
  %577 = vmatmul.mubr.bf16.gmra.mrb[0].mxu0 %v291
  %v578 = vpop.f32.mrb[0].mxu0
  %v579 = vadd.f32 0.0, %v578
  %v580 = vpop.f32.mrb[0].mxu0
  %v581 = vpop.f32.mrb[0].mxu0
  %v582 = vadd.f32 0.0, %v581
  %v583 = vpop.f32.mrb[0].mxu0
  %584 = vmatprep.mubr.bf16.mxu0 %v447
  %585 = vmatmul.mubr.bf16.gmra.mrb[0].mxu0 %v293
  %v586 = vpop.f32.mrb[0].mxu0
  %v587 = vadd.f32 0.0, %v586
  %v588 = vpop.f32.mrb[0].mxu0
  %v589 = vpop.f32.mrb[0].mxu0
  %v590 = vadd.f32 0.0, %v589
  %v591 = vpop.f32.mrb[0].mxu0
  %592 = vmatprep.mubr.bf16.mxu0 %v450
  %593 = vmatmul.mubr.bf16.gmra.mrb[0].mxu0 %v295
  %v594 = vpop.f32.mrb[0].mxu0
  %v595 = vadd.f32 0.0, %v594
  %v596 = vpop.f32.mrb[0].mxu0
  %v597 = vpop.f32.mrb[0].mxu0
  %v598 = vadd.f32 0.0, %v597
  %v599 = vpop.f32.mrb[0].mxu0
  %600 = vmatprep.mubr.bf16.mxu0 %v453
  %601 = vmatmul.mubr.bf16.gmra.mrb[0].mxu0 %v297
  %v602 = vpop.f32.mrb[0].mxu0
  %v603 = vadd.f32 0.0, %v602
  %v604 = vpop.f32.mrb[0].mxu0
  %v605 = vpop.f32.mrb[0].mxu0
  %v606 = vadd.f32 0.0, %v605
  %v607 = vpop.f32.mrb[0].mxu0
  %608 = vmatprep.mubr.bf16.mxu0 %v456
  %609 = vmatmul.mubr.bf16.gmra.mrb[0].mxu0 %v299
  %v610 = vpop.f32.mrb[0].mxu0
  %v611 = vadd.f32 0.0, %v610
  %v612 = vpop.f32.mrb[0].mxu0
  %v613 = vpop.f32.mrb[0].mxu0
  %v614 = vadd.f32 0.0, %v613
  %v615 = vpop.f32.mrb[0].mxu0
  %616 = vmatprep.mubr.bf16.mxu0 %v459
  %617 = vmatmul.mubr.bf16.gmra.mrb[0].mxu0 %v301
  %v618 = vpop.f32.mrb[0].mxu0
  %v619 = vadd.f32 0.0, %v618
  %v620 = vpop.f32.mrb[0].mxu0
  %v621 = vpop.f32.mrb[0].mxu0
  %v622 = vadd.f32 0.0, %v621
  %v623 = vpop.f32.mrb[0].mxu0
  %624 = vmatprep.mubr.bf16.mxu0 %v462
  %625 = vmatmul.mubr.bf16.gmra.mrb[0].mxu0 %v303
  %v626 = vpop.f32.mrb[0].mxu0
  %v627 = vadd.f32 0.0, %v626
  %v628 = vpop.f32.mrb[0].mxu0
  %v629 = vpop.f32.mrb[0].mxu0
  %v630 = vadd.f32 0.0, %v629
  %v631 = vpop.f32.mrb[0].mxu0
  %632 = vmatprep.mubr.bf16.mxu0 %v465
  %633 = vmatmul.mubr.bf16.gmra.mrb[0].mxu0 %v305
  %v634 = vpop.f32.mrb[0].mxu0
  %v635 = vadd.f32 0.0, %v634
  %v636 = vpop.f32.mrb[0].mxu0
  %v637 = vpop.f32.mrb[0].mxu0
  %v638 = vadd.f32 0.0, %v637
  %v639 = vpop.f32.mrb[0].mxu0
  %640 = vmatprep.mubr.bf16.mxu0 %v468
  %641 = vmatmul.mubr.bf16.gmra.mrb[0].mxu0 %v307
  %v642 = vpop.f32.mrb[0].mxu0
  %v643 = vadd.f32 0.0, %v642
  %v644 = vpop.f32.mrb[0].mxu0
  %v645 = vpop.f32.mrb[0].mxu0
  %v646 = vadd.f32 0.0, %v645
  %v647 = vpop.f32.mrb[0].mxu0
  %648 = vmatprep.mubr.bf16.mxu0 %v471
  %649 = vmatmul.mubr.bf16.gmra.mrb[0].mxu0 %v309
  %v650 = vpop.f32.mrb[0].mxu0
  %v651 = vadd.f32 0.0, %v650
  %v652 = vpop.f32.mrb[0].mxu0
  %v653 = vpop.f32.mrb[0].mxu0
  %v654 = vadd.f32 0.0, %v653
  %v655 = vpop.f32.mrb[0].mxu0
  %656 = vmatprep.mubr.bf16.mxu0 %v474
  %657 = vmatmul.mubr.bf16.gmra.mrb[0].mxu0 %v311
  %v658 = vpop.f32.mrb[0].mxu0
  %v659 = vadd.f32 0.0, %v658
  %v660 = vpop.f32.mrb[0].mxu0
  %v661 = vpop.f32.mrb[0].mxu0
  %v662 = vadd.f32 0.0, %v661
  %v663 = vpop.f32.mrb[0].mxu0
  %664 = vmatprep.mubr.bf16.mxu0 %v477
  %665 = vmatmul.mubr.bf16.gmra.mrb[0].mxu0 %v313
  %v666 = vpop.f32.mrb[0].mxu0
  %v667 = vadd.f32 0.0, %v666
  %v668 = vpop.f32.mrb[0].mxu0
  %v669 = vpop.f32.mrb[0].mxu0
  %v670 = vadd.f32 0.0, %v669
  %v671 = vpop.f32.mrb[0].mxu0
  %672 = vmatprep.mubr.bf16.mxu0 %v480
  %673 = vmatmul.mubr.bf16.gmra.mrb[0].mxu0 %v315
  %v674 = vpop.f32.mrb[0].mxu0
  %v675 = vadd.f32 0.0, %v674
  %v676 = vpop.f32.mrb[0].mxu0
  %v677 = vpop.f32.mrb[0].mxu0
  %v678 = vadd.f32 0.0, %v677
  %v679 = vpop.f32.mrb[0].mxu0
  %680 = vmatprep.mubr.bf16.mxu0 %v483
  %681 = vmatmul.mubr.bf16.gmra.mrb[0].mxu0 %v317
  %v682 = vpop.f32.mrb[0].mxu0
  %v683 = vadd.f32 0.0, %v682
  %v684 = vpop.f32.mrb[0].mxu0
  %v685 = vpop.f32.mrb[0].mxu0
  %v686 = vadd.f32 0.0, %v685
  %v687 = vpop.f32.mrb[0].mxu0
  %688 = vmatprep.mubr.bf16.mxu0 %v486
  %689 = vmatmul.mubr.bf16.gmra.mrb[0].mxu0 %v319
  %v690 = vpop.f32.mrb[0].mxu0
  %v691 = vadd.f32 0.0, %v690
  %v692 = vpop.f32.mrb[0].mxu0
  %v693 = vpop.f32.mrb[0].mxu0
  %v694 = vadd.f32 0.0, %v693
  %v695 = vpop.f32.mrb[0].mxu0
  %696 = vmatprep.mubr.bf16.mxu0 %v489
  %697 = vmatmul.mubr.bf16.gmra.mrb[0].mxu0 %v321
  %v698 = vpop.f32.mrb[0].mxu0
  %v699 = vadd.f32 0.0, %v698
  %v700 = vpop.f32.mrb[0].mxu0
  %v701 = vpop.f32.mrb[0].mxu0
  %v702 = vadd.f32 0.0, %v701
  %v703 = vpop.f32.mrb[0].mxu0
  %704 = vmatprep.mubr.bf16.mxu0 %v492
  %705 = vmatmul.mubr.bf16.gmra.mrb[0].mxu0 %v323
  %v706 = vpop.f32.mrb[0].mxu0
  %v707 = vadd.f32 0.0, %v706
  %v708 = vpop.f32.mrb[0].mxu0
  %v709 = vpop.f32.mrb[0].mxu0
  %v710 = vadd.f32 0.0, %v709
  %v711 = vpop.f32.mrb[0].mxu0
  %712 = vmatprep.mubr.bf16.mxu0 %v495
  %713 = vmatmul.mubr.bf16.gmra.mrb[0].mxu0 %v325
  %v714 = vpop.f32.mrb[0].mxu0
  %v715 = vadd.f32 0.0, %v714
  %v716 = vpop.f32.mrb[0].mxu0
  %v717 = vpop.f32.mrb[0].mxu0
  %v718 = vadd.f32 0.0, %v717
  %v719 = vpop.f32.mrb[0].mxu0
  %720 = vmatprep.mubr.bf16.mxu0 %v498
  %721 = vmatmul.mubr.bf16.gmra.mrb[0].mxu0 %v327
  %v722 = vpop.f32.mrb[0].mxu0
  %v723 = vadd.f32 0.0, %v722
  %v724 = vpop.f32.mrb[0].mxu0
  %v725 = vpop.f32.mrb[0].mxu0
  %v726 = vadd.f32 0.0, %v725
  %v727 = vpop.f32.mrb[0].mxu0
  %728 = vmatprep.mubr.bf16.mxu0 %v501
  %729 = vmatmul.mubr.bf16.gmra.mrb[0].mxu0 %v329
  %v730 = vpop.f32.mrb[0].mxu0
  %v731 = vadd.f32 0.0, %v730
  %v732 = vpop.f32.mrb[0].mxu0
  %v733 = vpop.f32.mrb[0].mxu0
  %v734 = vadd.f32 0.0, %v733
  %v735 = vpop.f32.mrb[0].mxu0
  %736 = vmatprep.mubr.bf16.mxu0 %v504
  %737 = vmatmul.mubr.bf16.gmra.mrb[0].mxu0 %v331
  %v738 = vpop.f32.mrb[0].mxu0
  %v739 = vadd.f32 0.0, %v738
  %v740 = vpop.f32.mrb[0].mxu0
  %v741 = vpop.f32.mrb[0].mxu0
  %v742 = vadd.f32 0.0, %v741
  %v743 = vpop.f32.mrb[0].mxu0
  %744 = vmatprep.mubr.bf16.mxu0 %v507
  %745 = vmatmul.mubr.bf16.gmra.mrb[0].mxu0 %v333
  %v746 = vpop.f32.mrb[0].mxu0
  %v747 = vadd.f32 0.0, %v746
  %v748 = vpop.f32.mrb[0].mxu0
  %v749 = vpop.f32.mrb[0].mxu0
  %v750 = vadd.f32 0.0, %v749
  %v751 = vpop.f32.mrb[0].mxu0
  %752 = vmatprep.mubr.bf16.mxu0 %v510
  %753 = vmatmul.mubr.bf16.gmra.mrb[0].mxu0 %v335
  %v754 = vpop.f32.mrb[0].mxu0
  %v755 = vadd.f32 0.0, %v754
  %v756 = vpop.f32.mrb[0].mxu0
  %v757 = vpop.f32.mrb[0].mxu0
  %v758 = vadd.f32 0.0, %v757
  %v759 = vpop.f32.mrb[0].mxu0
  %760 = vmatprep.mubr.bf16.mxu0 %v513
  %761 = vmatmul.mubr.bf16.gmra.mrb[0].mxu0 %v337
  %v762 = vpop.f32.mrb[0].mxu0
  %v763 = vadd.f32 0.0, %v762
  %v764 = vpop.f32.mrb[0].mxu0
  %v765 = vpop.f32.mrb[0].mxu0
  %v766 = vadd.f32 0.0, %v765
  %v767 = vpop.f32.mrb[0].mxu0
  %768 = vmatprep.mubr.bf16.mxu0 %v516
  %769 = vmatmul.mubr.bf16.gmra.mrb[0].mxu0 %v339
  %v770 = vpop.f32.mrb[0].mxu0
  %v771 = vadd.f32 0.0, %v770
  %v772 = vpop.f32.mrb[0].mxu0
  %v773 = vpop.f32.mrb[0].mxu0
  %v774 = vadd.f32 0.0, %v773
  %v775 = vpop.f32.mrb[0].mxu0
  %776 = vmatprep.mubr.bf16.mxu0 %v519
  %777 = vmatmul.mubr.bf16.gmra.mrb[0].mxu0 %v341
  %v778 = vpop.f32.mrb[0].mxu0
  %v779 = vadd.f32 0.0, %v778
  %v780 = vpop.f32.mrb[0].mxu0
  %v781 = vpop.f32.mrb[0].mxu0
  %v782 = vadd.f32 0.0, %v781
  %v783 = vpop.f32.mrb[0].mxu0
  %784 = vmatprep.mubr.bf16.mxu0 %v522
  %785 = vmatmul.mubr.bf16.gmra.mrb[0].mxu0 %v343
  %v786 = vpop.f32.mrb[0].mxu0
  %v787 = vadd.f32 0.0, %v786
  %v788 = vpop.f32.mrb[0].mxu0
  %v789 = vpop.f32.mrb[0].mxu0
  %v790 = vadd.f32 0.0, %v789
  %v791 = vpop.f32.mrb[0].mxu0
  %792 = vmatprep.mubr.bf16.mxu0 %v525
  %793 = vmatmul.mubr.bf16.gmra.mrb[0].mxu0 %v345
  %v794 = vpop.f32.mrb[0].mxu0
  %v795 = vadd.f32 0.0, %v794
  %v796 = vpop.f32.mrb[0].mxu0
  %v797 = vpop.f32.mrb[0].mxu0
  %v798 = vadd.f32 0.0, %v797
  %v799 = vpop.f32.mrb[0].mxu0
  %800 = vmatprep.mubr.bf16.mxu0 %v528
  %801 = vmatmul.mubr.bf16.gmra.mrb[0].mxu0 %v347
  %v802 = vpop.f32.mrb[0].mxu0
  %v803 = vadd.f32 0.0, %v802
  %v804 = vpop.f32.mrb[0].mxu0
  %v805 = vpop.f32.mrb[0].mxu0
  %v806 = vadd.f32 0.0, %v805
  %v807 = vpop.f32.mrb[0].mxu0
  %808 = vmatprep.mubr.bf16.mxu0 %v531
  %809 = vmatmul.mubr.bf16.gmra.mrb[0].mxu0 %v349
  %v810 = vpop.f32.mrb[0].mxu0
  %v811 = vadd.f32 0.0, %v810
  %v812 = vpop.f32.mrb[0].mxu0
  %v813 = vpop.f32.mrb[0].mxu0
  %v814 = vadd.f32 0.0, %v813
  %v815 = vpop.f32.mrb[0].mxu0
  %816 = vmatprep.mubr.bf16.mxu0 %v534
  %817 = vmatmul.mubr.bf16.gmra.mrb[0].mxu0 %v351
  %v818 = vpop.f32.mrb[0].mxu0
  %v819 = vadd.f32 0.0, %v818
  %v820 = vpop.f32.mrb[0].mxu0
  %v821 = vpop.f32.mrb[0].mxu0
  %v822 = vadd.f32 0.0, %v821
  %v823 = vpop.f32.mrb[0].mxu0
  %824 = vdwg.mxu0
  %v825 = vpack.c.bf16 %v574, %v571
  %v826 = vpack.c.bf16 %v582, %v579
  %v827 = vpack.c.bf16 %v590, %v587
  %v828 = vpack.c.bf16 %v598, %v595
  %v829 = vpack.c.bf16 %v606, %v603
  %v830 = vpack.c.bf16 %v614, %v611
  %v831 = vpack.c.bf16 %v622, %v619
  %v832 = vpack.c.bf16 %v630, %v627
  %v833 = vpack.c.bf16 %v638, %v635
  %v834 = vpack.c.bf16 %v646, %v643
  %v835 = vpack.c.bf16 %v654, %v651
  %v836 = vpack.c.bf16 %v662, %v659
  %v837 = vpack.c.bf16 %v670, %v667
  %v838 = vpack.c.bf16 %v678, %v675
  %v839 = vpack.c.bf16 %v686, %v683
  %v840 = vpack.c.bf16 %v694, %v691
  %v841 = vpack.c.bf16 %v702, %v699
  %v842 = vpack.c.bf16 %v710, %v707
  %v843 = vpack.c.bf16 %v718, %v715
  %v844 = vpack.c.bf16 %v726, %v723
  %v845 = vpack.c.bf16 %v734, %v731
  %v846 = vpack.c.bf16 %v742, %v739
  %v847 = vpack.c.bf16 %v750, %v747
  %v848 = vpack.c.bf16 %v758, %v755
  %v849 = vpack.c.bf16 %v766, %v763
  %v850 = vpack.c.bf16 %v774, %v771
  %v851 = vpack.c.bf16 %v782, %v779
  %v852 = vpack.c.bf16 %v790, %v787
  %v853 = vpack.c.bf16 %v798, %v795
  %v854 = vpack.c.bf16 %v806, %v803
  %v855 = vpack.c.bf16 %v814, %v811
  %v856 = vpack.c.bf16 %v822, %v819
  %v889 = vunpack.c.l.b16 %v825
  %v890 = vunpack.c.h.b16 %v825
  %v891 = vunpack.c.l.b16 %v826
  %v892 = vunpack.c.h.b16 %v826
  %v893 = vunpack.c.l.b16 %v827
  %v894 = vunpack.c.h.b16 %v827
  %v895 = vunpack.c.l.b16 %v828
  %v896 = vunpack.c.h.b16 %v828
  %v897 = vunpack.c.l.b16 %v829
  %v898 = vunpack.c.h.b16 %v829
  %v899 = vunpack.c.l.b16 %v830
  %v900 = vunpack.c.h.b16 %v830
  %v901 = vunpack.c.l.b16 %v831
  %v902 = vunpack.c.h.b16 %v831
  %v903 = vunpack.c.l.b16 %v832
  %v904 = vunpack.c.h.b16 %v832
  %v905 = vunpack.c.l.b16 %v833
  %v906 = vunpack.c.h.b16 %v833
  %v907 = vunpack.c.l.b16 %v834
  %v908 = vunpack.c.h.b16 %v834
  %v909 = vunpack.c.l.b16 %v835
  %v910 = vunpack.c.h.b16 %v835
  %v911 = vunpack.c.l.b16 %v836
  %v912 = vunpack.c.h.b16 %v836
  %v913 = vunpack.c.l.b16 %v837
  %v914 = vunpack.c.h.b16 %v837
  %v915 = vunpack.c.l.b16 %v838
  %v916 = vunpack.c.h.b16 %v838
  %v917 = vunpack.c.l.b16 %v839
  %v918 = vunpack.c.h.b16 %v839
  %v919 = vunpack.c.l.b16 %v840
  %v920 = vunpack.c.h.b16 %v840
  %v921 = vunpack.c.l.b16 %v841
  %v922 = vunpack.c.h.b16 %v841
  %v923 = vunpack.c.l.b16 %v842
  %v924 = vunpack.c.h.b16 %v842
  %v925 = vunpack.c.l.b16 %v843
  %v926 = vunpack.c.h.b16 %v843
  %v927 = vunpack.c.l.b16 %v844
  %v928 = vunpack.c.h.b16 %v844
  %v929 = vunpack.c.l.b16 %v845
  %v930 = vunpack.c.h.b16 %v845
  %v931 = vunpack.c.l.b16 %v846
  %v932 = vunpack.c.h.b16 %v846
  %v933 = vunpack.c.l.b16 %v847
  %v934 = vunpack.c.h.b16 %v847
  %v935 = vunpack.c.l.b16 %v848
  %v936 = vunpack.c.h.b16 %v848
  %v937 = vunpack.c.l.b16 %v849
  %v938 = vunpack.c.h.b16 %v849
  %v939 = vunpack.c.l.b16 %v850
  %v940 = vunpack.c.h.b16 %v850
  %v941 = vunpack.c.l.b16 %v851
  %v942 = vunpack.c.h.b16 %v851
  %v943 = vunpack.c.l.b16 %v852
  %v944 = vunpack.c.h.b16 %v852
  %v945 = vunpack.c.l.b16 %v853
  %v946 = vunpack.c.h.b16 %v853
  %v947 = vunpack.c.l.b16 %v854
  %v948 = vunpack.c.h.b16 %v854
  %v949 = vunpack.c.l.b16 %v855
  %v950 = vunpack.c.h.b16 %v855
  %v951 = vunpack.c.l.b16 %v856
  %v952 = vunpack.c.h.b16 %v856
  %v953 = vpack.c.b16 %v889, %v889
  %v954 = vpack.c.b16 %v890, %v890
  %v955 = vpack.c.b16 %v891, %v891
  %v956 = vpack.c.b16 %v892, %v892
  %v957 = vpack.c.b16 %v893, %v893
  %v958 = vpack.c.b16 %v894, %v894
  %v959 = vpack.c.b16 %v895, %v895
  %v960 = vpack.c.b16 %v896, %v896
  %v961 = vpack.c.b16 %v897, %v897
  %v962 = vpack.c.b16 %v898, %v898
  %v963 = vpack.c.b16 %v899, %v899
  %v964 = vpack.c.b16 %v900, %v900
  %v965 = vpack.c.b16 %v901, %v901
  %v966 = vpack.c.b16 %v902, %v902
  %v967 = vpack.c.b16 %v903, %v903
  %v968 = vpack.c.b16 %v904, %v904
  %v969 = vpack.c.b16 %v905, %v905
  %v970 = vpack.c.b16 %v906, %v906
  %v971 = vpack.c.b16 %v907, %v907
  %v972 = vpack.c.b16 %v908, %v908
  %v973 = vpack.c.b16 %v909, %v909
  %v974 = vpack.c.b16 %v910, %v910
  %v975 = vpack.c.b16 %v911, %v911
  %v976 = vpack.c.b16 %v912, %v912
  %v977 = vpack.c.b16 %v913, %v913
  %v978 = vpack.c.b16 %v914, %v914
  %v979 = vpack.c.b16 %v915, %v915
  %v980 = vpack.c.b16 %v916, %v916
  %v981 = vpack.c.b16 %v917, %v917
  %v982 = vpack.c.b16 %v918, %v918
  %v983 = vpack.c.b16 %v919, %v919
  %v984 = vpack.c.b16 %v920, %v920
  %v985 = vpack.c.b16 %v921, %v921
  %v986 = vpack.c.b16 %v922, %v922
  %v987 = vpack.c.b16 %v923, %v923
  %v988 = vpack.c.b16 %v924, %v924
  %v989 = vpack.c.b16 %v925, %v925
  %v990 = vpack.c.b16 %v926, %v926
  %v991 = vpack.c.b16 %v927, %v927
  %v992 = vpack.c.b16 %v928, %v928
  %v993 = vpack.c.b16 %v929, %v929
  %v994 = vpack.c.b16 %v930, %v930
  %v995 = vpack.c.b16 %v931, %v931
  %v996 = vpack.c.b16 %v932, %v932
  %v997 = vpack.c.b16 %v933, %v933
  %v998 = vpack.c.b16 %v934, %v934
  %v999 = vpack.c.b16 %v935, %v935
  %v1000 = vpack.c.b16 %v936, %v936
  %v1001 = vpack.c.b16 %v937, %v937
  %v1002 = vpack.c.b16 %v938, %v938
  %v1003 = vpack.c.b16 %v939, %v939
  %v1004 = vpack.c.b16 %v940, %v940
  %v1005 = vpack.c.b16 %v941, %v941
  %v1006 = vpack.c.b16 %v942, %v942
  %v1007 = vpack.c.b16 %v943, %v943
  %v1008 = vpack.c.b16 %v944, %v944
  %v1009 = vpack.c.b16 %v945, %v945
  %v1010 = vpack.c.b16 %v946, %v946
  %v1011 = vpack.c.b16 %v947, %v947
  %v1012 = vpack.c.b16 %v948, %v948
  %v1013 = vpack.c.b16 %v949, %v949
  %v1014 = vpack.c.b16 %v950, %v950
  %v1015 = vpack.c.b16 %v951, %v951
  %v1016 = vpack.c.b16 %v952, %v952
  %vm1081 = vcmask 257024
  %1082 = vst.msk [vmem:[%s2] sm:$0xf] %vm1081, %v953
  %1083 = vst.msk [vmem:[%s2 + $0x4] sm:$0xf] %vm1081, %v954
  %1084 = vst.msk [vmem:[%s2 + $0x8] sm:$0xf] %vm1081, %v955
  %1085 = vst.msk [vmem:[%s2 + $0xc] sm:$0xf] %vm1081, %v956
  %1086 = vst.msk [vmem:[%s2 + $0x10] sm:$0xf] %vm1081, %v957
  %1087 = vst.msk [vmem:[%s2 + $0x14] sm:$0xf] %vm1081, %v958
  %1088 = vst.msk [vmem:[%s2 + $0x18] sm:$0xf] %vm1081, %v959
  %1089 = vst.msk [vmem:[%s2 + $0x1c] sm:$0xf] %vm1081, %v960
  %1090 = vst.msk [vmem:[%s2 + $0x20] sm:$0xf] %vm1081, %v961
  %1091 = vst.msk [vmem:[%s2 + $0x24] sm:$0xf] %vm1081, %v962
  %1092 = vst.msk [vmem:[%s2 + $0x28] sm:$0xf] %vm1081, %v963
  %1093 = vst.msk [vmem:[%s2 + $0x2c] sm:$0xf] %vm1081, %v964
  %1094 = vst.msk [vmem:[%s2 + $0x30] sm:$0xf] %vm1081, %v965
  %1095 = vst.msk [vmem:[%s2 + $0x34] sm:$0xf] %vm1081, %v966
  %1096 = vst.msk [vmem:[%s2 + $0x38] sm:$0xf] %vm1081, %v967
  %1097 = vst.msk [vmem:[%s2 + $0x3c] sm:$0xf] %vm1081, %v968
  %1098 = vst.msk [vmem:[%s2 + $0x40] sm:$0xf] %vm1081, %v969
  %1099 = vst.msk [vmem:[%s2 + $0x44] sm:$0xf] %vm1081, %v970
  %1100 = vst.msk [vmem:[%s2 + $0x48] sm:$0xf] %vm1081, %v971
  %1101 = vst.msk [vmem:[%s2 + $0x4c] sm:$0xf] %vm1081, %v972
  %1102 = vst.msk [vmem:[%s2 + $0x50] sm:$0xf] %vm1081, %v973
  %1103 = vst.msk [vmem:[%s2 + $0x54] sm:$0xf] %vm1081, %v974
  %1104 = vst.msk [vmem:[%s2 + $0x58] sm:$0xf] %vm1081, %v975
  %1105 = vst.msk [vmem:[%s2 + $0x5c] sm:$0xf] %vm1081, %v976
  %1106 = vst.msk [vmem:[%s2 + $0x60] sm:$0xf] %vm1081, %v977
  %1107 = vst.msk [vmem:[%s2 + $0x64] sm:$0xf] %vm1081, %v978
  %1108 = vst.msk [vmem:[%s2 + $0x68] sm:$0xf] %vm1081, %v979
  %1109 = vst.msk [vmem:[%s2 + $0x6c] sm:$0xf] %vm1081, %v980
  %1110 = vst.msk [vmem:[%s2 + $0x70] sm:$0xf] %vm1081, %v981
  %1111 = vst.msk [vmem:[%s2 + $0x74] sm:$0xf] %vm1081, %v982
  %1112 = vst.msk [vmem:[%s2 + $0x78] sm:$0xf] %vm1081, %v983
  %1113 = vst.msk [vmem:[%s2 + $0x7c] sm:$0xf] %vm1081, %v984
  %1114 = vst.msk [vmem:[%s2 + $0x80] sm:$0xf] %vm1081, %v985
  %1115 = vst.msk [vmem:[%s2 + $0x84] sm:$0xf] %vm1081, %v986
  %1116 = vst.msk [vmem:[%s2 + $0x88] sm:$0xf] %vm1081, %v987
  %1117 = vst.msk [vmem:[%s2 + $0x8c] sm:$0xf] %vm1081, %v988
  %1118 = vst.msk [vmem:[%s2 + $0x90] sm:$0xf] %vm1081, %v989
  %1119 = vst.msk [vmem:[%s2 + $0x94] sm:$0xf] %vm1081, %v990
  %1120 = vst.msk [vmem:[%s2 + $0x98] sm:$0xf] %vm1081, %v991
  %1121 = vst.msk [vmem:[%s2 + $0x9c] sm:$0xf] %vm1081, %v992
  %1122 = vst.msk [vmem:[%s2 + $0xa0] sm:$0xf] %vm1081, %v993
  %1123 = vst.msk [vmem:[%s2 + $0xa4] sm:$0xf] %vm1081, %v994
  %1124 = vst.msk [vmem:[%s2 + $0xa8] sm:$0xf] %vm1081, %v995
  %1125 = vst.msk [vmem:[%s2 + $0xac] sm:$0xf] %vm1081, %v996
  %1126 = vst.msk [vmem:[%s2 + $0xb0] sm:$0xf] %vm1081, %v997
  %1127 = vst.msk [vmem:[%s2 + $0xb4] sm:$0xf] %vm1081, %v998
  %1128 = vst.msk [vmem:[%s2 + $0xb8] sm:$0xf] %vm1081, %v999
  %1129 = vst.msk [vmem:[%s2 + $0xbc] sm:$0xf] %vm1081, %v1000
  %1130 = vst.msk [vmem:[%s2 + $0xc0] sm:$0xf] %vm1081, %v1001
  %1131 = vst.msk [vmem:[%s2 + $0xc4] sm:$0xf] %vm1081, %v1002
  %1132 = vst.msk [vmem:[%s2 + $0xc8] sm:$0xf] %vm1081, %v1003
  %1133 = vst.msk [vmem:[%s2 + $0xcc] sm:$0xf] %vm1081, %v1004
  %1134 = vst.msk [vmem:[%s2 + $0xd0] sm:$0xf] %vm1081, %v1005
  %1135 = vst.msk [vmem:[%s2 + $0xd4] sm:$0xf] %vm1081, %v1006
  %1136 = vst.msk [vmem:[%s2 + $0xd8] sm:$0xf] %vm1081, %v1007
  %1137 = vst.msk [vmem:[%s2 + $0xdc] sm:$0xf] %vm1081, %v1008
  %1138 = vst.msk [vmem:[%s2 + $0xe0] sm:$0xf] %vm1081, %v1009
  %1139 = vst.msk [vmem:[%s2 + $0xe4] sm:$0xf] %vm1081, %v1010
  %1140 = vst.msk [vmem:[%s2 + $0xe8] sm:$0xf] %vm1081, %v1011
  %1141 = vst.msk [vmem:[%s2 + $0xec] sm:$0xf] %vm1081, %v1012
  %1142 = vst.msk [vmem:[%s2 + $0xf0] sm:$0xf] %vm1081, %v1013
  %1143 = vst.msk [vmem:[%s2 + $0xf4] sm:$0xf] %vm1081, %v1014
  %1144 = vst.msk [vmem:[%s2 + $0xf8] sm:$0xf] %vm1081, %v1015
  %1145 = vst.msk [vmem:[%s2 + $0xfc] sm:$0xf] %vm1081, %v1016
  %vm1146 = vcmask 261120
  %v1147 = vsel %vm1146, %v571, 0.0
  %v1148 = vsel %vm1146, %v574, 0.0
  %v1149 = vadd.f32 %v1147, %v1148
  %v1150 = vsel %vm1146, %v579, 0.0
  %v1151 = vadd.f32 %v1149, %v1150
  %v1152 = vsel %vm1146, %v582, 0.0
  %v1153 = vadd.f32 %v1151, %v1152
  %v1154 = vsel %vm1146, %v587, 0.0
  %v1155 = vadd.f32 %v1153, %v1154
  %v1156 = vsel %vm1146, %v590, 0.0
  %v1157 = vadd.f32 %v1155, %v1156
  %v1158 = vsel %vm1146, %v595, 0.0
  %v1159 = vadd.f32 %v1157, %v1158
  %v1160 = vsel %vm1146, %v598, 0.0
  %v1161 = vadd.f32 %v1159, %v1160
  %v1162 = vsel %vm1146, %v603, 0.0
  %v1163 = vadd.f32 %v1161, %v1162
  %v1164 = vsel %vm1146, %v606, 0.0
  %v1165 = vadd.f32 %v1163, %v1164
  %v1166 = vsel %vm1146, %v611, 0.0
  %v1167 = vadd.f32 %v1165, %v1166
  %v1168 = vsel %vm1146, %v614, 0.0
  %v1169 = vadd.f32 %v1167, %v1168
  %v1170 = vsel %vm1146, %v619, 0.0
  %v1171 = vadd.f32 %v1169, %v1170
  %v1172 = vsel %vm1146, %v622, 0.0
  %v1173 = vadd.f32 %v1171, %v1172
  %v1174 = vsel %vm1146, %v627, 0.0
  %v1175 = vadd.f32 %v1173, %v1174
  %v1176 = vsel %vm1146, %v630, 0.0
  %v1177 = vadd.f32 %v1175, %v1176
  %v1178 = vsel %vm1146, %v635, 0.0
  %v1179 = vadd.f32 %v1177, %v1178
  %v1180 = vsel %vm1146, %v638, 0.0
  %v1181 = vadd.f32 %v1179, %v1180
  %v1182 = vsel %vm1146, %v643, 0.0
  %v1183 = vadd.f32 %v1181, %v1182
  %v1184 = vsel %vm1146, %v646, 0.0
  %v1185 = vadd.f32 %v1183, %v1184
  %v1186 = vsel %vm1146, %v651, 0.0
  %v1187 = vadd.f32 %v1185, %v1186
  %v1188 = vsel %vm1146, %v654, 0.0
  %v1189 = vadd.f32 %v1187, %v1188
  %v1190 = vsel %vm1146, %v659, 0.0
  %v1191 = vadd.f32 %v1189, %v1190
  %v1192 = vsel %vm1146, %v662, 0.0
  %v1193 = vadd.f32 %v1191, %v1192
  %v1194 = vsel %vm1146, %v667, 0.0
  %v1195 = vadd.f32 %v1193, %v1194
  %v1196 = vsel %vm1146, %v670, 0.0
  %v1197 = vadd.f32 %v1195, %v1196
  %v1198 = vsel %vm1146, %v675, 0.0
  %v1199 = vadd.f32 %v1197, %v1198
  %v1200 = vsel %vm1146, %v678, 0.0
  %v1201 = vadd.f32 %v1199, %v1200
  %v1202 = vsel %vm1146, %v683, 0.0
  %v1203 = vadd.f32 %v1201, %v1202
  %v1204 = vsel %vm1146, %v686, 0.0
  %v1205 = vadd.f32 %v1203, %v1204
  %v1206 = vsel %vm1146, %v691, 0.0
  %v1207 = vadd.f32 %v1205, %v1206
  %v1208 = vsel %vm1146, %v694, 0.0
  %v1209 = vadd.f32 %v1207, %v1208
  %v1210 = vsel %vm1146, %v699, 0.0
  %v1211 = vadd.f32 %v1209, %v1210
  %v1212 = vsel %vm1146, %v702, 0.0
  %v1213 = vadd.f32 %v1211, %v1212
  %v1214 = vsel %vm1146, %v707, 0.0
  %v1215 = vadd.f32 %v1213, %v1214
  %v1216 = vsel %vm1146, %v710, 0.0
  %v1217 = vadd.f32 %v1215, %v1216
  %v1218 = vsel %vm1146, %v715, 0.0
  %v1219 = vadd.f32 %v1217, %v1218
  %v1220 = vsel %vm1146, %v718, 0.0
  %v1221 = vadd.f32 %v1219, %v1220
  %v1222 = vsel %vm1146, %v723, 0.0
  %v1223 = vadd.f32 %v1221, %v1222
  %v1224 = vsel %vm1146, %v726, 0.0
  %v1225 = vadd.f32 %v1223, %v1224
  %v1226 = vsel %vm1146, %v731, 0.0
  %v1227 = vadd.f32 %v1225, %v1226
  %v1228 = vsel %vm1146, %v734, 0.0
  %v1229 = vadd.f32 %v1227, %v1228
  %v1230 = vsel %vm1146, %v739, 0.0
  %v1231 = vadd.f32 %v1229, %v1230
  %v1232 = vsel %vm1146, %v742, 0.0
  %v1233 = vadd.f32 %v1231, %v1232
  %v1234 = vsel %vm1146, %v747, 0.0
  %v1235 = vadd.f32 %v1233, %v1234
  %v1236 = vsel %vm1146, %v750, 0.0
  %v1237 = vadd.f32 %v1235, %v1236
  %v1238 = vsel %vm1146, %v755, 0.0
  %v1239 = vadd.f32 %v1237, %v1238
  %v1240 = vsel %vm1146, %v758, 0.0
  %v1241 = vadd.f32 %v1239, %v1240
  %v1242 = vsel %vm1146, %v763, 0.0
  %v1243 = vadd.f32 %v1241, %v1242
  %v1244 = vsel %vm1146, %v766, 0.0
  %v1245 = vadd.f32 %v1243, %v1244
  %v1246 = vsel %vm1146, %v771, 0.0
  %v1247 = vadd.f32 %v1245, %v1246
  %v1248 = vsel %vm1146, %v774, 0.0
  %v1249 = vadd.f32 %v1247, %v1248
  %v1250 = vsel %vm1146, %v779, 0.0
  %v1251 = vadd.f32 %v1249, %v1250
  %v1252 = vsel %vm1146, %v782, 0.0
  %v1253 = vadd.f32 %v1251, %v1252
  %v1254 = vsel %vm1146, %v787, 0.0
  %v1255 = vadd.f32 %v1253, %v1254
  %v1256 = vsel %vm1146, %v790, 0.0
  %v1257 = vadd.f32 %v1255, %v1256
  %v1258 = vsel %vm1146, %v795, 0.0
  %v1259 = vadd.f32 %v1257, %v1258
  %v1260 = vsel %vm1146, %v798, 0.0
  %v1261 = vadd.f32 %v1259, %v1260
  %v1262 = vsel %vm1146, %v803, 0.0
  %v1263 = vadd.f32 %v1261, %v1262
  %v1264 = vsel %vm1146, %v806, 0.0
  %v1265 = vadd.f32 %v1263, %v1264
  %v1266 = vsel %vm1146, %v811, 0.0
  %v1267 = vadd.f32 %v1265, %v1266
  %v1268 = vsel %vm1146, %v814, 0.0
  %v1269 = vadd.f32 %v1267, %v1268
  %v1270 = vsel %vm1146, %v819, 0.0
  %v1271 = vadd.f32 %v1269, %v1270
  %v1272 = vsel %vm1146, %v822, 0.0
  %v1273 = vadd.f32 %v1271, %v1272
  %v1274 = vrot.slane %v1273, 4
  %v1275 = vadd.f32 %v1273, %v1274
  %v1276 = vrot.slane %v1275, 2
  %v1277 = vadd.f32 %v1275, %v1276
  %v1278 = vrot.slane %v1277, 1
  %v1279 = vadd.f32 %v1277, %v1278
  %v1280 = vmul.f32 %v571, %v571
  %v1281 = vmul.f32 %v574, %v574
  %v1282 = vmul.f32 %v579, %v579
  %v1283 = vmul.f32 %v582, %v582
  %v1284 = vmul.f32 %v587, %v587
  %v1285 = vmul.f32 %v590, %v590
  %v1286 = vmul.f32 %v595, %v595
  %v1287 = vmul.f32 %v598, %v598
  %v1288 = vmul.f32 %v603, %v603
  %v1289 = vmul.f32 %v606, %v606
  %v1290 = vmul.f32 %v611, %v611
  %v1291 = vmul.f32 %v614, %v614
  %v1292 = vmul.f32 %v619, %v619
  %v1293 = vmul.f32 %v622, %v622
  %v1294 = vmul.f32 %v627, %v627
  %v1295 = vmul.f32 %v630, %v630
  %v1296 = vmul.f32 %v635, %v635
  %v1297 = vmul.f32 %v638, %v638
  %v1298 = vmul.f32 %v643, %v643
  %v1299 = vmul.f32 %v646, %v646
  %v1300 = vmul.f32 %v651, %v651
  %v1301 = vmul.f32 %v654, %v654
  %v1302 = vmul.f32 %v659, %v659
  %v1303 = vmul.f32 %v662, %v662
  %v1304 = vmul.f32 %v667, %v667
  %v1305 = vmul.f32 %v670, %v670
  %v1306 = vmul.f32 %v675, %v675
  %v1307 = vmul.f32 %v678, %v678
  %v1308 = vmul.f32 %v683, %v683
  %v1309 = vmul.f32 %v686, %v686
  %v1310 = vmul.f32 %v691, %v691
  %v1311 = vmul.f32 %v694, %v694
  %v1312 = vmul.f32 %v699, %v699
  %v1313 = vmul.f32 %v702, %v702
  %v1314 = vmul.f32 %v707, %v707
  %v1315 = vmul.f32 %v710, %v710
  %v1316 = vmul.f32 %v715, %v715
  %v1317 = vmul.f32 %v718, %v718
  %v1318 = vmul.f32 %v723, %v723
  %v1319 = vmul.f32 %v726, %v726
  %v1320 = vmul.f32 %v731, %v731
  %v1321 = vmul.f32 %v734, %v734
  %v1322 = vmul.f32 %v739, %v739
  %v1323 = vmul.f32 %v742, %v742
  %v1324 = vmul.f32 %v747, %v747
  %v1325 = vmul.f32 %v750, %v750
  %v1326 = vmul.f32 %v755, %v755
  %v1327 = vmul.f32 %v758, %v758
  %v1328 = vmul.f32 %v763, %v763
  %v1329 = vmul.f32 %v766, %v766
  %v1330 = vmul.f32 %v771, %v771
  %v1331 = vmul.f32 %v774, %v774
  %v1332 = vmul.f32 %v779, %v779
  %v1333 = vmul.f32 %v782, %v782
  %v1334 = vmul.f32 %v787, %v787
  %v1335 = vmul.f32 %v790, %v790
  %v1336 = vmul.f32 %v795, %v795
  %v1337 = vmul.f32 %v798, %v798
  %v1338 = vmul.f32 %v803, %v803
  %v1339 = vmul.f32 %v806, %v806
  %v1340 = vmul.f32 %v811, %v811
  %v1341 = vmul.f32 %v814, %v814
  %v1342 = vmul.f32 %v819, %v819
  %v1343 = vmul.f32 %v822, %v822
  %v1344 = vsel %vm1146, %v1280, 0.0
  %v1345 = vsel %vm1146, %v1281, 0.0
  %v1346 = vadd.f32 %v1344, %v1345
  %v1347 = vsel %vm1146, %v1282, 0.0
  %v1348 = vadd.f32 %v1346, %v1347
  %v1349 = vsel %vm1146, %v1283, 0.0
  %v1350 = vadd.f32 %v1348, %v1349
  %v1351 = vsel %vm1146, %v1284, 0.0
  %v1352 = vadd.f32 %v1350, %v1351
  %v1353 = vsel %vm1146, %v1285, 0.0
  %v1354 = vadd.f32 %v1352, %v1353
  %v1355 = vsel %vm1146, %v1286, 0.0
  %v1356 = vadd.f32 %v1354, %v1355
  %v1357 = vsel %vm1146, %v1287, 0.0
  %v1358 = vadd.f32 %v1356, %v1357
  %v1359 = vsel %vm1146, %v1288, 0.0
  %v1360 = vadd.f32 %v1358, %v1359
  %v1361 = vsel %vm1146, %v1289, 0.0
  %v1362 = vadd.f32 %v1360, %v1361
  %v1363 = vsel %vm1146, %v1290, 0.0
  %v1364 = vadd.f32 %v1362, %v1363
  %v1365 = vsel %vm1146, %v1291, 0.0
  %v1366 = vadd.f32 %v1364, %v1365
  %v1367 = vsel %vm1146, %v1292, 0.0
  %v1368 = vadd.f32 %v1366, %v1367
  %v1369 = vsel %vm1146, %v1293, 0.0
  %v1370 = vadd.f32 %v1368, %v1369
  %v1371 = vsel %vm1146, %v1294, 0.0
  %v1372 = vadd.f32 %v1370, %v1371
  %v1373 = vsel %vm1146, %v1295, 0.0
  %v1374 = vadd.f32 %v1372, %v1373
  %v1375 = vsel %vm1146, %v1296, 0.0
  %v1376 = vadd.f32 %v1374, %v1375
  %v1377 = vsel %vm1146, %v1297, 0.0
  %v1378 = vadd.f32 %v1376, %v1377
  %v1379 = vsel %vm1146, %v1298, 0.0
  %v1380 = vadd.f32 %v1378, %v1379
  %v1381 = vsel %vm1146, %v1299, 0.0
  %v1382 = vadd.f32 %v1380, %v1381
  %v1383 = vsel %vm1146, %v1300, 0.0
  %v1384 = vadd.f32 %v1382, %v1383
  %v1385 = vsel %vm1146, %v1301, 0.0
  %v1386 = vadd.f32 %v1384, %v1385
  %v1387 = vsel %vm1146, %v1302, 0.0
  %v1388 = vadd.f32 %v1386, %v1387
  %v1389 = vsel %vm1146, %v1303, 0.0
  %v1390 = vadd.f32 %v1388, %v1389
  %v1391 = vsel %vm1146, %v1304, 0.0
  %v1392 = vadd.f32 %v1390, %v1391
  %v1393 = vsel %vm1146, %v1305, 0.0
  %v1394 = vadd.f32 %v1392, %v1393
  %v1395 = vsel %vm1146, %v1306, 0.0
  %v1396 = vadd.f32 %v1394, %v1395
  %v1397 = vsel %vm1146, %v1307, 0.0
  %v1398 = vadd.f32 %v1396, %v1397
  %v1399 = vsel %vm1146, %v1308, 0.0
  %v1400 = vadd.f32 %v1398, %v1399
  %v1401 = vsel %vm1146, %v1309, 0.0
  %v1402 = vadd.f32 %v1400, %v1401
  %v1403 = vsel %vm1146, %v1310, 0.0
  %v1404 = vadd.f32 %v1402, %v1403
  %v1405 = vsel %vm1146, %v1311, 0.0
  %v1406 = vadd.f32 %v1404, %v1405
  %v1407 = vsel %vm1146, %v1312, 0.0
  %v1408 = vadd.f32 %v1406, %v1407
  %v1409 = vsel %vm1146, %v1313, 0.0
  %v1410 = vadd.f32 %v1408, %v1409
  %v1411 = vsel %vm1146, %v1314, 0.0
  %v1412 = vadd.f32 %v1410, %v1411
  %v1413 = vsel %vm1146, %v1315, 0.0
  %v1414 = vadd.f32 %v1412, %v1413
  %v1415 = vsel %vm1146, %v1316, 0.0
  %v1416 = vadd.f32 %v1414, %v1415
  %v1417 = vsel %vm1146, %v1317, 0.0
  %v1418 = vadd.f32 %v1416, %v1417
  %v1419 = vsel %vm1146, %v1318, 0.0
  %v1420 = vadd.f32 %v1418, %v1419
  %v1421 = vsel %vm1146, %v1319, 0.0
  %v1422 = vadd.f32 %v1420, %v1421
  %v1423 = vsel %vm1146, %v1320, 0.0
  %v1424 = vadd.f32 %v1422, %v1423
  %v1425 = vsel %vm1146, %v1321, 0.0
  %v1426 = vadd.f32 %v1424, %v1425
  %v1427 = vsel %vm1146, %v1322, 0.0
  %v1428 = vadd.f32 %v1426, %v1427
  %v1429 = vsel %vm1146, %v1323, 0.0
  %v1430 = vadd.f32 %v1428, %v1429
  %v1431 = vsel %vm1146, %v1324, 0.0
  %v1432 = vadd.f32 %v1430, %v1431
  %v1433 = vsel %vm1146, %v1325, 0.0
  %v1434 = vadd.f32 %v1432, %v1433
  %v1435 = vsel %vm1146, %v1326, 0.0
  %v1436 = vadd.f32 %v1434, %v1435
  %v1437 = vsel %vm1146, %v1327, 0.0
  %v1438 = vadd.f32 %v1436, %v1437
  %v1439 = vsel %vm1146, %v1328, 0.0
  %v1440 = vadd.f32 %v1438, %v1439
  %v1441 = vsel %vm1146, %v1329, 0.0
  %v1442 = vadd.f32 %v1440, %v1441
  %v1443 = vsel %vm1146, %v1330, 0.0
  %v1444 = vadd.f32 %v1442, %v1443
  %v1445 = vsel %vm1146, %v1331, 0.0
  %v1446 = vadd.f32 %v1444, %v1445
  %v1447 = vsel %vm1146, %v1332, 0.0
  %v1448 = vadd.f32 %v1446, %v1447
  %v1449 = vsel %vm1146, %v1333, 0.0
  %v1450 = vadd.f32 %v1448, %v1449
  %v1451 = vsel %vm1146, %v1334, 0.0
  %v1452 = vadd.f32 %v1450, %v1451
  %v1453 = vsel %vm1146, %v1335, 0.0
  %v1454 = vadd.f32 %v1452, %v1453
  %v1455 = vsel %vm1146, %v1336, 0.0
  %v1456 = vadd.f32 %v1454, %v1455
  %v1457 = vsel %vm1146, %v1337, 0.0
  %v1458 = vadd.f32 %v1456, %v1457
  %v1459 = vsel %vm1146, %v1338, 0.0
  %v1460 = vadd.f32 %v1458, %v1459
  %v1461 = vsel %vm1146, %v1339, 0.0
  %v1462 = vadd.f32 %v1460, %v1461
  %v1463 = vsel %vm1146, %v1340, 0.0
  %v1464 = vadd.f32 %v1462, %v1463
  %v1465 = vsel %vm1146, %v1341, 0.0
  %v1466 = vadd.f32 %v1464, %v1465
  %v1467 = vsel %vm1146, %v1342, 0.0
  %v1468 = vadd.f32 %v1466, %v1467
  %v1469 = vsel %vm1146, %v1343, 0.0
  %v1470 = vadd.f32 %v1468, %v1469
  %v1471 = vrot.slane %v1470, 4
  %v1472 = vadd.f32 %v1470, %v1471
  %v1473 = vrot.slane %v1472, 2
  %v1474 = vadd.f32 %v1472, %v1473
  %v1475 = vrot.slane %v1474, 1
  %v1476 = vadd.f32 %v1474, %v1475
  %1477 = vst.msk [vmem:[%s3] sm:$0xff] %vm1146, %v1279
  %1478 = vst.msk [vmem:[%s4] sm:$0xff] %vm1146, %v1476
  // Predicated region
  $region10: #{generator_forward.15} parent=0 // pred_check
    _
  $region11: #{generator_forward.15} parent=0 // pred_check_branch
    %1480 = sbr.rel (0) target = $region13
  $region12: #{generator_forward.15} parent=0 // pred_region
    _
  $region13: #{generator_forward.15} parent=0 // pred_fallthru
    _
  // Predicated region
  $region14: #{generator_forward.15} parent=0 // pred_check
    _
  $region15: #{generator_forward.15} parent=0 // pred_check_branch
    %1482 = sbr.rel (0) target = $region17
  $region16: #{generator_forward.15} parent=0 // pred_region
    _
  $region17: #{generator_forward.15} parent=0 // pred_fallthru
    _
  // Predicated region
  $region18: #{generator_forward.15} parent=0 // pred_check
    _
  $region19: #{generator_forward.15} parent=0 // pred_check_branch
    %1484 = sbr.rel (0) target = $region21
  $region20: #{generator_forward.15} parent=0 // pred_region
    _
  $region21: #{generator_forward.15} parent=0 // pred_fallthru
    _
  // Predicated region
  $region22: #{generator_forward.15} parent=0 // pred_check
    _
  $region23: #{generator_forward.15} parent=0 // pred_check_branch
    %1486 = sbr.rel (0) target = $region25
  $region24: #{generator_forward.15} parent=0 // pred_region
    _
  $region25: #{generator_forward.15} parent=0 // pred_fallthru
    _
  // Predicated region
  $region26: #{generator_forward.15} parent=0 // pred_check
    _
  $region27: #{generator_forward.15} parent=0 // pred_check_branch
    %1488 = sbr.rel (0) target = $region29
  $region28: #{generator_forward.15} parent=0 // pred_region
    _
  $region29: #{generator_forward.15} parent=0 // pred_fallthru
    _
  // Predicated region
  $region30: #{generator_forward.15} parent=0 // pred_check
    _
  $region31: #{generator_forward.15} parent=0 // pred_check_branch
    %1490 = sbr.rel (0) target = $region33
  $region32: #{generator_forward.15} parent=0 // pred_region
    _
  $region33: #{generator_forward.15} parent=0 // pred_fallthru
    _

// kernel: tile.122
$region0: #{tile.122}
  #allocation0 [shape = 's32[1]{0}', space=sflag, size = 0x4, scoped, tag = 'scoped memory for tile.122']
  %s0 = inlined_call_operand.vmem [shape: f32[8], index: 0, kind: input, shape index: {}]
  %s1 = inlined_call_operand.vmem [shape: f32[4,8], index: 1, kind: output, shape index: {}]
  // Predicated region
  $region2: #{tile.122} parent=0 // pred_check
    _
  $region3: #{tile.122} parent=0 // pred_check_branch
    %3 = sbr.rel (0) target = $region5
  $region4: #{tile.122} parent=0 // pred_region
    _
  $region5: #{tile.122} parent=0 // pred_fallthru
    _
  %v4 = vld [vmem:[%s0] ss:$0 sm:$0xff]
  %5 = vst [vmem:[%s1] sm:$0xf] %v4

// kernel: tile.130
$region0: #{tile.130}
  %s0 = inlined_call_operand.vmem [shape: f32[4,8], index: 0, kind: input, shape index: {}]
  %s1 = inlined_call_operand.vmem [shape: f32[32], index: 1, kind: output, shape index: {}]
  $region1: #{tile.130} parent=0
    #allocation0 [shape = 'u8[4096]{0}', space=vmem, size = 0x1000, scoped, tag = 'scoped mem for output reshape']
    #allocation1 [shape = 'u8[4096]{0}', space=vmem, size = 0x1000, scoped, tag = 'scoped mem for input reshape']
    %s3 = sshllo.u32 0, 4
    %v4 = vld [vmem:[%s0] sm:%s3]
    %5 = vst [vmem:[#allocation1] sm:%s3] %v4
    %v6 = vld [vmem:[#allocation1] sm:$0x1]
    %vm7 = vcmask 64512
    %8 = vst.msk [vmem:[#allocation0] sm:$0x1] %vm7, %v6
    %s9 = scalar_lea.vmem [#allocation1], 3
    %v10 = vld [vmem:[%s9] sm:$0x1]
    %11 = vrot.lane.b32.xlu0 %v10, 24
    %v12 = vpop.permute.xlu0 %11
    %vm13 = vcmask 261312
    %14 = vst.msk [vmem:[#allocation0] sm:$0x1] %vm13, %v12
    %s15 = scalar_lea.vmem [#allocation1], 2
    %v16 = vld [vmem:[%s15] sm:$0x1]
    %17 = vrot.lane.b32.xlu0 %v16, 16
    %v18 = vpop.permute.xlu0 %17
    %vm19 = vcmask 195712
    %20 = vst.msk [vmem:[#allocation0] sm:$0x1] %vm19, %v18
    %s21 = scalar_lea.vmem [#allocation1], 1
    %v22 = vld [vmem:[%s21] sm:$0x1]
    %23 = vrot.lane.b32.xlu0 %v22, 8
    %v24 = vpop.permute.xlu0 %23
    %vm25 = vcmask 130112
    %26 = vst.msk [vmem:[#allocation0] sm:$0x1] %vm25, %v24
    %s28 = sshllo.u32 0, 1
    %v30 = vld [vmem:[#allocation0] sm:%s28]
    %s31 = sshllo.u32 0, 1
    %32 = vst [vmem:[%s1] sm:%s31] %v30

// kernel: tile.126
$region0: #{tile.126}
  #allocation0 [shape = 's32[1]{0}', space=sflag, size = 0x4, scoped, tag = 'scoped memory for tile.126']
  %s0 = inlined_call_operand.vmem [shape: f32[32], index: 0, kind: input, shape index: {}]
  %s1 = inlined_call_operand.vmem [shape: f32[8,32], index: 1, kind: output, shape index: {}]
  // Predicated region
  $region2: #{tile.126} parent=0 // pred_check
    _
  $region3: #{tile.126} parent=0 // pred_check_branch
    %3 = sbr.rel (0) target = $region5
  $region4: #{tile.126} parent=0 // pred_region
    _
  $region5: #{tile.126} parent=0 // pred_fallthru
    _
  %v4 = vld [vmem:[%s0] ss:$0 sm:$0xff]
  %5 = vst [vmem:[%s1] sm:$0xff] %v4

// kernel: tile.127
$region0: #{tile.127}
  %s0 = inlined_call_operand.vmem [shape: f32[8,32], index: 0, kind: input, shape index: {}]
  %s1 = inlined_call_operand.vmem [shape: f32[1,256], index: 1, kind: output, shape index: {}]
  $region1: #{tile.127} parent=0
    #allocation0 [shape = 'u8[8192]{0}', space=vmem, size = 0x2000, scoped, tag = 'scoped mem for output reshape']
    %s2 = smov 3
    %v3 = vld [vmem:[%s0] ss:$4 sm:%s2]
    %vm4 = vcmask 261120
    %5 = vst.msk [vmem:[#allocation0] ss:$8 sm:$0x3] %vm4, %v3
    %s6 = scalar_lea.vmem %s0, 3
    %s7 = smov 3
    %v8 = vld [vmem:[%s6] ss:$4 sm:%s7]
    %9 = vrot.lane.b32.xlu0 %v8, 96
    %v10 = vpop.permute.xlu0 %9
    %vm11 = vcmask 1048320
    %12 = vst.msk [vmem:[#allocation0] ss:$8 sm:$0x3] %vm11, %v10
    %s13 = scalar_lea.vmem %s0, 2
    %s14 = smov 3
    %v15 = vld [vmem:[%s13] ss:$4 sm:%s14]
    %16 = vrot.lane.b32.xlu0 %v15, 64
    %v17 = vpop.permute.xlu0 %16
    %vm18 = vcmask 785920
    %19 = vst.msk [vmem:[#allocation0] ss:$8 sm:$0x3] %vm18, %v17
    %s20 = scalar_lea.vmem %s0, 1
    %s21 = smov 3
    %v22 = vld [vmem:[%s20] ss:$4 sm:%s21]
    %23 = vrot.lane.b32.xlu0 %v22, 32
    %v24 = vpop.permute.xlu0 %23
    %vm25 = vcmask 523520
    %26 = vst.msk [vmem:[#allocation0] ss:$8 sm:$0x3] %vm25, %v24
    %s28 = sshllo.u32 0, 1
    %v30 = vld [vmem:[#allocation0] sm:%s28]
    %s31 = sshllo.u32 0, 1
    %32 = vst [vmem:[%s1] sm:%s31] %v30
    %s33 = scalar_lea.vmem [#allocation0], 8
    %v34 = vld [vmem:[%s33] sm:%s28]
    %s35 = sshllo.u32 0, 1
    %s36 = scalar_lea.vmem %s1, 1
    %37 = vst [vmem:[%s36] sm:%s35] %v34

// kernel: generator_forward.16
$region0: #{generator_forward.16}
  #allocation0 [shape = 'u32[]', space=smem, size = 0x4, offset = 0x4, fixed_abs, tag = 'smem constant byte address 0x4 - core index']
  #allocation1 [shape = 'u32[144,128]{1,0:T(1,128)}', space=vmem, size = 0x12000, scoped, tag = 'internal scratch']
  %s0 = inlined_call_operand.vmem [shape: bf16[64,256], index: 0, kind: input, shape index: {}]
  %s1 = inlined_call_operand.vmem [shape: f32[1,256], index: 1, kind: input, shape index: {}]
  %s2 = inlined_call_operand.vmem [shape: f32[1,256], index: 2, kind: input, shape index: {}]
  %s3 = inlined_call_operand.vmem [shape: bf16[64,256], index: 3, kind: output, shape index: {}]
  %s4 = sld [smem:[#allocation0]]
  $region22: #{generator_forward.16} parent=0
    _
  %s6 = ssub.s32 1, %s4
  %s7 = scalar_select 0, %s6, %s4
  // Predicated region
  $region2: #{generator_forward.16} parent=0 // pred_check
    _
  $region3: #{generator_forward.16} parent=0 // pred_check_branch
    %9 = sbr.rel (0) target = $region5
  $region4: #{generator_forward.16} parent=0 // pred_region
    _
  $region5: #{generator_forward.16} parent=0 // pred_fallthru
    _
  // Predicated region
  $region6: #{generator_forward.16} parent=0 // pred_check
    _
  $region7: #{generator_forward.16} parent=0 // pred_check_branch
    %11 = sbr.rel (0) target = $region9
  $region8: #{generator_forward.16} parent=0 // pred_region
    _
  $region9: #{generator_forward.16} parent=0 // pred_fallthru
    _
  // Predicated region
  $region10: #{generator_forward.16} parent=0 // pred_check
    _
  $region11: #{generator_forward.16} parent=0 // pred_check_branch
    %13 = sbr.rel (0) target = $region13
  $region12: #{generator_forward.16} parent=0 // pred_region
    _
  $region13: #{generator_forward.16} parent=0 // pred_fallthru
    _
  %v14 = vld [vmem:[%s0] sm:$0xff]
  %v15 = vld [vmem:[%s0 + $0x8] sm:$0xff]
  %v16 = vld [vmem:[%s0 + $0x10] sm:$0xff]
  %v17 = vld [vmem:[%s0 + $0x18] sm:$0xff]
  %v18 = vld [vmem:[%s0 + $0x20] sm:$0xff]
  %v19 = vld [vmem:[%s0 + $0x28] sm:$0xff]
  %v20 = vld [vmem:[%s0 + $0x30] sm:$0xff]
  %v21 = vld [vmem:[%s0 + $0x38] sm:$0xff]
  %v22 = vunpack.c.l.bf16 %v14
  %v23 = vunpack.c.h.bf16 %v14
  %v24 = vunpack.c.l.bf16 %v15
  %v25 = vunpack.c.h.bf16 %v15
  %v26 = vunpack.c.l.bf16 %v16
  %v27 = vunpack.c.h.bf16 %v16
  %v28 = vunpack.c.l.bf16 %v17
  %v29 = vunpack.c.h.bf16 %v17
  %v30 = vunpack.c.l.bf16 %v18
  %v31 = vunpack.c.h.bf16 %v18
  %v32 = vunpack.c.l.bf16 %v19
  %v33 = vunpack.c.h.bf16 %v19
  %v34 = vunpack.c.l.bf16 %v20
  %v35 = vunpack.c.h.bf16 %v20
  %v36 = vunpack.c.l.bf16 %v21
  %v37 = vunpack.c.h.bf16 %v21
  %v38 = vld [vmem:[%s1] sm:$0x3]
  %v40 = vlaneseq
  %v41 = vshrl.u32 %v40, 7
  %v42 = vsub.s32 0, %v41
  %v43 = vrot.slane %v38, %v42
  %v44 = vlaneseq
  %v45 = vshrl.u32 %v44, 7
  %v46 = vsub.s32 1, %v45
  %v47 = vrot.slane %v38, %v46
  %v50 = vmul.f32 %v22, %v43
  %v51 = vmul.f32 %v23, %v47
  %v52 = vmul.f32 %v24, %v43
  %v53 = vmul.f32 %v25, %v47
  %v54 = vmul.f32 %v26, %v43
  %v55 = vmul.f32 %v27, %v47
  %v56 = vmul.f32 %v28, %v43
  %v57 = vmul.f32 %v29, %v47
  %v58 = vmul.f32 %v30, %v43
  %v59 = vmul.f32 %v31, %v47
  %v60 = vmul.f32 %v32, %v43
  %v61 = vmul.f32 %v33, %v47
  %v62 = vmul.f32 %v34, %v43
  %v63 = vmul.f32 %v35, %v47
  %v64 = vmul.f32 %v36, %v43
  %v65 = vmul.f32 %v37, %v47
  %v66 = vld [vmem:[%s2] sm:$0x3]
  %v68 = vlaneseq
  %v69 = vshrl.u32 %v68, 7
  %v70 = vsub.s32 0, %v69
  %v71 = vrot.slane %v66, %v70
  %v72 = vlaneseq
  %v73 = vshrl.u32 %v72, 7
  %v74 = vsub.s32 1, %v73
  %v75 = vrot.slane %v66, %v74
  %v78 = vadd.f32 %v50, %v71
  %v79 = vadd.f32 %v51, %v75
  %v80 = vadd.f32 %v52, %v71
  %v81 = vadd.f32 %v53, %v75
  %v82 = vadd.f32 %v54, %v71
  %v83 = vadd.f32 %v55, %v75
  %v84 = vadd.f32 %v56, %v71
  %v85 = vadd.f32 %v57, %v75
  %v86 = vadd.f32 %v58, %v71
  %v87 = vadd.f32 %v59, %v75
  %v88 = vadd.f32 %v60, %v71
  %v89 = vadd.f32 %v61, %v75
  %v90 = vadd.f32 %v62, %v71
  %v91 = vadd.f32 %v63, %v75
  %v92 = vadd.f32 %v64, %v71
  %v93 = vadd.f32 %v65, %v75
  %v94 = vmax.f32 %v78, 0.0
  %v95 = vmax.f32 %v79, 0.0
  %v96 = vmax.f32 %v80, 0.0
  %v97 = vmax.f32 %v81, 0.0
  %v98 = vmax.f32 %v82, 0.0
  %v99 = vmax.f32 %v83, 0.0
  %v100 = vmax.f32 %v84, 0.0
  %v101 = vmax.f32 %v85, 0.0
  %v102 = vmax.f32 %v86, 0.0
  %v103 = vmax.f32 %v87, 0.0
  %v104 = vmax.f32 %v88, 0.0
  %v105 = vmax.f32 %v89, 0.0
  %v106 = vmax.f32 %v90, 0.0
  %v107 = vmax.f32 %v91, 0.0
  %v108 = vmax.f32 %v92, 0.0
  %v109 = vmax.f32 %v93, 0.0
  %v110 = vpack.c.bf16 %v96, %v94
  %v111 = vpack.c.bf16 %v97, %v95
  %v112 = vpack.c.bf16 %v100, %v98
  %v113 = vpack.c.bf16 %v101, %v99
  %v114 = vpack.c.bf16 %v104, %v102
  %v115 = vpack.c.bf16 %v105, %v103
  %v116 = vpack.c.bf16 %v108, %v106
  %v117 = vpack.c.bf16 %v109, %v107
  %v126 = vunpack.c.l.b16 %v110
  %v127 = vunpack.c.l.b16 %v111
  %v128 = vunpack.c.h.b16 %v110
  %v129 = vunpack.c.h.b16 %v111
  %v130 = vunpack.c.l.b16 %v112
  %v131 = vunpack.c.l.b16 %v113
  %v132 = vunpack.c.h.b16 %v112
  %v133 = vunpack.c.h.b16 %v113
  %v134 = vunpack.c.l.b16 %v114
  %v135 = vunpack.c.l.b16 %v115
  %v136 = vunpack.c.h.b16 %v114
  %v137 = vunpack.c.h.b16 %v115
  %v138 = vunpack.c.l.b16 %v116
  %v139 = vunpack.c.l.b16 %v117
  %v140 = vunpack.c.h.b16 %v116
  %v141 = vunpack.c.h.b16 %v117
  %v142 = vpack.c.b16 %v127, %v126
  %v143 = vpack.c.b16 %v129, %v128
  %v144 = vpack.c.b16 %v131, %v130
  %v145 = vpack.c.b16 %v133, %v132
  %v146 = vpack.c.b16 %v135, %v134
  %v147 = vpack.c.b16 %v137, %v136
  %v148 = vpack.c.b16 %v139, %v138
  %v149 = vpack.c.b16 %v141, %v140
  %158 = vst [vmem:[%s3] sm:$0xff] %v142
  %159 = vst [vmem:[%s3 + $0x8] sm:$0xff] %v143
  %160 = vst [vmem:[%s3 + $0x10] sm:$0xff] %v144
  %161 = vst [vmem:[%s3 + $0x18] sm:$0xff] %v145
  %162 = vst [vmem:[%s3 + $0x20] sm:$0xff] %v146
  %163 = vst [vmem:[%s3 + $0x28] sm:$0xff] %v147
  %164 = vst [vmem:[%s3 + $0x30] sm:$0xff] %v148
  %165 = vst [vmem:[%s3 + $0x38] sm:$0xff] %v149
  // Predicated region
  $region14: #{generator_forward.16} parent=0 // pred_check
    _
  $region15: #{generator_forward.16} parent=0 // pred_check_branch
    %167 = sbr.rel (0) target = $region17
  $region16: #{generator_forward.16} parent=0 // pred_region
    _
  $region17: #{generator_forward.16} parent=0 // pred_fallthru
    _
  // Predicated region
  $region18: #{generator_forward.16} parent=0 // pred_check
    _
  $region19: #{generator_forward.16} parent=0 // pred_check_branch
    %169 = sbr.rel (0) target = $region21
  $region20: #{generator_forward.16} parent=0 // pred_region
    _
  $region21: #{generator_forward.16} parent=0 // pred_fallthru
    _

// kernel: generator_forward.17
$region0: #{generator_forward.17}
  #allocation0 [shape = 'u32[]', space=smem, size = 0x4, offset = 0x4, fixed_abs, tag = 'smem constant byte address 0x4 - core index']
  #allocation1 [shape = 'u32[144,128]{1,0:T(1,128)}', space=vmem, size = 0x12000, scoped, tag = 'internal scratch']
  %s0 = inlined_call_operand.vmem [shape: bf16[2048,72], index: 0, kind: input, shape index: {}]
  %s1 = inlined_call_operand.vmem [shape: bf16[72,12], index: 1, kind: input, shape index: {}]
  %s2 = inlined_call_operand.vmem [shape: f32[1,12], index: 2, kind: input, shape index: {}]
  %s3 = inlined_call_operand.vmem [shape: f32[2048,12], index: 3, kind: output, shape index: {}]
  %s4 = sld [smem:[#allocation0]]
  $region45: #{generator_forward.17} parent=0
    _
  %s6 = ssub.s32 1, %s4
  %s7 = scalar_select 0, %s6, %s4
  loop: start=0, step=1, limit=4
  $region2: #{generator_forward.17} parent=0 // loop_pre_header
    _
  $region3: #{generator_forward.17} parent=0 // loop_header
    %s9 = sphi 0, %s13
    %p10 = scmp.ge.s32.totalorder %s9, 4
    %s16 = sphi 0, %s28
    %s17 = sphi 0, %s24
    %s18 = sphi 0, %s16
    %s19 = sphi 0, %s17
    %s20 = sphi 0, %s18
    %s21 = sphi 0, %s19
    %s31 = sphi 0, %s33
    %s34 = sphi 0, %s31
    %s35 = sphi 0, %s34
    %s51 = sphi 0, %s35
    %s57 = sphi 0, %s59
    %s60 = sphi 0, %s57
    %s61 = sphi 0, %s60
    %s77 = sphi 0, %s61
    %s83 = sphi 0, %s85
    %s86 = sphi 0, %s83
    %s87 = sphi 0, %s86
    %s103 = sphi 0, %s87
    %s111 = sphi 0, %s113
    %s114 = sphi 0, %s111
    %s115 = sphi 0, %s114
    %s131 = sphi 0, %s115
  $region4: #{generator_forward.17} parent=0 // loop_header_branch
    %12 = sbr.rel (%p10) target = $region8
  $region5: #{generator_forward.17} parent=0 // loop_body
    %s14 = ssub.s32 %s9, 1
    %s15 = ssub.s32 %s9, 2
    %s22 = sadd.s32 1, %s17
    %p23 = scmp.ge.s32.totalorder %s22, 1
    %s24 = scalar_select %p23, 0, %s22
    %s25 = sadd.s32 1, %s16
    %s26 = scalar_select %p23, %s25, %s16
    %p27 = scmp.ge.s32.totalorder %s26, 2
    %s28 = scalar_select %p27, 0, %s26
    %s29 = ssub.s32 %s16, %s28
    %p30 = scmp.eq.s32.totalorder %s29, 0
    %s32 = sadd.s32 %s31, 1
    %s33 = scalar_select %p30, %s31, %s32
    %p36 = pneg %p30
    %p37 = scmp.eq.s32.totalorder %s9, 1
    %p38 = por %p36, %p37
    %p39 = scmp.ne.s32.totalorder %s31, %s34
    %p40 = scmp.eq.s32.totalorder %s9, 0
    %p41 = por %p39, %p40
    %p42 = scmp.ne.s32.totalorder %s31, %s34
    %p43 = scmp.eq.s32.totalorder %s14, 1
    %p44 = por %p42, %p43
    %p45 = scmp.ne.s32.totalorder %s34, %s35
    %p46 = scmp.eq.s32.totalorder %s14, 0
    %p47 = por %p45, %p46
    %p48 = scmp.ne.s32.totalorder %s34, %s35
    %p49 = scmp.eq.s32.totalorder %s15, 1
    %p50 = por %p48, %p49
    %p52 = scmp.ne.s32.totalorder %s35, %s51
    %p53 = scmp.eq.s32.totalorder %s15, 0
    %p54 = por %p52, %p53
    %s55 = ssub.s32 %s17, %s24
    %p56 = scmp.eq.s32.totalorder %s55, 0
    %s58 = sadd.s32 %s57, 1
    %s59 = scalar_select %p56, %s57, %s58
    %p62 = pneg %p56
    %p63 = scmp.eq.s32.totalorder %s9, 1
    %p64 = por %p62, %p63
    %p65 = scmp.ne.s32.totalorder %s57, %s60
    %p66 = scmp.eq.s32.totalorder %s9, 0
    %p67 = por %p65, %p66
    %p68 = scmp.ne.s32.totalorder %s57, %s60
    %p69 = scmp.eq.s32.totalorder %s14, 1
    %p70 = por %p68, %p69
    %p71 = scmp.ne.s32.totalorder %s60, %s61
    %p72 = scmp.eq.s32.totalorder %s14, 0
    %p73 = por %p71, %p72
    %p74 = scmp.ne.s32.totalorder %s60, %s61
    %p75 = scmp.eq.s32.totalorder %s15, 1
    %p76 = por %p74, %p75
    %p78 = scmp.ne.s32.totalorder %s61, %s77
    %p79 = scmp.eq.s32.totalorder %s15, 0
    %p80 = por %p78, %p79
    %s81 = ssub.s32 %s17, %s24
    %p82 = scmp.eq.s32.totalorder %s81, 0
    %s84 = sadd.s32 %s83, 1
    %s85 = scalar_select %p82, %s83, %s84
    %p88 = pneg %p82
    %p89 = scmp.eq.s32.totalorder %s9, 1
    %p90 = por %p88, %p89
    %p91 = scmp.ne.s32.totalorder %s83, %s86
    %p92 = scmp.eq.s32.totalorder %s9, 0
    %p93 = por %p91, %p92
    %p94 = scmp.ne.s32.totalorder %s83, %s86
    %p95 = scmp.eq.s32.totalorder %s14, 1
    %p96 = por %p94, %p95
    %p97 = scmp.ne.s32.totalorder %s86, %s87
    %p98 = scmp.eq.s32.totalorder %s14, 0
    %p99 = por %p97, %p98
    %p100 = scmp.ne.s32.totalorder %s86, %s87
    %p101 = scmp.eq.s32.totalorder %s15, 1
    %p102 = por %p100, %p101
    %p104 = scmp.ne.s32.totalorder %s87, %s103
    %p105 = scmp.eq.s32.totalorder %s15, 0
    %p106 = por %p104, %p105
    %s107 = ssub.s32 %s16, %s28
    %s108 = ssub.s32 %s17, %s24
    %s109 = sor.u32 %s107, %s108
    %p110 = scmp.eq.s32.totalorder %s109, 0
    %s112 = sadd.s32 %s111, 1
    %s113 = scalar_select %p110, %s111, %s112
    %p116 = pneg %p110
    %p117 = scmp.eq.s32.totalorder %s9, 1
    %p118 = por %p116, %p117
    %p119 = scmp.ne.s32.totalorder %s111, %s114
    %p120 = scmp.eq.s32.totalorder %s9, 0
    %p121 = por %p119, %p120
    %p122 = scmp.ne.s32.totalorder %s111, %s114
    %p123 = scmp.eq.s32.totalorder %s14, 1
    %p124 = por %p122, %p123
    %p125 = scmp.ne.s32.totalorder %s114, %s115
    %p126 = scmp.eq.s32.totalorder %s14, 0
    %p127 = por %p125, %p126
    %p128 = scmp.ne.s32.totalorder %s114, %s115
    %p129 = scmp.eq.s32.totalorder %s15, 1
    %p130 = por %p128, %p129
    %p132 = scmp.ne.s32.totalorder %s115, %s131
    %p133 = scmp.eq.s32.totalorder %s15, 0
    %p134 = por %p132, %p133
    %p135 = scmp.le.s32.totalorder 1, %s9
    %p136 = scmp.lt.s32.totalorder %s9, 3
    %p137 = pnand %p135, %p136
    %p138 = pneg %p137
    // Predicated region
    $region9: #{generator_forward.17} parent=5 // pred_check
      _
    $region10: #{generator_forward.17} parent=5 // pred_check_branch
      %140 = sbr.rel (%p137) target = $region12
    $region11: #{generator_forward.17} parent=5 // pred_region
      %s141 = ssub.s32 %s9, 1
      // Predicated region
      $region13: #{generator_forward.17} parent=11 // pred_check
        %p142 = pneg %p73
      $region14: #{generator_forward.17} parent=11 // pred_check_branch
        %144 = sbr.rel (%p142) target = $region16
      $region15: #{generator_forward.17} parent=11 // pred_region
        %p145 = scmp.lt.s32.totalorder %s19, 0
        %s146 = scalar_select %p145, %s19, 0
        %s147 = smul.addr %s146, 4
        %s148 = scalar_lea.vmem %s1, %s147
      $region16: #{generator_forward.17} parent=11 // pred_fallthru
        _
      // Predicated region
      $region17: #{generator_forward.17} parent=11 // pred_check
        %p149 = pneg %p99
      $region18: #{generator_forward.17} parent=11 // pred_check_branch
        %151 = sbr.rel (%p149) target = $region20
      $region19: #{generator_forward.17} parent=11 // pred_region
        %p152 = scmp.lt.s32.totalorder %s19, 0
        %s153 = scalar_select %p152, %s19, 0
        %s154 = scalar_lea.vmem %s2, %s153
      $region20: #{generator_forward.17} parent=11 // pred_fallthru
        _
    $region12: #{generator_forward.17} parent=5 // pred_fallthru
      _
    %p155 = scmp.lt.s32.totalorder %s9, 2
    // Predicated region
    $region21: #{generator_forward.17} parent=5 // pred_check
      %p156 = pneg %p155
    $region22: #{generator_forward.17} parent=5 // pred_check_branch
      %158 = sbr.rel (%p156) target = $region24
    $region23: #{generator_forward.17} parent=5 // pred_region
      // Predicated region
      $region25: #{generator_forward.17} parent=23 // pred_check
        %p159 = pneg %p41
      $region26: #{generator_forward.17} parent=23 // pred_check_branch
        %161 = sbr.rel (%p159) target = $region28
      $region27: #{generator_forward.17} parent=23 // pred_region
        %s162 = smul.u32 128, %s16
        %p163 = scmp.lt.s32.totalorder %s162, 255
        %s164 = scalar_select %p163, %s162, 255
        %s165 = smul.addr %s164, 4
        %s166 = scalar_lea.vmem %s0, %s165
        %s167 = smul.u32 128, %s16
      $region28: #{generator_forward.17} parent=23 // pred_fallthru
        _
    $region24: #{generator_forward.17} parent=5 // pred_fallthru
      _
    %p168 = scmp.le.s32.totalorder 1, %s9
    %p169 = scmp.lt.s32.totalorder %s9, 3
    %p170 = pnand %p168, %p169
    %p171 = pneg %p170
    // Predicated region
    $region29: #{generator_forward.17} parent=5 // pred_check
      _
    $region30: #{generator_forward.17} parent=5 // pred_check_branch
      %173 = sbr.rel (%p170) target = $region32
    $region31: #{generator_forward.17} parent=5 // pred_region
      %s174 = ssub.s32 %s9, 1
      %s175 = smul.u32 128, %s18
      %p176 = scmp.lt.s32.totalorder %s175, 255
      %s177 = scalar_select %p176, %s175, 255
      %s178 = smul.addr %s177, 4
      %s179 = scalar_lea.vmem %s0, %s178
      %p180 = pneg %p47
      %p181 = pneg %p44
      %p182 = scmp.lt.s32.totalorder %s19, 0
      %s183 = scalar_select %p182, %s19, 0
      %s184 = smul.addr %s183, 4
      %s185 = scalar_lea.vmem %s1, %s184
      %p186 = pneg %p73
      %p187 = pneg %p70
      %p188 = scmp.lt.s32.totalorder %s19, 0
      %s189 = scalar_select %p188, %s19, 0
      %s190 = scalar_lea.vmem %s2, %s189
      %p191 = pneg %p99
      %p192 = pneg %p96
      %p193 = pneg %p127
      %p194 = pneg %p124
      %s195 = smul.u32 128, %s18
      %p196 = scmp.lt.s32.totalorder %s195, 255
      %s197 = scalar_select %p196, %s195, 255
      %p198 = scmp.lt.s32.totalorder %s19, 0
      %s199 = scalar_select %p198, %s19, 0
      %s200 = sadd.s32 %s199, %s197
      %s201 = smul.addr %s200, 8
      %s202 = scalar_lea.vmem %s3, %s201
      %s203 = smul.u32 128, %s18
      %p204 = scmp.lt.s32.totalorder %s203, 255
      %s205 = scalar_select %p204, %s203, 255
      %s206 = smul.addr %s205, 4
      %s207 = scalar_lea.vmem %s0, %s206
      %s208 = smul.u32 128, %s18
      %p209 = scmp.lt.s32.totalorder %s19, 0
      %s210 = scalar_select %p209, %s19, 0
      %s211 = smul.addr %s210, 4
      %s212 = scalar_lea.vmem %s1, %s211
      %p213 = scmp.lt.s32.totalorder %s19, 0
      %s214 = scalar_select %p213, %s19, 0
      %s215 = scalar_lea.vmem %s2, %s214
      %s216 = smul.u32 128, %s18
      %p217 = scmp.lt.s32.totalorder %s216, 255
      %s218 = scalar_select %p217, %s216, 255
      %p219 = scmp.lt.s32.totalorder %s19, 0
      %s220 = scalar_select %p219, %s19, 0
      %s221 = sadd.s32 %s220, %s218
      %s222 = smul.addr %s221, 8
      %s223 = scalar_lea.vmem %s3, %s222
      %s224 = smul.u32 128, %s18
      %v226 = vld [vmem:[%s207] sm:$0xf]
      %v227 = vld [vmem:[%s207 + $0x4] sm:$0xf]
      %v228 = vld [vmem:[%s207 + $0x8] sm:$0xf]
      %v229 = vld [vmem:[%s207 + $0xc] sm:$0xf]
      %v230 = vld [vmem:[%s207 + $0x10] sm:$0xf]
      %v231 = vld [vmem:[%s207 + $0x14] sm:$0xf]
      %v232 = vld [vmem:[%s207 + $0x18] sm:$0xf]
      %v233 = vld [vmem:[%s207 + $0x1c] sm:$0xf]
      %v234 = vld [vmem:[%s207 + $0x20] sm:$0xf]
      %v235 = vld [vmem:[%s207 + $0x24] sm:$0xf]
      %v236 = vld [vmem:[%s207 + $0x28] sm:$0xf]
      %v237 = vld [vmem:[%s207 + $0x2c] sm:$0xf]
      %v238 = vld [vmem:[%s207 + $0x30] sm:$0xf]
      %v239 = vld [vmem:[%s207 + $0x34] sm:$0xf]
      %v240 = vld [vmem:[%s207 + $0x38] sm:$0xf]
      %v241 = vld [vmem:[%s207 + $0x3c] sm:$0xf]
      %v242 = vld [vmem:[%s207 + $0x40] sm:$0xf]
      %v243 = vld [vmem:[%s207 + $0x44] sm:$0xf]
      %v244 = vld [vmem:[%s207 + $0x48] sm:$0xf]
      %v245 = vld [vmem:[%s207 + $0x4c] sm:$0xf]
      %v246 = vld [vmem:[%s207 + $0x50] sm:$0xf]
      %v247 = vld [vmem:[%s207 + $0x54] sm:$0xf]
      %v248 = vld [vmem:[%s207 + $0x58] sm:$0xf]
      %v249 = vld [vmem:[%s207 + $0x5c] sm:$0xf]
      %v250 = vld [vmem:[%s207 + $0x60] sm:$0xf]
      %v251 = vld [vmem:[%s207 + $0x64] sm:$0xf]
      %v252 = vld [vmem:[%s207 + $0x68] sm:$0xf]
      %v253 = vld [vmem:[%s207 + $0x6c] sm:$0xf]
      %v254 = vld [vmem:[%s207 + $0x70] sm:$0xf]
      %v255 = vld [vmem:[%s207 + $0x74] sm:$0xf]
      %v256 = vld [vmem:[%s207 + $0x78] sm:$0xf]
      %v257 = vld [vmem:[%s207 + $0x7c] sm:$0xf]
      %v258 = vld [vmem:[%s207 + $0x80] sm:$0xf]
      %v259 = vld [vmem:[%s207 + $0x84] sm:$0xf]
      %v260 = vld [vmem:[%s207 + $0x88] sm:$0xf]
      %v261 = vld [vmem:[%s207 + $0x8c] sm:$0xf]
      %v262 = vld [vmem:[%s207 + $0x90] sm:$0xf]
      %v263 = vld [vmem:[%s207 + $0x94] sm:$0xf]
      %v264 = vld [vmem:[%s207 + $0x98] sm:$0xf]
      %v265 = vld [vmem:[%s207 + $0x9c] sm:$0xf]
      %v266 = vld [vmem:[%s207 + $0xa0] sm:$0xf]
      %v267 = vld [vmem:[%s207 + $0xa4] sm:$0xf]
      %v268 = vld [vmem:[%s207 + $0xa8] sm:$0xf]
      %v269 = vld [vmem:[%s207 + $0xac] sm:$0xf]
      %v270 = vld [vmem:[%s207 + $0xb0] sm:$0xf]
      %v271 = vld [vmem:[%s207 + $0xb4] sm:$0xf]
      %v272 = vld [vmem:[%s207 + $0xb8] sm:$0xf]
      %v273 = vld [vmem:[%s207 + $0xbc] sm:$0xf]
      %v274 = vld [vmem:[%s207 + $0xc0] sm:$0xf]
      %v275 = vld [vmem:[%s207 + $0xc4] sm:$0xf]
      %v276 = vld [vmem:[%s207 + $0xc8] sm:$0xf]
      %v277 = vld [vmem:[%s207 + $0xcc] sm:$0xf]
      %v278 = vld [vmem:[%s207 + $0xd0] sm:$0xf]
      %v279 = vld [vmem:[%s207 + $0xd4] sm:$0xf]
      %v280 = vld [vmem:[%s207 + $0xd8] sm:$0xf]
      %v281 = vld [vmem:[%s207 + $0xdc] sm:$0xf]
      %v282 = vld [vmem:[%s207 + $0xe0] sm:$0xf]
      %v283 = vld [vmem:[%s207 + $0xe4] sm:$0xf]
      %v284 = vld [vmem:[%s207 + $0xe8] sm:$0xf]
      %v285 = vld [vmem:[%s207 + $0xec] sm:$0xf]
      %v286 = vld [vmem:[%s207 + $0xf0] sm:$0xf]
      %v287 = vld [vmem:[%s207 + $0xf4] sm:$0xf]
      %v288 = vld [vmem:[%s207 + $0xf8] sm:$0xf]
      %v289 = vld [vmem:[%s207 + $0xfc] sm:$0xf]
      %v290 = vld [vmem:[%s207 + $0x100] sm:$0xf]
      %v291 = vld [vmem:[%s207 + $0x104] sm:$0xf]
      %v292 = vld [vmem:[%s207 + $0x108] sm:$0xf]
      %v293 = vld [vmem:[%s207 + $0x10c] sm:$0xf]
      %v294 = vld [vmem:[%s207 + $0x110] sm:$0xf]
      %v295 = vld [vmem:[%s207 + $0x114] sm:$0xf]
      %v296 = vld [vmem:[%s207 + $0x118] sm:$0xf]
      %v297 = vld [vmem:[%s207 + $0x11c] sm:$0xf]
      %v298 = vld [vmem:[%s207 + $0x120] sm:$0xf]
      %v299 = vld [vmem:[%s207 + $0x124] sm:$0xf]
      %v300 = vld [vmem:[%s207 + $0x128] sm:$0xf]
      %v301 = vld [vmem:[%s207 + $0x12c] sm:$0xf]
      %v302 = vld [vmem:[%s207 + $0x130] sm:$0xf]
      %v303 = vld [vmem:[%s207 + $0x134] sm:$0xf]
      %v304 = vld [vmem:[%s207 + $0x138] sm:$0xf]
      %v305 = vld [vmem:[%s207 + $0x13c] sm:$0xf]
      %v306 = vld [vmem:[%s207 + $0x140] sm:$0xf]
      %v307 = vld [vmem:[%s207 + $0x144] sm:$0xf]
      %v308 = vld [vmem:[%s207 + $0x148] sm:$0xf]
      %v309 = vld [vmem:[%s207 + $0x14c] sm:$0xf]
      %v310 = vld [vmem:[%s207 + $0x150] sm:$0xf]
      %v311 = vld [vmem:[%s207 + $0x154] sm:$0xf]
      %v312 = vld [vmem:[%s207 + $0x158] sm:$0xf]
      %v313 = vld [vmem:[%s207 + $0x15c] sm:$0xf]
      %v314 = vld [vmem:[%s207 + $0x160] sm:$0xf]
      %v315 = vld [vmem:[%s207 + $0x164] sm:$0xf]
      %v316 = vld [vmem:[%s207 + $0x168] sm:$0xf]
      %v317 = vld [vmem:[%s207 + $0x16c] sm:$0xf]
      %v318 = vld [vmem:[%s207 + $0x170] sm:$0xf]
      %v319 = vld [vmem:[%s207 + $0x174] sm:$0xf]
      %v320 = vld [vmem:[%s207 + $0x178] sm:$0xf]
      %v321 = vld [vmem:[%s207 + $0x17c] sm:$0xf]
      %v322 = vld [vmem:[%s207 + $0x180] sm:$0xf]
      %v323 = vld [vmem:[%s207 + $0x184] sm:$0xf]
      %v324 = vld [vmem:[%s207 + $0x188] sm:$0xf]
      %v325 = vld [vmem:[%s207 + $0x18c] sm:$0xf]
      %v326 = vld [vmem:[%s207 + $0x190] sm:$0xf]
      %v327 = vld [vmem:[%s207 + $0x194] sm:$0xf]
      %v328 = vld [vmem:[%s207 + $0x198] sm:$0xf]
      %v329 = vld [vmem:[%s207 + $0x19c] sm:$0xf]
      %v330 = vld [vmem:[%s207 + $0x1a0] sm:$0xf]
      %v331 = vld [vmem:[%s207 + $0x1a4] sm:$0xf]
      %v332 = vld [vmem:[%s207 + $0x1a8] sm:$0xf]
      %v333 = vld [vmem:[%s207 + $0x1ac] sm:$0xf]
      %v334 = vld [vmem:[%s207 + $0x1b0] sm:$0xf]
      %v335 = vld [vmem:[%s207 + $0x1b4] sm:$0xf]
      %v336 = vld [vmem:[%s207 + $0x1b8] sm:$0xf]
      %v337 = vld [vmem:[%s207 + $0x1bc] sm:$0xf]
      %v338 = vld [vmem:[%s207 + $0x1c0] sm:$0xf]
      %v339 = vld [vmem:[%s207 + $0x1c4] sm:$0xf]
      %v340 = vld [vmem:[%s207 + $0x1c8] sm:$0xf]
      %v341 = vld [vmem:[%s207 + $0x1cc] sm:$0xf]
      %v342 = vld [vmem:[%s207 + $0x1d0] sm:$0xf]
      %v343 = vld [vmem:[%s207 + $0x1d4] sm:$0xf]
      %v344 = vld [vmem:[%s207 + $0x1d8] sm:$0xf]
      %v345 = vld [vmem:[%s207 + $0x1dc] sm:$0xf]
      %v346 = vld [vmem:[%s207 + $0x1e0] sm:$0xf]
      %v347 = vld [vmem:[%s207 + $0x1e4] sm:$0xf]
      %v348 = vld [vmem:[%s207 + $0x1e8] sm:$0xf]
      %v349 = vld [vmem:[%s207 + $0x1ec] sm:$0xf]
      %v350 = vld [vmem:[%s207 + $0x1f0] sm:$0xf]
      %v351 = vld [vmem:[%s207 + $0x1f4] sm:$0xf]
      %v352 = vld [vmem:[%s207 + $0x1f8] sm:$0xf]
      %v353 = vld [vmem:[%s207 + $0x1fc] sm:$0xf]
      %v354 = vld [vmem:[%s212] sm:$0xf]
      %v355 = vld [vmem:[%s212 + $0x4] sm:$0xf]
      %v356 = vld [vmem:[%s212 + $0x8] sm:$0xf]
      %v357 = vld [vmem:[%s212 + $0xc] sm:$0xf]
      %v358 = vld [vmem:[%s212 + $0x10] sm:$0xf]
      %v359 = vld [vmem:[%s212 + $0x14] sm:$0xf]
      %v360 = vld [vmem:[%s212 + $0x18] sm:$0xf]
      %v361 = vld [vmem:[%s212 + $0x1c] sm:$0xf]
      %v362 = vld [vmem:[%s212 + $0x20] sm:$0xf]
      %v363 = vld [vmem:[%s215] sm:$0x1]
      %v365 = vlaneseq
      %v366 = vshrl.u32 %v365, 7
      %v367 = vsub.s32 0, %v366
      %v368 = vrot.slane %v363, %v367
      %v498 = vunpack.c.l.b16 %v226
      %v499 = vunpack.c.l.b16 %v227
      %v500 = vunpack.c.l.b16 %v228
      %v501 = vunpack.c.l.b16 %v229
      %v502 = vunpack.c.l.b16 %v230
      %v503 = vunpack.c.l.b16 %v231
      %v504 = vunpack.c.l.b16 %v232
      %v505 = vunpack.c.l.b16 %v233
      %v506 = vunpack.c.l.b16 %v234
      %v507 = vunpack.c.l.b16 %v235
      %v508 = vunpack.c.l.b16 %v236
      %v509 = vunpack.c.l.b16 %v237
      %v510 = vunpack.c.l.b16 %v238
      %v511 = vunpack.c.l.b16 %v239
      %v512 = vunpack.c.l.b16 %v240
      %v513 = vunpack.c.l.b16 %v241
      %v514 = vunpack.c.l.b16 %v242
      %v515 = vunpack.c.l.b16 %v243
      %v516 = vunpack.c.l.b16 %v244
      %v517 = vunpack.c.l.b16 %v245
      %v518 = vunpack.c.l.b16 %v246
      %v519 = vunpack.c.l.b16 %v247
      %v520 = vunpack.c.l.b16 %v248
      %v521 = vunpack.c.l.b16 %v249
      %v522 = vunpack.c.l.b16 %v250
      %v523 = vunpack.c.l.b16 %v251
      %v524 = vunpack.c.l.b16 %v252
      %v525 = vunpack.c.l.b16 %v253
      %v526 = vunpack.c.l.b16 %v254
      %v527 = vunpack.c.l.b16 %v255
      %v528 = vunpack.c.l.b16 %v256
      %v529 = vunpack.c.l.b16 %v257
      %v530 = vunpack.c.l.b16 %v258
      %v531 = vunpack.c.l.b16 %v259
      %v532 = vunpack.c.l.b16 %v260
      %v533 = vunpack.c.l.b16 %v261
      %v534 = vunpack.c.l.b16 %v262
      %v535 = vunpack.c.l.b16 %v263
      %v536 = vunpack.c.l.b16 %v264
      %v537 = vunpack.c.l.b16 %v265
      %v538 = vunpack.c.l.b16 %v266
      %v539 = vunpack.c.l.b16 %v267
      %v540 = vunpack.c.l.b16 %v268
      %v541 = vunpack.c.l.b16 %v269
      %v542 = vunpack.c.l.b16 %v270
      %v543 = vunpack.c.l.b16 %v271
      %v544 = vunpack.c.l.b16 %v272
      %v545 = vunpack.c.l.b16 %v273
      %v546 = vunpack.c.l.b16 %v274
      %v547 = vunpack.c.l.b16 %v275
      %v548 = vunpack.c.l.b16 %v276
      %v549 = vunpack.c.l.b16 %v277
      %v550 = vunpack.c.l.b16 %v278
      %v551 = vunpack.c.l.b16 %v279
      %v552 = vunpack.c.l.b16 %v280
      %v553 = vunpack.c.l.b16 %v281
      %v554 = vunpack.c.l.b16 %v282
      %v555 = vunpack.c.l.b16 %v283
      %v556 = vunpack.c.l.b16 %v284
      %v557 = vunpack.c.l.b16 %v285
      %v558 = vunpack.c.l.b16 %v286
      %v559 = vunpack.c.l.b16 %v287
      %v560 = vunpack.c.l.b16 %v288
      %v561 = vunpack.c.l.b16 %v289
      %v562 = vunpack.c.l.b16 %v290
      %v563 = vunpack.c.l.b16 %v291
      %v564 = vunpack.c.l.b16 %v292
      %v565 = vunpack.c.l.b16 %v293
      %v566 = vunpack.c.l.b16 %v294
      %v567 = vunpack.c.l.b16 %v295
      %v568 = vunpack.c.l.b16 %v296
      %v569 = vunpack.c.l.b16 %v297
      %v570 = vunpack.c.l.b16 %v298
      %v571 = vunpack.c.l.b16 %v299
      %v572 = vunpack.c.l.b16 %v300
      %v573 = vunpack.c.l.b16 %v301
      %v574 = vunpack.c.l.b16 %v302
      %v575 = vunpack.c.l.b16 %v303
      %v576 = vunpack.c.l.b16 %v304
      %v577 = vunpack.c.l.b16 %v305
      %v578 = vunpack.c.l.b16 %v306
      %v579 = vunpack.c.l.b16 %v307
      %v580 = vunpack.c.l.b16 %v308
      %v581 = vunpack.c.l.b16 %v309
      %v582 = vunpack.c.l.b16 %v310
      %v583 = vunpack.c.l.b16 %v311
      %v584 = vunpack.c.l.b16 %v312
      %v585 = vunpack.c.l.b16 %v313
      %v586 = vunpack.c.l.b16 %v314
      %v587 = vunpack.c.l.b16 %v315
      %v588 = vunpack.c.l.b16 %v316
      %v589 = vunpack.c.l.b16 %v317
      %v590 = vunpack.c.l.b16 %v318
      %v591 = vunpack.c.l.b16 %v319
      %v592 = vunpack.c.l.b16 %v320
      %v593 = vunpack.c.l.b16 %v321
      %v594 = vunpack.c.l.b16 %v322
      %v595 = vunpack.c.l.b16 %v323
      %v596 = vunpack.c.l.b16 %v324
      %v597 = vunpack.c.l.b16 %v325
      %v598 = vunpack.c.l.b16 %v326
      %v599 = vunpack.c.l.b16 %v327
      %v600 = vunpack.c.l.b16 %v328
      %v601 = vunpack.c.l.b16 %v329
      %v602 = vunpack.c.l.b16 %v330
      %v603 = vunpack.c.l.b16 %v331
      %v604 = vunpack.c.l.b16 %v332
      %v605 = vunpack.c.l.b16 %v333
      %v606 = vunpack.c.l.b16 %v334
      %v607 = vunpack.c.l.b16 %v335
      %v608 = vunpack.c.l.b16 %v336
      %v609 = vunpack.c.l.b16 %v337
      %v610 = vunpack.c.l.b16 %v338
      %v611 = vunpack.c.l.b16 %v339
      %v612 = vunpack.c.l.b16 %v340
      %v613 = vunpack.c.l.b16 %v341
      %v614 = vunpack.c.l.b16 %v342
      %v615 = vunpack.c.l.b16 %v343
      %v616 = vunpack.c.l.b16 %v344
      %v617 = vunpack.c.l.b16 %v345
      %v618 = vunpack.c.l.b16 %v346
      %v619 = vunpack.c.l.b16 %v347
      %v620 = vunpack.c.l.b16 %v348
      %v621 = vunpack.c.l.b16 %v349
      %v622 = vunpack.c.l.b16 %v350
      %v623 = vunpack.c.l.b16 %v351
      %v624 = vunpack.c.l.b16 %v352
      %v625 = vunpack.c.l.b16 %v353
      %v626 = vpack.c.b16 %v499, %v498
      %v627 = vpack.c.b16 %v501, %v500
      %v628 = vpack.c.b16 %v503, %v502
      %v629 = vpack.c.b16 %v505, %v504
      %v630 = vpack.c.b16 %v507, %v506
      %v631 = vpack.c.b16 %v509, %v508
      %v632 = vpack.c.b16 %v511, %v510
      %v633 = vpack.c.b16 %v513, %v512
      %v634 = vpack.c.b16 %v515, %v514
      %v635 = vpack.c.b16 %v517, %v516
      %v636 = vpack.c.b16 %v519, %v518
      %v637 = vpack.c.b16 %v521, %v520
      %v638 = vpack.c.b16 %v523, %v522
      %v639 = vpack.c.b16 %v525, %v524
      %v640 = vpack.c.b16 %v527, %v526
      %v641 = vpack.c.b16 %v529, %v528
      %v642 = vpack.c.b16 %v531, %v530
      %v643 = vpack.c.b16 %v533, %v532
      %v644 = vpack.c.b16 %v535, %v534
      %v645 = vpack.c.b16 %v537, %v536
      %v646 = vpack.c.b16 %v539, %v538
      %v647 = vpack.c.b16 %v541, %v540
      %v648 = vpack.c.b16 %v543, %v542
      %v649 = vpack.c.b16 %v545, %v544
      %v650 = vpack.c.b16 %v547, %v546
      %v651 = vpack.c.b16 %v549, %v548
      %v652 = vpack.c.b16 %v551, %v550
      %v653 = vpack.c.b16 %v553, %v552
      %v654 = vpack.c.b16 %v555, %v554
      %v655 = vpack.c.b16 %v557, %v556
      %v656 = vpack.c.b16 %v559, %v558
      %v657 = vpack.c.b16 %v561, %v560
      %v658 = vpack.c.b16 %v563, %v562
      %v659 = vpack.c.b16 %v565, %v564
      %v660 = vpack.c.b16 %v567, %v566
      %v661 = vpack.c.b16 %v569, %v568
      %v662 = vpack.c.b16 %v571, %v570
      %v663 = vpack.c.b16 %v573, %v572
      %v664 = vpack.c.b16 %v575, %v574
      %v665 = vpack.c.b16 %v577, %v576
      %v666 = vpack.c.b16 %v579, %v578
      %v667 = vpack.c.b16 %v581, %v580
      %v668 = vpack.c.b16 %v583, %v582
      %v669 = vpack.c.b16 %v585, %v584
      %v670 = vpack.c.b16 %v587, %v586
      %v671 = vpack.c.b16 %v589, %v588
      %v672 = vpack.c.b16 %v591, %v590
      %v673 = vpack.c.b16 %v593, %v592
      %v674 = vpack.c.b16 %v595, %v594
      %v675 = vpack.c.b16 %v597, %v596
      %v676 = vpack.c.b16 %v599, %v598
      %v677 = vpack.c.b16 %v601, %v600
      %v678 = vpack.c.b16 %v603, %v602
      %v679 = vpack.c.b16 %v605, %v604
      %v680 = vpack.c.b16 %v607, %v606
      %v681 = vpack.c.b16 %v609, %v608
      %v682 = vpack.c.b16 %v611, %v610
      %v683 = vpack.c.b16 %v613, %v612
      %v684 = vpack.c.b16 %v615, %v614
      %v685 = vpack.c.b16 %v617, %v616
      %v686 = vpack.c.b16 %v619, %v618
      %v687 = vpack.c.b16 %v621, %v620
      %v688 = vpack.c.b16 %v623, %v622
      %v689 = vpack.c.b16 %v625, %v624
      %v699 = vunpack.c.l.b16 %v354
      %v700 = vunpack.c.l.b16 %v355
      %v701 = vunpack.c.l.b16 %v356
      %v702 = vunpack.c.l.b16 %v357
      %v703 = vunpack.c.l.b16 %v358
      %v704 = vunpack.c.l.b16 %v359
      %v705 = vunpack.c.l.b16 %v360
      %v706 = vunpack.c.l.b16 %v361
      %v707 = vunpack.c.l.b16 %v362
      %v708 = vpack.c.b16 %v700, %v699
      %v709 = vpack.c.b16 %v702, %v701
      %v710 = vpack.c.b16 %v704, %v703
      %v711 = vpack.c.b16 %v706, %v705
      %v712 = vpack.c.b16 %v707, %v707
      %vm717 = vcmask 588800
      %v719 = vsel %vm717, %v626, 0
      %v722 = vsel %vm717, %v627, 0
      %v725 = vsel %vm717, %v628, 0
      %v728 = vsel %vm717, %v629, 0
      %v731 = vsel %vm717, %v630, 0
      %v734 = vsel %vm717, %v631, 0
      %v737 = vsel %vm717, %v632, 0
      %v740 = vsel %vm717, %v633, 0
      %v743 = vsel %vm717, %v634, 0
      %v746 = vsel %vm717, %v635, 0
      %v749 = vsel %vm717, %v636, 0
      %v752 = vsel %vm717, %v637, 0
      %v755 = vsel %vm717, %v638, 0
      %v758 = vsel %vm717, %v639, 0
      %v761 = vsel %vm717, %v640, 0
      %v764 = vsel %vm717, %v641, 0
      %v767 = vsel %vm717, %v642, 0
      %v770 = vsel %vm717, %v643, 0
      %v773 = vsel %vm717, %v644, 0
      %v776 = vsel %vm717, %v645, 0
      %v779 = vsel %vm717, %v646, 0
      %v782 = vsel %vm717, %v647, 0
      %v785 = vsel %vm717, %v648, 0
      %v788 = vsel %vm717, %v649, 0
      %v791 = vsel %vm717, %v650, 0
      %v794 = vsel %vm717, %v651, 0
      %v797 = vsel %vm717, %v652, 0
      %v800 = vsel %vm717, %v653, 0
      %v803 = vsel %vm717, %v654, 0
      %v806 = vsel %vm717, %v655, 0
      %v809 = vsel %vm717, %v656, 0
      %v812 = vsel %vm717, %v657, 0
      %v815 = vsel %vm717, %v658, 0
      %v818 = vsel %vm717, %v659, 0
      %v821 = vsel %vm717, %v660, 0
      %v824 = vsel %vm717, %v661, 0
      %v827 = vsel %vm717, %v662, 0
      %v830 = vsel %vm717, %v663, 0
      %v833 = vsel %vm717, %v664, 0
      %v836 = vsel %vm717, %v665, 0
      %v839 = vsel %vm717, %v666, 0
      %v842 = vsel %vm717, %v667, 0
      %v845 = vsel %vm717, %v668, 0
      %v848 = vsel %vm717, %v669, 0
      %v851 = vsel %vm717, %v670, 0
      %v854 = vsel %vm717, %v671, 0
      %v857 = vsel %vm717, %v672, 0
      %v860 = vsel %vm717, %v673, 0
      %v863 = vsel %vm717, %v674, 0
      %v866 = vsel %vm717, %v675, 0
      %v869 = vsel %vm717, %v676, 0
      %v872 = vsel %vm717, %v677, 0
      %v875 = vsel %vm717, %v678, 0
      %v878 = vsel %vm717, %v679, 0
      %v881 = vsel %vm717, %v680, 0
      %v884 = vsel %vm717, %v681, 0
      %v887 = vsel %vm717, %v682, 0
      %v890 = vsel %vm717, %v683, 0
      %v893 = vsel %vm717, %v684, 0
      %v896 = vsel %vm717, %v685, 0
      %v899 = vsel %vm717, %v686, 0
      %v902 = vsel %vm717, %v687, 0
      %v905 = vsel %vm717, %v688, 0
      %v908 = vsel %vm717, %v689, 0
      %vm910 = vcmask 1043456
      %v912 = vsel %vm910, %v712, 0
      %914 = vmatprep.subr.bf16.mxu0 0
      %915 = vmatpush1.bf16.msra.mxu0 %v708
      %916 = vmatprep.subr.bf16.mxu0 0
      %917 = vmatpush1.bf16.msra.mxu0 %v709
      %918 = vmatprep.subr.bf16.mxu0 0
      %919 = vmatpush1.bf16.msra.mxu0 %v710
      %920 = vmatprep.subr.bf16.mxu0 0
      %921 = vmatpush1.bf16.msra.mxu0 %v711
      %922 = vmatprep.subr.bf16.mxu0 0
      %923 = vmatpush1.bf16.msra.mxu0 %v912
      %924 = vmatprep.subr.bf16.mxu0 0
      %925 = vmatpush1.bf16.msra.mxu0 0
      %926 = vmatprep.subr.bf16.mxu0 0
      %927 = vmatpush1.bf16.msra.mxu0 0
      %928 = vmatprep.subr.bf16.mxu0 0
      %929 = vmatpush1.bf16.msra.mxu0 0
      %930 = vmatprep.subr.bf16.mxu0 0
      %931 = vmatpush1.bf16.msra.mxu0 0
      %932 = vmatprep.subr.bf16.mxu0 0
      %933 = vmatpush1.bf16.msra.mxu0 0
      %934 = vmatprep.subr.bf16.mxu0 0
      %935 = vmatpush1.bf16.msra.mxu0 0
      %936 = vmatprep.subr.bf16.mxu0 0
      %937 = vmatpush1.bf16.msra.mxu0 0
      %938 = vmatprep.subr.bf16.mxu0 0
      %939 = vmatpush1.bf16.msra.mxu0 0
      %940 = vmatprep.subr.bf16.mxu0 0
      %941 = vmatpush1.bf16.msra.mxu0 0
      %942 = vmatprep.subr.bf16.mxu0 0
      %943 = vmatpush1.bf16.msra.mxu0 0
      %944 = vmatprep.subr.bf16.mxu0 0
      %945 = vmatpush1.bf16.msra.mxu0 0
      %946 = vmatprep.mubr.bf16.mxu0 0
      %947 = vmatmul.mubr.bf16.gmra.mrb[0].mxu0 %v719
      %v948 = vpop.f32.mrb[0].mxu0
      %v949 = vadd.f32 %v368, %v948
      %v950 = vpop.f32.mrb[0].mxu0
      %v951 = vpop.f32.mrb[0].mxu0
      %v952 = vadd.f32 %v368, %v951
      %v953 = vpop.f32.mrb[0].mxu0
      %954 = vmatprep.mubr.bf16.mxu0 0
      %955 = vmatmul.mubr.bf16.gmra.mrb[0].mxu0 %v722
      %v956 = vpop.f32.mrb[0].mxu0
      %v957 = vadd.f32 %v368, %v956
      %v958 = vpop.f32.mrb[0].mxu0
      %v959 = vpop.f32.mrb[0].mxu0
      %v960 = vadd.f32 %v368, %v959
      %v961 = vpop.f32.mrb[0].mxu0
      %962 = vmatprep.mubr.bf16.mxu0 0
      %963 = vmatmul.mubr.bf16.gmra.mrb[0].mxu0 %v725
      %v964 = vpop.f32.mrb[0].mxu0
      %v965 = vadd.f32 %v368, %v964
      %v966 = vpop.f32.mrb[0].mxu0
      %v967 = vpop.f32.mrb[0].mxu0
      %v968 = vadd.f32 %v368, %v967
      %v969 = vpop.f32.mrb[0].mxu0
      %970 = vmatprep.mubr.bf16.mxu0 0
      %971 = vmatmul.mubr.bf16.gmra.mrb[0].mxu0 %v728
      %v972 = vpop.f32.mrb[0].mxu0
      %v973 = vadd.f32 %v368, %v972
      %v974 = vpop.f32.mrb[0].mxu0
      %v975 = vpop.f32.mrb[0].mxu0
      %v976 = vadd.f32 %v368, %v975
      %v977 = vpop.f32.mrb[0].mxu0
      %978 = vmatprep.mubr.bf16.mxu0 0
      %979 = vmatmul.mubr.bf16.gmra.mrb[0].mxu0 %v731
      %v980 = vpop.f32.mrb[0].mxu0
      %v981 = vadd.f32 %v368, %v980
      %v982 = vpop.f32.mrb[0].mxu0
      %v983 = vpop.f32.mrb[0].mxu0
      %v984 = vadd.f32 %v368, %v983
      %v985 = vpop.f32.mrb[0].mxu0
      %986 = vmatprep.mubr.bf16.mxu0 0
      %987 = vmatmul.mubr.bf16.gmra.mrb[0].mxu0 %v734
      %v988 = vpop.f32.mrb[0].mxu0
      %v989 = vadd.f32 %v368, %v988
      %v990 = vpop.f32.mrb[0].mxu0
      %v991 = vpop.f32.mrb[0].mxu0
      %v992 = vadd.f32 %v368, %v991
      %v993 = vpop.f32.mrb[0].mxu0
      %994 = vmatprep.mubr.bf16.mxu0 0
      %995 = vmatmul.mubr.bf16.gmra.mrb[0].mxu0 %v737
      %v996 = vpop.f32.mrb[0].mxu0
      %v997 = vadd.f32 %v368, %v996
      %v998 = vpop.f32.mrb[0].mxu0
      %v999 = vpop.f32.mrb[0].mxu0
      %v1000 = vadd.f32 %v368, %v999
      %v1001 = vpop.f32.mrb[0].mxu0
      %1002 = vmatprep.mubr.bf16.mxu0 0
      %1003 = vmatmul.mubr.bf16.gmra.mrb[0].mxu0 %v740
      %v1004 = vpop.f32.mrb[0].mxu0
      %v1005 = vadd.f32 %v368, %v1004
      %v1006 = vpop.f32.mrb[0].mxu0
      %v1007 = vpop.f32.mrb[0].mxu0
      %v1008 = vadd.f32 %v368, %v1007
      %v1009 = vpop.f32.mrb[0].mxu0
      %1010 = vmatprep.mubr.bf16.mxu0 0
      %1011 = vmatmul.mubr.bf16.gmra.mrb[0].mxu0 %v743
      %v1012 = vpop.f32.mrb[0].mxu0
      %v1013 = vadd.f32 %v368, %v1012
      %v1014 = vpop.f32.mrb[0].mxu0
      %v1015 = vpop.f32.mrb[0].mxu0
      %v1016 = vadd.f32 %v368, %v1015
      %v1017 = vpop.f32.mrb[0].mxu0
      %1018 = vmatprep.mubr.bf16.mxu0 0
      %1019 = vmatmul.mubr.bf16.gmra.mrb[0].mxu0 %v746
      %v1020 = vpop.f32.mrb[0].mxu0
      %v1021 = vadd.f32 %v368, %v1020
      %v1022 = vpop.f32.mrb[0].mxu0
      %v1023 = vpop.f32.mrb[0].mxu0
      %v1024 = vadd.f32 %v368, %v1023
      %v1025 = vpop.f32.mrb[0].mxu0
      %1026 = vmatprep.mubr.bf16.mxu0 0
      %1027 = vmatmul.mubr.bf16.gmra.mrb[0].mxu0 %v749
      %v1028 = vpop.f32.mrb[0].mxu0
      %v1029 = vadd.f32 %v368, %v1028
      %v1030 = vpop.f32.mrb[0].mxu0
      %v1031 = vpop.f32.mrb[0].mxu0
      %v1032 = vadd.f32 %v368, %v1031
      %v1033 = vpop.f32.mrb[0].mxu0
      %1034 = vmatprep.mubr.bf16.mxu0 0
      %1035 = vmatmul.mubr.bf16.gmra.mrb[0].mxu0 %v752
      %v1036 = vpop.f32.mrb[0].mxu0
      %v1037 = vadd.f32 %v368, %v1036
      %v1038 = vpop.f32.mrb[0].mxu0
      %v1039 = vpop.f32.mrb[0].mxu0
      %v1040 = vadd.f32 %v368, %v1039
      %v1041 = vpop.f32.mrb[0].mxu0
      %1042 = vmatprep.mubr.bf16.mxu0 0
      %1043 = vmatmul.mubr.bf16.gmra.mrb[0].mxu0 %v755
      %v1044 = vpop.f32.mrb[0].mxu0
      %v1045 = vadd.f32 %v368, %v1044
      %v1046 = vpop.f32.mrb[0].mxu0
      %v1047 = vpop.f32.mrb[0].mxu0
      %v1048 = vadd.f32 %v368, %v1047
      %v1049 = vpop.f32.mrb[0].mxu0
      %1050 = vmatprep.mubr.bf16.mxu0 0
      %1051 = vmatmul.mubr.bf16.gmra.mrb[0].mxu0 %v758
      %v1052 = vpop.f32.mrb[0].mxu0
      %v1053 = vadd.f32 %v368, %v1052
      %v1054 = vpop.f32.mrb[0].mxu0
      %v1055 = vpop.f32.mrb[0].mxu0
      %v1056 = vadd.f32 %v368, %v1055
      %v1057 = vpop.f32.mrb[0].mxu0
      %1058 = vmatprep.mubr.bf16.mxu0 0
      %1059 = vmatmul.mubr.bf16.gmra.mrb[0].mxu0 %v761
      %v1060 = vpop.f32.mrb[0].mxu0
      %v1061 = vadd.f32 %v368, %v1060
      %v1062 = vpop.f32.mrb[0].mxu0
      %v1063 = vpop.f32.mrb[0].mxu0
      %v1064 = vadd.f32 %v368, %v1063
      %v1065 = vpop.f32.mrb[0].mxu0
      %1066 = vmatprep.mubr.bf16.mxu0 0
      %1067 = vmatmul.mubr.bf16.gmra.mrb[0].mxu0 %v764
      %v1068 = vpop.f32.mrb[0].mxu0
      %v1069 = vadd.f32 %v368, %v1068
      %v1070 = vpop.f32.mrb[0].mxu0
      %v1071 = vpop.f32.mrb[0].mxu0
      %v1072 = vadd.f32 %v368, %v1071
      %v1073 = vpop.f32.mrb[0].mxu0
      %1074 = vmatprep.mubr.bf16.mxu0 0
      %1075 = vmatmul.mubr.bf16.gmra.mrb[0].mxu0 %v767
      %v1076 = vpop.f32.mrb[0].mxu0
      %v1077 = vadd.f32 %v368, %v1076
      %v1078 = vpop.f32.mrb[0].mxu0
      %v1079 = vpop.f32.mrb[0].mxu0
      %v1080 = vadd.f32 %v368, %v1079
      %v1081 = vpop.f32.mrb[0].mxu0
      %1082 = vmatprep.mubr.bf16.mxu0 0
      %1083 = vmatmul.mubr.bf16.gmra.mrb[0].mxu0 %v770
      %v1084 = vpop.f32.mrb[0].mxu0
      %v1085 = vadd.f32 %v368, %v1084
      %v1086 = vpop.f32.mrb[0].mxu0
      %v1087 = vpop.f32.mrb[0].mxu0
      %v1088 = vadd.f32 %v368, %v1087
      %v1089 = vpop.f32.mrb[0].mxu0
      %1090 = vmatprep.mubr.bf16.mxu0 0
      %1091 = vmatmul.mubr.bf16.gmra.mrb[0].mxu0 %v773
      %v1092 = vpop.f32.mrb[0].mxu0
      %v1093 = vadd.f32 %v368, %v1092
      %v1094 = vpop.f32.mrb[0].mxu0
      %v1095 = vpop.f32.mrb[0].mxu0
      %v1096 = vadd.f32 %v368, %v1095
      %v1097 = vpop.f32.mrb[0].mxu0
      %1098 = vmatprep.mubr.bf16.mxu0 0
      %1099 = vmatmul.mubr.bf16.gmra.mrb[0].mxu0 %v776
      %v1100 = vpop.f32.mrb[0].mxu0
      %v1101 = vadd.f32 %v368, %v1100
      %v1102 = vpop.f32.mrb[0].mxu0
      %v1103 = vpop.f32.mrb[0].mxu0
      %v1104 = vadd.f32 %v368, %v1103
      %v1105 = vpop.f32.mrb[0].mxu0
      %1106 = vmatprep.mubr.bf16.mxu0 0
      %1107 = vmatmul.mubr.bf16.gmra.mrb[0].mxu0 %v779
      %v1108 = vpop.f32.mrb[0].mxu0
      %v1109 = vadd.f32 %v368, %v1108
      %v1110 = vpop.f32.mrb[0].mxu0
      %v1111 = vpop.f32.mrb[0].mxu0
      %v1112 = vadd.f32 %v368, %v1111
      %v1113 = vpop.f32.mrb[0].mxu0
      %1114 = vmatprep.mubr.bf16.mxu0 0
      %1115 = vmatmul.mubr.bf16.gmra.mrb[0].mxu0 %v782
      %v1116 = vpop.f32.mrb[0].mxu0
      %v1117 = vadd.f32 %v368, %v1116
      %v1118 = vpop.f32.mrb[0].mxu0
      %v1119 = vpop.f32.mrb[0].mxu0
      %v1120 = vadd.f32 %v368, %v1119
      %v1121 = vpop.f32.mrb[0].mxu0
      %1122 = vmatprep.mubr.bf16.mxu0 0
      %1123 = vmatmul.mubr.bf16.gmra.mrb[0].mxu0 %v785
      %v1124 = vpop.f32.mrb[0].mxu0
      %v1125 = vadd.f32 %v368, %v1124
      %v1126 = vpop.f32.mrb[0].mxu0
      %v1127 = vpop.f32.mrb[0].mxu0
      %v1128 = vadd.f32 %v368, %v1127
      %v1129 = vpop.f32.mrb[0].mxu0
      %1130 = vmatprep.mubr.bf16.mxu0 0
      %1131 = vmatmul.mubr.bf16.gmra.mrb[0].mxu0 %v788
      %v1132 = vpop.f32.mrb[0].mxu0
      %v1133 = vadd.f32 %v368, %v1132
      %v1134 = vpop.f32.mrb[0].mxu0
      %v1135 = vpop.f32.mrb[0].mxu0
      %v1136 = vadd.f32 %v368, %v1135
      %v1137 = vpop.f32.mrb[0].mxu0
      %1138 = vmatprep.mubr.bf16.mxu0 0
      %1139 = vmatmul.mubr.bf16.gmra.mrb[0].mxu0 %v791
      %v1140 = vpop.f32.mrb[0].mxu0
      %v1141 = vadd.f32 %v368, %v1140
      %v1142 = vpop.f32.mrb[0].mxu0
      %v1143 = vpop.f32.mrb[0].mxu0
      %v1144 = vadd.f32 %v368, %v1143
      %v1145 = vpop.f32.mrb[0].mxu0
      %1146 = vmatprep.mubr.bf16.mxu0 0
      %1147 = vmatmul.mubr.bf16.gmra.mrb[0].mxu0 %v794
      %v1148 = vpop.f32.mrb[0].mxu0
      %v1149 = vadd.f32 %v368, %v1148
      %v1150 = vpop.f32.mrb[0].mxu0
      %v1151 = vpop.f32.mrb[0].mxu0
      %v1152 = vadd.f32 %v368, %v1151
      %v1153 = vpop.f32.mrb[0].mxu0
      %1154 = vmatprep.mubr.bf16.mxu0 0
      %1155 = vmatmul.mubr.bf16.gmra.mrb[0].mxu0 %v797
      %v1156 = vpop.f32.mrb[0].mxu0
      %v1157 = vadd.f32 %v368, %v1156
      %v1158 = vpop.f32.mrb[0].mxu0
      %v1159 = vpop.f32.mrb[0].mxu0
      %v1160 = vadd.f32 %v368, %v1159
      %v1161 = vpop.f32.mrb[0].mxu0
      %1162 = vmatprep.mubr.bf16.mxu0 0
      %1163 = vmatmul.mubr.bf16.gmra.mrb[0].mxu0 %v800
      %v1164 = vpop.f32.mrb[0].mxu0
      %v1165 = vadd.f32 %v368, %v1164
      %v1166 = vpop.f32.mrb[0].mxu0
      %v1167 = vpop.f32.mrb[0].mxu0
      %v1168 = vadd.f32 %v368, %v1167
      %v1169 = vpop.f32.mrb[0].mxu0
      %1170 = vmatprep.mubr.bf16.mxu0 0
      %1171 = vmatmul.mubr.bf16.gmra.mrb[0].mxu0 %v803
      %v1172 = vpop.f32.mrb[0].mxu0
      %v1173 = vadd.f32 %v368, %v1172
      %v1174 = vpop.f32.mrb[0].mxu0
      %v1175 = vpop.f32.mrb[0].mxu0
      %v1176 = vadd.f32 %v368, %v1175
      %v1177 = vpop.f32.mrb[0].mxu0
      %1178 = vmatprep.mubr.bf16.mxu0 0
      %1179 = vmatmul.mubr.bf16.gmra.mrb[0].mxu0 %v806
      %v1180 = vpop.f32.mrb[0].mxu0
      %v1181 = vadd.f32 %v368, %v1180
      %v1182 = vpop.f32.mrb[0].mxu0
      %v1183 = vpop.f32.mrb[0].mxu0
      %v1184 = vadd.f32 %v368, %v1183
      %v1185 = vpop.f32.mrb[0].mxu0
      %1186 = vmatprep.mubr.bf16.mxu0 0
      %1187 = vmatmul.mubr.bf16.gmra.mrb[0].mxu0 %v809
      %v1188 = vpop.f32.mrb[0].mxu0
      %v1189 = vadd.f32 %v368, %v1188
      %v1190 = vpop.f32.mrb[0].mxu0
      %v1191 = vpop.f32.mrb[0].mxu0
      %v1192 = vadd.f32 %v368, %v1191
      %v1193 = vpop.f32.mrb[0].mxu0
      %1194 = vmatprep.mubr.bf16.mxu0 0
      %1195 = vmatmul.mubr.bf16.gmra.mrb[0].mxu0 %v812
      %v1196 = vpop.f32.mrb[0].mxu0
      %v1197 = vadd.f32 %v368, %v1196
      %v1198 = vpop.f32.mrb[0].mxu0
      %v1199 = vpop.f32.mrb[0].mxu0
      %v1200 = vadd.f32 %v368, %v1199
      %v1201 = vpop.f32.mrb[0].mxu0
      %1202 = vmatprep.mubr.bf16.mxu0 0
      %1203 = vmatmul.mubr.bf16.gmra.mrb[0].mxu0 %v815
      %v1204 = vpop.f32.mrb[0].mxu0
      %v1205 = vadd.f32 %v368, %v1204
      %v1206 = vpop.f32.mrb[0].mxu0
      %v1207 = vpop.f32.mrb[0].mxu0
      %v1208 = vadd.f32 %v368, %v1207
      %v1209 = vpop.f32.mrb[0].mxu0
      %1210 = vmatprep.mubr.bf16.mxu0 0
      %1211 = vmatmul.mubr.bf16.gmra.mrb[0].mxu0 %v818
      %v1212 = vpop.f32.mrb[0].mxu0
      %v1213 = vadd.f32 %v368, %v1212
      %v1214 = vpop.f32.mrb[0].mxu0
      %v1215 = vpop.f32.mrb[0].mxu0
      %v1216 = vadd.f32 %v368, %v1215
      %v1217 = vpop.f32.mrb[0].mxu0
      %1218 = vmatprep.mubr.bf16.mxu0 0
      %1219 = vmatmul.mubr.bf16.gmra.mrb[0].mxu0 %v821
      %v1220 = vpop.f32.mrb[0].mxu0
      %v1221 = vadd.f32 %v368, %v1220
      %v1222 = vpop.f32.mrb[0].mxu0
      %v1223 = vpop.f32.mrb[0].mxu0
      %v1224 = vadd.f32 %v368, %v1223
      %v1225 = vpop.f32.mrb[0].mxu0
      %1226 = vmatprep.mubr.bf16.mxu0 0
      %1227 = vmatmul.mubr.bf16.gmra.mrb[0].mxu0 %v824
      %v1228 = vpop.f32.mrb[0].mxu0
      %v1229 = vadd.f32 %v368, %v1228
      %v1230 = vpop.f32.mrb[0].mxu0
      %v1231 = vpop.f32.mrb[0].mxu0
      %v1232 = vadd.f32 %v368, %v1231
      %v1233 = vpop.f32.mrb[0].mxu0
      %1234 = vmatprep.mubr.bf16.mxu0 0
      %1235 = vmatmul.mubr.bf16.gmra.mrb[0].mxu0 %v827
      %v1236 = vpop.f32.mrb[0].mxu0
      %v1237 = vadd.f32 %v368, %v1236
      %v1238 = vpop.f32.mrb[0].mxu0
      %v1239 = vpop.f32.mrb[0].mxu0
      %v1240 = vadd.f32 %v368, %v1239
      %v1241 = vpop.f32.mrb[0].mxu0
      %1242 = vmatprep.mubr.bf16.mxu0 0
      %1243 = vmatmul.mubr.bf16.gmra.mrb[0].mxu0 %v830
      %v1244 = vpop.f32.mrb[0].mxu0
      %v1245 = vadd.f32 %v368, %v1244
      %v1246 = vpop.f32.mrb[0].mxu0
      %v1247 = vpop.f32.mrb[0].mxu0
      %v1248 = vadd.f32 %v368, %v1247
      %v1249 = vpop.f32.mrb[0].mxu0
      %1250 = vmatprep.mubr.bf16.mxu0 0
      %1251 = vmatmul.mubr.bf16.gmra.mrb[0].mxu0 %v833
      %v1252 = vpop.f32.mrb[0].mxu0
      %v1253 = vadd.f32 %v368, %v1252
      %v1254 = vpop.f32.mrb[0].mxu0
      %v1255 = vpop.f32.mrb[0].mxu0
      %v1256 = vadd.f32 %v368, %v1255
      %v1257 = vpop.f32.mrb[0].mxu0
      %1258 = vmatprep.mubr.bf16.mxu0 0
      %1259 = vmatmul.mubr.bf16.gmra.mrb[0].mxu0 %v836
      %v1260 = vpop.f32.mrb[0].mxu0
      %v1261 = vadd.f32 %v368, %v1260
      %v1262 = vpop.f32.mrb[0].mxu0
      %v1263 = vpop.f32.mrb[0].mxu0
      %v1264 = vadd.f32 %v368, %v1263
      %v1265 = vpop.f32.mrb[0].mxu0
      %1266 = vmatprep.mubr.bf16.mxu0 0
      %1267 = vmatmul.mubr.bf16.gmra.mrb[0].mxu0 %v839
      %v1268 = vpop.f32.mrb[0].mxu0
      %v1269 = vadd.f32 %v368, %v1268
      %v1270 = vpop.f32.mrb[0].mxu0
      %v1271 = vpop.f32.mrb[0].mxu0
      %v1272 = vadd.f32 %v368, %v1271
      %v1273 = vpop.f32.mrb[0].mxu0
      %1274 = vmatprep.mubr.bf16.mxu0 0
      %1275 = vmatmul.mubr.bf16.gmra.mrb[0].mxu0 %v842
      %v1276 = vpop.f32.mrb[0].mxu0
      %v1277 = vadd.f32 %v368, %v1276
      %v1278 = vpop.f32.mrb[0].mxu0
      %v1279 = vpop.f32.mrb[0].mxu0
      %v1280 = vadd.f32 %v368, %v1279
      %v1281 = vpop.f32.mrb[0].mxu0
      %1282 = vmatprep.mubr.bf16.mxu0 0
      %1283 = vmatmul.mubr.bf16.gmra.mrb[0].mxu0 %v845
      %v1284 = vpop.f32.mrb[0].mxu0
      %v1285 = vadd.f32 %v368, %v1284
      %v1286 = vpop.f32.mrb[0].mxu0
      %v1287 = vpop.f32.mrb[0].mxu0
      %v1288 = vadd.f32 %v368, %v1287
      %v1289 = vpop.f32.mrb[0].mxu0
      %1290 = vmatprep.mubr.bf16.mxu0 0
      %1291 = vmatmul.mubr.bf16.gmra.mrb[0].mxu0 %v848
      %v1292 = vpop.f32.mrb[0].mxu0
      %v1293 = vadd.f32 %v368, %v1292
      %v1294 = vpop.f32.mrb[0].mxu0
      %v1295 = vpop.f32.mrb[0].mxu0
      %v1296 = vadd.f32 %v368, %v1295
      %v1297 = vpop.f32.mrb[0].mxu0
      %1298 = vmatprep.mubr.bf16.mxu0 0
      %1299 = vmatmul.mubr.bf16.gmra.mrb[0].mxu0 %v851
      %v1300 = vpop.f32.mrb[0].mxu0
      %v1301 = vadd.f32 %v368, %v1300
      %v1302 = vpop.f32.mrb[0].mxu0
      %v1303 = vpop.f32.mrb[0].mxu0
      %v1304 = vadd.f32 %v368, %v1303
      %v1305 = vpop.f32.mrb[0].mxu0
      %1306 = vmatprep.mubr.bf16.mxu0 0
      %1307 = vmatmul.mubr.bf16.gmra.mrb[0].mxu0 %v854
      %v1308 = vpop.f32.mrb[0].mxu0
      %v1309 = vadd.f32 %v368, %v1308
      %v1310 = vpop.f32.mrb[0].mxu0
      %v1311 = vpop.f32.mrb[0].mxu0
      %v1312 = vadd.f32 %v368, %v1311
      %v1313 = vpop.f32.mrb[0].mxu0
      %1314 = vmatprep.mubr.bf16.mxu0 0
      %1315 = vmatmul.mubr.bf16.gmra.mrb[0].mxu0 %v857
      %v1316 = vpop.f32.mrb[0].mxu0
      %v1317 = vadd.f32 %v368, %v1316
      %v1318 = vpop.f32.mrb[0].mxu0
      %v1319 = vpop.f32.mrb[0].mxu0
      %v1320 = vadd.f32 %v368, %v1319
      %v1321 = vpop.f32.mrb[0].mxu0
      %1322 = vmatprep.mubr.bf16.mxu0 0
      %1323 = vmatmul.mubr.bf16.gmra.mrb[0].mxu0 %v860
      %v1324 = vpop.f32.mrb[0].mxu0
      %v1325 = vadd.f32 %v368, %v1324
      %v1326 = vpop.f32.mrb[0].mxu0
      %v1327 = vpop.f32.mrb[0].mxu0
      %v1328 = vadd.f32 %v368, %v1327
      %v1329 = vpop.f32.mrb[0].mxu0
      %1330 = vmatprep.mubr.bf16.mxu0 0
      %1331 = vmatmul.mubr.bf16.gmra.mrb[0].mxu0 %v863
      %v1332 = vpop.f32.mrb[0].mxu0
      %v1333 = vadd.f32 %v368, %v1332
      %v1334 = vpop.f32.mrb[0].mxu0
      %v1335 = vpop.f32.mrb[0].mxu0
      %v1336 = vadd.f32 %v368, %v1335
      %v1337 = vpop.f32.mrb[0].mxu0
      %1338 = vmatprep.mubr.bf16.mxu0 0
      %1339 = vmatmul.mubr.bf16.gmra.mrb[0].mxu0 %v866
      %v1340 = vpop.f32.mrb[0].mxu0
      %v1341 = vadd.f32 %v368, %v1340
      %v1342 = vpop.f32.mrb[0].mxu0
      %v1343 = vpop.f32.mrb[0].mxu0
      %v1344 = vadd.f32 %v368, %v1343
      %v1345 = vpop.f32.mrb[0].mxu0
      %1346 = vmatprep.mubr.bf16.mxu0 0
      %1347 = vmatmul.mubr.bf16.gmra.mrb[0].mxu0 %v869
      %v1348 = vpop.f32.mrb[0].mxu0
      %v1349 = vadd.f32 %v368, %v1348
      %v1350 = vpop.f32.mrb[0].mxu0
      %v1351 = vpop.f32.mrb[0].mxu0
      %v1352 = vadd.f32 %v368, %v1351
      %v1353 = vpop.f32.mrb[0].mxu0
      %1354 = vmatprep.mubr.bf16.mxu0 0
      %1355 = vmatmul.mubr.bf16.gmra.mrb[0].mxu0 %v872
      %v1356 = vpop.f32.mrb[0].mxu0
      %v1357 = vadd.f32 %v368, %v1356
      %v1358 = vpop.f32.mrb[0].mxu0
      %v1359 = vpop.f32.mrb[0].mxu0
      %v1360 = vadd.f32 %v368, %v1359
      %v1361 = vpop.f32.mrb[0].mxu0
      %1362 = vmatprep.mubr.bf16.mxu0 0
      %1363 = vmatmul.mubr.bf16.gmra.mrb[0].mxu0 %v875
      %v1364 = vpop.f32.mrb[0].mxu0
      %v1365 = vadd.f32 %v368, %v1364
      %v1366 = vpop.f32.mrb[0].mxu0
      %v1367 = vpop.f32.mrb[0].mxu0
      %v1368 = vadd.f32 %v368, %v1367
      %v1369 = vpop.f32.mrb[0].mxu0
      %1370 = vmatprep.mubr.bf16.mxu0 0
      %1371 = vmatmul.mubr.bf16.gmra.mrb[0].mxu0 %v878
      %v1372 = vpop.f32.mrb[0].mxu0
      %v1373 = vadd.f32 %v368, %v1372
      %v1374 = vpop.f32.mrb[0].mxu0
      %v1375 = vpop.f32.mrb[0].mxu0
      %v1376 = vadd.f32 %v368, %v1375
      %v1377 = vpop.f32.mrb[0].mxu0
      %1378 = vmatprep.mubr.bf16.mxu0 0
      %1379 = vmatmul.mubr.bf16.gmra.mrb[0].mxu0 %v881
      %v1380 = vpop.f32.mrb[0].mxu0
      %v1381 = vadd.f32 %v368, %v1380
      %v1382 = vpop.f32.mrb[0].mxu0
      %v1383 = vpop.f32.mrb[0].mxu0
      %v1384 = vadd.f32 %v368, %v1383
      %v1385 = vpop.f32.mrb[0].mxu0
      %1386 = vmatprep.mubr.bf16.mxu0 0
      %1387 = vmatmul.mubr.bf16.gmra.mrb[0].mxu0 %v884
      %v1388 = vpop.f32.mrb[0].mxu0
      %v1389 = vadd.f32 %v368, %v1388
      %v1390 = vpop.f32.mrb[0].mxu0
      %v1391 = vpop.f32.mrb[0].mxu0
      %v1392 = vadd.f32 %v368, %v1391
      %v1393 = vpop.f32.mrb[0].mxu0
      %1394 = vmatprep.mubr.bf16.mxu0 0
      %1395 = vmatmul.mubr.bf16.gmra.mrb[0].mxu0 %v887
      %v1396 = vpop.f32.mrb[0].mxu0
      %v1397 = vadd.f32 %v368, %v1396
      %v1398 = vpop.f32.mrb[0].mxu0
      %v1399 = vpop.f32.mrb[0].mxu0
      %v1400 = vadd.f32 %v368, %v1399
      %v1401 = vpop.f32.mrb[0].mxu0
      %1402 = vmatprep.mubr.bf16.mxu0 0
      %1403 = vmatmul.mubr.bf16.gmra.mrb[0].mxu0 %v890
      %v1404 = vpop.f32.mrb[0].mxu0
      %v1405 = vadd.f32 %v368, %v1404
      %v1406 = vpop.f32.mrb[0].mxu0
      %v1407 = vpop.f32.mrb[0].mxu0
      %v1408 = vadd.f32 %v368, %v1407
      %v1409 = vpop.f32.mrb[0].mxu0
      %1410 = vmatprep.mubr.bf16.mxu0 0
      %1411 = vmatmul.mubr.bf16.gmra.mrb[0].mxu0 %v893
      %v1412 = vpop.f32.mrb[0].mxu0
      %v1413 = vadd.f32 %v368, %v1412
      %v1414 = vpop.f32.mrb[0].mxu0
      %v1415 = vpop.f32.mrb[0].mxu0
      %v1416 = vadd.f32 %v368, %v1415
      %v1417 = vpop.f32.mrb[0].mxu0
      %1418 = vmatprep.mubr.bf16.mxu0 0
      %1419 = vmatmul.mubr.bf16.gmra.mrb[0].mxu0 %v896
      %v1420 = vpop.f32.mrb[0].mxu0
      %v1421 = vadd.f32 %v368, %v1420
      %v1422 = vpop.f32.mrb[0].mxu0
      %v1423 = vpop.f32.mrb[0].mxu0
      %v1424 = vadd.f32 %v368, %v1423
      %v1425 = vpop.f32.mrb[0].mxu0
      %1426 = vmatprep.mubr.bf16.mxu0 0
      %1427 = vmatmul.mubr.bf16.gmra.mrb[0].mxu0 %v899
      %v1428 = vpop.f32.mrb[0].mxu0
      %v1429 = vadd.f32 %v368, %v1428
      %v1430 = vpop.f32.mrb[0].mxu0
      %v1431 = vpop.f32.mrb[0].mxu0
      %v1432 = vadd.f32 %v368, %v1431
      %v1433 = vpop.f32.mrb[0].mxu0
      %1434 = vmatprep.mubr.bf16.mxu0 0
      %1435 = vmatmul.mubr.bf16.gmra.mrb[0].mxu0 %v902
      %v1436 = vpop.f32.mrb[0].mxu0
      %v1437 = vadd.f32 %v368, %v1436
      %v1438 = vpop.f32.mrb[0].mxu0
      %v1439 = vpop.f32.mrb[0].mxu0
      %v1440 = vadd.f32 %v368, %v1439
      %v1441 = vpop.f32.mrb[0].mxu0
      %1442 = vmatprep.mubr.bf16.mxu0 0
      %1443 = vmatmul.mubr.bf16.gmra.mrb[0].mxu0 %v905
      %v1444 = vpop.f32.mrb[0].mxu0
      %v1445 = vadd.f32 %v368, %v1444
      %v1446 = vpop.f32.mrb[0].mxu0
      %v1447 = vpop.f32.mrb[0].mxu0
      %v1448 = vadd.f32 %v368, %v1447
      %v1449 = vpop.f32.mrb[0].mxu0
      %1450 = vmatprep.mubr.bf16.mxu0 0
      %1451 = vmatmul.mubr.bf16.gmra.mrb[0].mxu0 %v908
      %v1452 = vpop.f32.mrb[0].mxu0
      %v1453 = vadd.f32 %v368, %v1452
      %v1454 = vpop.f32.mrb[0].mxu0
      %v1455 = vpop.f32.mrb[0].mxu0
      %v1456 = vadd.f32 %v368, %v1455
      %v1457 = vpop.f32.mrb[0].mxu0
      %1458 = vdwg.mxu0
      %v1459 = vtanh.pop %v949
      %v1460 = vtanh.pop %v952
      %v1461 = vtanh.pop %v957
      %v1462 = vtanh.pop %v960
      %v1463 = vtanh.pop %v965
      %v1464 = vtanh.pop %v968
      %v1465 = vtanh.pop %v973
      %v1466 = vtanh.pop %v976
      %v1467 = vtanh.pop %v981
      %v1468 = vtanh.pop %v984
      %v1469 = vtanh.pop %v989
      %v1470 = vtanh.pop %v992
      %v1471 = vtanh.pop %v997
      %v1472 = vtanh.pop %v1000
      %v1473 = vtanh.pop %v1005
      %v1474 = vtanh.pop %v1008
      %v1475 = vtanh.pop %v1013
      %v1476 = vtanh.pop %v1016
      %v1477 = vtanh.pop %v1021
      %v1478 = vtanh.pop %v1024
      %v1479 = vtanh.pop %v1029
      %v1480 = vtanh.pop %v1032
      %v1481 = vtanh.pop %v1037
      %v1482 = vtanh.pop %v1040
      %v1483 = vtanh.pop %v1045
      %v1484 = vtanh.pop %v1048
      %v1485 = vtanh.pop %v1053
      %v1486 = vtanh.pop %v1056
      %v1487 = vtanh.pop %v1061
      %v1488 = vtanh.pop %v1064
      %v1489 = vtanh.pop %v1069
      %v1490 = vtanh.pop %v1072
      %v1491 = vtanh.pop %v1077
      %v1492 = vtanh.pop %v1080
      %v1493 = vtanh.pop %v1085
      %v1494 = vtanh.pop %v1088
      %v1495 = vtanh.pop %v1093
      %v1496 = vtanh.pop %v1096
      %v1497 = vtanh.pop %v1101
      %v1498 = vtanh.pop %v1104
      %v1499 = vtanh.pop %v1109
      %v1500 = vtanh.pop %v1112
      %v1501 = vtanh.pop %v1117
      %v1502 = vtanh.pop %v1120
      %v1503 = vtanh.pop %v1125
      %v1504 = vtanh.pop %v1128
      %v1505 = vtanh.pop %v1133
      %v1506 = vtanh.pop %v1136
      %v1507 = vtanh.pop %v1141
      %v1508 = vtanh.pop %v1144
      %v1509 = vtanh.pop %v1149
      %v1510 = vtanh.pop %v1152
      %v1511 = vtanh.pop %v1157
      %v1512 = vtanh.pop %v1160
      %v1513 = vtanh.pop %v1165
      %v1514 = vtanh.pop %v1168
      %v1515 = vtanh.pop %v1173
      %v1516 = vtanh.pop %v1176
      %v1517 = vtanh.pop %v1181
      %v1518 = vtanh.pop %v1184
      %v1519 = vtanh.pop %v1189
      %v1520 = vtanh.pop %v1192
      %v1521 = vtanh.pop %v1197
      %v1522 = vtanh.pop %v1200
      %v1523 = vtanh.pop %v1205
      %v1524 = vtanh.pop %v1208
      %v1525 = vtanh.pop %v1213
      %v1526 = vtanh.pop %v1216
      %v1527 = vtanh.pop %v1221
      %v1528 = vtanh.pop %v1224
      %v1529 = vtanh.pop %v1229
      %v1530 = vtanh.pop %v1232
      %v1531 = vtanh.pop %v1237
      %v1532 = vtanh.pop %v1240
      %v1533 = vtanh.pop %v1245
      %v1534 = vtanh.pop %v1248
      %v1535 = vtanh.pop %v1253
      %v1536 = vtanh.pop %v1256
      %v1537 = vtanh.pop %v1261
      %v1538 = vtanh.pop %v1264
      %v1539 = vtanh.pop %v1269
      %v1540 = vtanh.pop %v1272
      %v1541 = vtanh.pop %v1277
      %v1542 = vtanh.pop %v1280
      %v1543 = vtanh.pop %v1285
      %v1544 = vtanh.pop %v1288
      %v1545 = vtanh.pop %v1293
      %v1546 = vtanh.pop %v1296
      %v1547 = vtanh.pop %v1301
      %v1548 = vtanh.pop %v1304
      %v1549 = vtanh.pop %v1309
      %v1550 = vtanh.pop %v1312
      %v1551 = vtanh.pop %v1317
      %v1552 = vtanh.pop %v1320
      %v1553 = vtanh.pop %v1325
      %v1554 = vtanh.pop %v1328
      %v1555 = vtanh.pop %v1333
      %v1556 = vtanh.pop %v1336
      %v1557 = vtanh.pop %v1341
      %v1558 = vtanh.pop %v1344
      %v1559 = vtanh.pop %v1349
      %v1560 = vtanh.pop %v1352
      %v1561 = vtanh.pop %v1357
      %v1562 = vtanh.pop %v1360
      %v1563 = vtanh.pop %v1365
      %v1564 = vtanh.pop %v1368
      %v1565 = vtanh.pop %v1373
      %v1566 = vtanh.pop %v1376
      %v1567 = vtanh.pop %v1381
      %v1568 = vtanh.pop %v1384
      %v1569 = vtanh.pop %v1389
      %v1570 = vtanh.pop %v1392
      %v1571 = vtanh.pop %v1397
      %v1572 = vtanh.pop %v1400
      %v1573 = vtanh.pop %v1405
      %v1574 = vtanh.pop %v1408
      %v1575 = vtanh.pop %v1413
      %v1576 = vtanh.pop %v1416
      %v1577 = vtanh.pop %v1421
      %v1578 = vtanh.pop %v1424
      %v1579 = vtanh.pop %v1429
      %v1580 = vtanh.pop %v1432
      %v1581 = vtanh.pop %v1437
      %v1582 = vtanh.pop %v1440
      %v1583 = vtanh.pop %v1445
      %v1584 = vtanh.pop %v1448
      %v1585 = vtanh.pop %v1453
      %v1586 = vtanh.pop %v1456
      %vm1587 = vcmask 97280
      %1588 = vst.msk [vmem:[%s223] sm:$0xff] %vm1587, %v1459
      %1589 = vst.msk [vmem:[%s223 + $0x8] sm:$0xff] %vm1587, %v1460
      %1590 = vst.msk [vmem:[%s223 + $0x10] sm:$0xff] %vm1587, %v1461
      %1591 = vst.msk [vmem:[%s223 + $0x18] sm:$0xff] %vm1587, %v1462
      %1592 = vst.msk [vmem:[%s223 + $0x20] sm:$0xff] %vm1587, %v1463
      %1593 = vst.msk [vmem:[%s223 + $0x28] sm:$0xff] %vm1587, %v1464
      %1594 = vst.msk [vmem:[%s223 + $0x30] sm:$0xff] %vm1587, %v1465
      %1595 = vst.msk [vmem:[%s223 + $0x38] sm:$0xff] %vm1587, %v1466
      %1596 = vst.msk [vmem:[%s223 + $0x40] sm:$0xff] %vm1587, %v1467
      %1597 = vst.msk [vmem:[%s223 + $0x48] sm:$0xff] %vm1587, %v1468
      %1598 = vst.msk [vmem:[%s223 + $0x50] sm:$0xff] %vm1587, %v1469
      %1599 = vst.msk [vmem:[%s223 + $0x58] sm:$0xff] %vm1587, %v1470
      %1600 = vst.msk [vmem:[%s223 + $0x60] sm:$0xff] %vm1587, %v1471
      %1601 = vst.msk [vmem:[%s223 + $0x68] sm:$0xff] %vm1587, %v1472
      %1602 = vst.msk [vmem:[%s223 + $0x70] sm:$0xff] %vm1587, %v1473
      %1603 = vst.msk [vmem:[%s223 + $0x78] sm:$0xff] %vm1587, %v1474
      %1604 = vst.msk [vmem:[%s223 + $0x80] sm:$0xff] %vm1587, %v1475
      %1605 = vst.msk [vmem:[%s223 + $0x88] sm:$0xff] %vm1587, %v1476
      %1606 = vst.msk [vmem:[%s223 + $0x90] sm:$0xff] %vm1587, %v1477
      %1607 = vst.msk [vmem:[%s223 + $0x98] sm:$0xff] %vm1587, %v1478
      %1608 = vst.msk [vmem:[%s223 + $0xa0] sm:$0xff] %vm1587, %v1479
      %1609 = vst.msk [vmem:[%s223 + $0xa8] sm:$0xff] %vm1587, %v1480
      %1610 = vst.msk [vmem:[%s223 + $0xb0] sm:$0xff] %vm1587, %v1481
      %1611 = vst.msk [vmem:[%s223 + $0xb8] sm:$0xff] %vm1587, %v1482
      %1612 = vst.msk [vmem:[%s223 + $0xc0] sm:$0xff] %vm1587, %v1483
      %1613 = vst.msk [vmem:[%s223 + $0xc8] sm:$0xff] %vm1587, %v1484
      %1614 = vst.msk [vmem:[%s223 + $0xd0] sm:$0xff] %vm1587, %v1485
      %1615 = vst.msk [vmem:[%s223 + $0xd8] sm:$0xff] %vm1587, %v1486
      %1616 = vst.msk [vmem:[%s223 + $0xe0] sm:$0xff] %vm1587, %v1487
      %1617 = vst.msk [vmem:[%s223 + $0xe8] sm:$0xff] %vm1587, %v1488
      %1618 = vst.msk [vmem:[%s223 + $0xf0] sm:$0xff] %vm1587, %v1489
      %1619 = vst.msk [vmem:[%s223 + $0xf8] sm:$0xff] %vm1587, %v1490
      %1620 = vst.msk [vmem:[%s223 + $0x100] sm:$0xff] %vm1587, %v1491
      %1621 = vst.msk [vmem:[%s223 + $0x108] sm:$0xff] %vm1587, %v1492
      %1622 = vst.msk [vmem:[%s223 + $0x110] sm:$0xff] %vm1587, %v1493
      %1623 = vst.msk [vmem:[%s223 + $0x118] sm:$0xff] %vm1587, %v1494
      %1624 = vst.msk [vmem:[%s223 + $0x120] sm:$0xff] %vm1587, %v1495
      %1625 = vst.msk [vmem:[%s223 + $0x128] sm:$0xff] %vm1587, %v1496
      %1626 = vst.msk [vmem:[%s223 + $0x130] sm:$0xff] %vm1587, %v1497
      %1627 = vst.msk [vmem:[%s223 + $0x138] sm:$0xff] %vm1587, %v1498
      %1628 = vst.msk [vmem:[%s223 + $0x140] sm:$0xff] %vm1587, %v1499
      %1629 = vst.msk [vmem:[%s223 + $0x148] sm:$0xff] %vm1587, %v1500
      %1630 = vst.msk [vmem:[%s223 + $0x150] sm:$0xff] %vm1587, %v1501
      %1631 = vst.msk [vmem:[%s223 + $0x158] sm:$0xff] %vm1587, %v1502
      %1632 = vst.msk [vmem:[%s223 + $0x160] sm:$0xff] %vm1587, %v1503
      %1633 = vst.msk [vmem:[%s223 + $0x168] sm:$0xff] %vm1587, %v1504
      %1634 = vst.msk [vmem:[%s223 + $0x170] sm:$0xff] %vm1587, %v1505
      %1635 = vst.msk [vmem:[%s223 + $0x178] sm:$0xff] %vm1587, %v1506
      %1636 = vst.msk [vmem:[%s223 + $0x180] sm:$0xff] %vm1587, %v1507
      %1637 = vst.msk [vmem:[%s223 + $0x188] sm:$0xff] %vm1587, %v1508
      %1638 = vst.msk [vmem:[%s223 + $0x190] sm:$0xff] %vm1587, %v1509
      %1639 = vst.msk [vmem:[%s223 + $0x198] sm:$0xff] %vm1587, %v1510
      %1640 = vst.msk [vmem:[%s223 + $0x1a0] sm:$0xff] %vm1587, %v1511
      %1641 = vst.msk [vmem:[%s223 + $0x1a8] sm:$0xff] %vm1587, %v1512
      %1642 = vst.msk [vmem:[%s223 + $0x1b0] sm:$0xff] %vm1587, %v1513
      %1643 = vst.msk [vmem:[%s223 + $0x1b8] sm:$0xff] %vm1587, %v1514
      %1644 = vst.msk [vmem:[%s223 + $0x1c0] sm:$0xff] %vm1587, %v1515
      %1645 = vst.msk [vmem:[%s223 + $0x1c8] sm:$0xff] %vm1587, %v1516
      %1646 = vst.msk [vmem:[%s223 + $0x1d0] sm:$0xff] %vm1587, %v1517
      %1647 = vst.msk [vmem:[%s223 + $0x1d8] sm:$0xff] %vm1587, %v1518
      %1648 = vst.msk [vmem:[%s223 + $0x1e0] sm:$0xff] %vm1587, %v1519
      %1649 = vst.msk [vmem:[%s223 + $0x1e8] sm:$0xff] %vm1587, %v1520
      %1650 = vst.msk [vmem:[%s223 + $0x1f0] sm:$0xff] %vm1587, %v1521
      %1651 = vst.msk [vmem:[%s223 + $0x1f8] sm:$0xff] %vm1587, %v1522
      %1652 = vst.msk [vmem:[%s223 + $0x200] sm:$0xff] %vm1587, %v1523
      %1653 = vst.msk [vmem:[%s223 + $0x208] sm:$0xff] %vm1587, %v1524
      %1654 = vst.msk [vmem:[%s223 + $0x210] sm:$0xff] %vm1587, %v1525
      %1655 = vst.msk [vmem:[%s223 + $0x218] sm:$0xff] %vm1587, %v1526
      %1656 = vst.msk [vmem:[%s223 + $0x220] sm:$0xff] %vm1587, %v1527
      %1657 = vst.msk [vmem:[%s223 + $0x228] sm:$0xff] %vm1587, %v1528
      %1658 = vst.msk [vmem:[%s223 + $0x230] sm:$0xff] %vm1587, %v1529
      %1659 = vst.msk [vmem:[%s223 + $0x238] sm:$0xff] %vm1587, %v1530
      %1660 = vst.msk [vmem:[%s223 + $0x240] sm:$0xff] %vm1587, %v1531
      %1661 = vst.msk [vmem:[%s223 + $0x248] sm:$0xff] %vm1587, %v1532
      %1662 = vst.msk [vmem:[%s223 + $0x250] sm:$0xff] %vm1587, %v1533
      %1663 = vst.msk [vmem:[%s223 + $0x258] sm:$0xff] %vm1587, %v1534
      %1664 = vst.msk [vmem:[%s223 + $0x260] sm:$0xff] %vm1587, %v1535
      %1665 = vst.msk [vmem:[%s223 + $0x268] sm:$0xff] %vm1587, %v1536
      %1666 = vst.msk [vmem:[%s223 + $0x270] sm:$0xff] %vm1587, %v1537
      %1667 = vst.msk [vmem:[%s223 + $0x278] sm:$0xff] %vm1587, %v1538
      %1668 = vst.msk [vmem:[%s223 + $0x280] sm:$0xff] %vm1587, %v1539
      %1669 = vst.msk [vmem:[%s223 + $0x288] sm:$0xff] %vm1587, %v1540
      %1670 = vst.msk [vmem:[%s223 + $0x290] sm:$0xff] %vm1587, %v1541
      %1671 = vst.msk [vmem:[%s223 + $0x298] sm:$0xff] %vm1587, %v1542
      %1672 = vst.msk [vmem:[%s223 + $0x2a0] sm:$0xff] %vm1587, %v1543
      %1673 = vst.msk [vmem:[%s223 + $0x2a8] sm:$0xff] %vm1587, %v1544
      %1674 = vst.msk [vmem:[%s223 + $0x2b0] sm:$0xff] %vm1587, %v1545
      %1675 = vst.msk [vmem:[%s223 + $0x2b8] sm:$0xff] %vm1587, %v1546
      %1676 = vst.msk [vmem:[%s223 + $0x2c0] sm:$0xff] %vm1587, %v1547
      %1677 = vst.msk [vmem:[%s223 + $0x2c8] sm:$0xff] %vm1587, %v1548
      %1678 = vst.msk [vmem:[%s223 + $0x2d0] sm:$0xff] %vm1587, %v1549
      %1679 = vst.msk [vmem:[%s223 + $0x2d8] sm:$0xff] %vm1587, %v1550
      %1680 = vst.msk [vmem:[%s223 + $0x2e0] sm:$0xff] %vm1587, %v1551
      %1681 = vst.msk [vmem:[%s223 + $0x2e8] sm:$0xff] %vm1587, %v1552
      %1682 = vst.msk [vmem:[%s223 + $0x2f0] sm:$0xff] %vm1587, %v1553
      %1683 = vst.msk [vmem:[%s223 + $0x2f8] sm:$0xff] %vm1587, %v1554
      %1684 = vst.msk [vmem:[%s223 + $0x300] sm:$0xff] %vm1587, %v1555
      %1685 = vst.msk [vmem:[%s223 + $0x308] sm:$0xff] %vm1587, %v1556
      %1686 = vst.msk [vmem:[%s223 + $0x310] sm:$0xff] %vm1587, %v1557
      %1687 = vst.msk [vmem:[%s223 + $0x318] sm:$0xff] %vm1587, %v1558
      %1688 = vst.msk [vmem:[%s223 + $0x320] sm:$0xff] %vm1587, %v1559
      %1689 = vst.msk [vmem:[%s223 + $0x328] sm:$0xff] %vm1587, %v1560
      %1690 = vst.msk [vmem:[%s223 + $0x330] sm:$0xff] %vm1587, %v1561
      %1691 = vst.msk [vmem:[%s223 + $0x338] sm:$0xff] %vm1587, %v1562
      %1692 = vst.msk [vmem:[%s223 + $0x340] sm:$0xff] %vm1587, %v1563
      %1693 = vst.msk [vmem:[%s223 + $0x348] sm:$0xff] %vm1587, %v1564
      %1694 = vst.msk [vmem:[%s223 + $0x350] sm:$0xff] %vm1587, %v1565
      %1695 = vst.msk [vmem:[%s223 + $0x358] sm:$0xff] %vm1587, %v1566
      %1696 = vst.msk [vmem:[%s223 + $0x360] sm:$0xff] %vm1587, %v1567
      %1697 = vst.msk [vmem:[%s223 + $0x368] sm:$0xff] %vm1587, %v1568
      %1698 = vst.msk [vmem:[%s223 + $0x370] sm:$0xff] %vm1587, %v1569
      %1699 = vst.msk [vmem:[%s223 + $0x378] sm:$0xff] %vm1587, %v1570
      %1700 = vst.msk [vmem:[%s223 + $0x380] sm:$0xff] %vm1587, %v1571
      %1701 = vst.msk [vmem:[%s223 + $0x388] sm:$0xff] %vm1587, %v1572
      %1702 = vst.msk [vmem:[%s223 + $0x390] sm:$0xff] %vm1587, %v1573
      %1703 = vst.msk [vmem:[%s223 + $0x398] sm:$0xff] %vm1587, %v1574
      %1704 = vst.msk [vmem:[%s223 + $0x3a0] sm:$0xff] %vm1587, %v1575
      %1705 = vst.msk [vmem:[%s223 + $0x3a8] sm:$0xff] %vm1587, %v1576
      %1706 = vst.msk [vmem:[%s223 + $0x3b0] sm:$0xff] %vm1587, %v1577
      %1707 = vst.msk [vmem:[%s223 + $0x3b8] sm:$0xff] %vm1587, %v1578
      %1708 = vst.msk [vmem:[%s223 + $0x3c0] sm:$0xff] %vm1587, %v1579
      %1709 = vst.msk [vmem:[%s223 + $0x3c8] sm:$0xff] %vm1587, %v1580
      %1710 = vst.msk [vmem:[%s223 + $0x3d0] sm:$0xff] %vm1587, %v1581
      %1711 = vst.msk [vmem:[%s223 + $0x3d8] sm:$0xff] %vm1587, %v1582
      %1712 = vst.msk [vmem:[%s223 + $0x3e0] sm:$0xff] %vm1587, %v1583
      %1713 = vst.msk [vmem:[%s223 + $0x3e8] sm:$0xff] %vm1587, %v1584
      %1714 = vst.msk [vmem:[%s223 + $0x3f0] sm:$0xff] %vm1587, %v1585
      %1715 = vst.msk [vmem:[%s223 + $0x3f8] sm:$0xff] %vm1587, %v1586
      %s1716 = smul.u32 128, %s18
      %p1717 = scmp.lt.s32.totalorder %s1716, 255
      %s1718 = scalar_select %p1717, %s1716, 255
      %p1719 = scmp.lt.s32.totalorder %s19, 0
      %s1720 = scalar_select %p1719, %s19, 0
      %s1721 = sadd.s32 %s1720, %s1718
      %s1722 = smul.addr %s1721, 8
      %s1723 = scalar_lea.vmem %s3, %s1722
      // Predicated region
      $region33: #{generator_forward.17} parent=31 // pred_check
        %p1724 = pneg %p124
      $region34: #{generator_forward.17} parent=31 // pred_check_branch
        %1726 = sbr.rel (%p1724) target = $region36
      $region35: #{generator_forward.17} parent=31 // pred_region
        %s1727 = smul.u32 128, %s18
      $region36: #{generator_forward.17} parent=31 // pred_fallthru
        _
    $region32: #{generator_forward.17} parent=5 // pred_fallthru
      _
    %p1728 = scmp.le.s32.totalorder 2, %s9
    // Predicated region
    $region37: #{generator_forward.17} parent=5 // pred_check
      %p1729 = pneg %p1728
    $region38: #{generator_forward.17} parent=5 // pred_check_branch
      %1731 = sbr.rel (%p1729) target = $region40
    $region39: #{generator_forward.17} parent=5 // pred_region
      %s1732 = ssub.s32 %s9, 2
      // Predicated region
      $region41: #{generator_forward.17} parent=39 // pred_check
        %p1733 = pneg %p130
      $region42: #{generator_forward.17} parent=39 // pred_check_branch
        %1735 = sbr.rel (%p1733) target = $region44
      $region43: #{generator_forward.17} parent=39 // pred_region
        %s1736 = smul.u32 128, %s20
        %p1737 = scmp.lt.s32.totalorder %s1736, 255
        %s1738 = scalar_select %p1737, %s1736, 255
        %p1739 = scmp.lt.s32.totalorder %s21, 0
        %s1740 = scalar_select %p1739, %s21, 0
        %s1741 = sadd.s32 %s1740, %s1738
        %s1742 = smul.addr %s1741, 8
        %s1743 = scalar_lea.vmem %s3, %s1742
      $region44: #{generator_forward.17} parent=39 // pred_fallthru
        _
    $region40: #{generator_forward.17} parent=5 // pred_fallthru
      _
  $region6: #{generator_forward.17} parent=0 // loop_footer
    %s13 = sadd.s32 1, %s9
  $region7: #{generator_forward.17} parent=0 // loop_footer_branch
    %8 = sbr.rel target = $region3
  $region8: #{generator_forward.17} parent=0 // loop_exit
    _

</llo_original>
